<compile_context>
chip_gen: v7x
topology: tpu7x:2x2x1
jax: 0.10.0
libtpu: 0.0.40
codegen_flags: <defaults>
</compile_context>

<pallas_src>
import numpy as np
import jax
import jax.numpy as jnp
from jax import lax
from jax.experimental import pallas as pl
from jax.experimental.pallas import tpu as pltpu

KH = KW = 7
PAD = 3
SUB_OFF = 8      # aligned sublane offset of the map interior in the scratch
LANE_OFF = 128   # aligned lane offset of the map interior in the scratch


def _round_up(v, m):
    return (v + m - 1) // m * m


def _largest_divisor_leq(n, cap):
    cap = max(1, min(n, cap))
    for d in range(cap, 0, -1):
        if n % d == 0:
            return d
    return 1


def _make_fused_kernel(H, W, c_chunk, inv_c, scratch_h, scratch_w):
    rows = slice(SUB_OFF, SUB_OFF + H)
    cols = slice(LANE_OFF, LANE_OFF + W)

    def kernel(x_ref, w_ref, b_ref, o_ref, pad_a_ref, pad_m_ref):
        # x_ref : (1, c_chunk, H, W) native dtype      (auto-pipelined block)
        # w_ref : (98,) f32 SMEM  -- flattened (1,2,7,7) conv weight
        # b_ref : (1,)  f32 SMEM  -- conv bias
        # o_ref : (1, 1, H, W)    -- written only on the last channel step
        # pad_*_ref : (scratch_h, scratch_w) f32 zero-padded resident maps
        c = pl.program_id(1)
        n_c = pl.num_programs(1)

        # ---- channel-chunk reduction (sum & max) in small f32 slabs --------
        psum = None
        pmax = None
        start = 0
        while start < c_chunk:                      # static trace-time loop
            size = min(8, c_chunk - start)
            blk = x_ref[0, start:start + size].astype(jnp.float32)  # (s,H,W)
            s = jnp.sum(blk, axis=0)                # elementwise slab adds
            m = jnp.max(blk, axis=0)
            psum = s if psum is None else psum + s
            pmax = m if pmax is None else jnp.maximum(pmax, m)
            start += size

        @pl.when(c == 0)
        def _init():
            pad_a_ref[...] = jnp.zeros((scratch_h, scratch_w), jnp.float32)
            pad_m_ref[...] = jnp.zeros((scratch_h, scratch_w), jnp.float32)
            pad_a_ref[rows, cols] = psum            # aligned interior store
            pad_m_ref[rows, cols] = pmax

        @pl.when(c > 0)
        def _acc():
            pad_a_ref[rows, cols] = pad_a_ref[rows, cols] + psum
            pad_m_ref[rows, cols] = jnp.maximum(pad_m_ref[rows, cols], pmax)

        @pl.when(c == n_c - 1)
        def _epilogue():
            # sum -> mean (the zero halo stays zero), then fused 7x7 conv
            # (avg chan 0, max chan 1) + bias + sigmoid.
            # 4 independent accumulator chains to keep the VALUs busy.
            acc_a0 = jnp.zeros((H, W), jnp.float32)
            acc_a1 = jnp.zeros((H, W), jnp.float32)
            acc_m0 = jnp.zeros((H, W), jnp.float32)
            acc_m1 = jnp.zeros((H, W), jnp.float32)
            for dj in range(KW):
                c0 = LANE_OFF - PAD + dj
                a_col = pad_a_ref[:, c0:c0 + W] * inv_c   # (scratch_h, W)
                m_col = pad_m_ref[:, c0:c0 + W]
                for di in range(KH):
                    r0 = SUB_OFF - PAD + di
                    wa = w_ref[di * KW + dj]              # avg-channel tap
                    wm = w_ref[KH * KW + di * KW + dj]    # max-channel tap
                    a_win = a_col[r0:r0 + H, :]
                    m_win = m_col[r0:r0 + H, :]
                    if di % 2 == 0:
                        acc_a0 = acc_a0 + wa * a_win
                        acc_m0 = acc_m0 + wm * m_win
                    else:
                        acc_a1 = acc_a1 + wa * a_win
                        acc_m1 = acc_m1 + wm * m_win
            acc = (acc_a0 + acc_a1) + (acc_m0 + acc_m1)
            out = jax.nn.sigmoid(acc + b_ref[0])
            o_ref[0, 0, :, :] = out.astype(o_ref.dtype)

    return kernel


def spatial_attention(x, weight, bias):
    """x: (N, C, H, W); weight: (1, 2, 7, 7); bias: (1,). Returns (N, 1, H, W)."""
    N, C, H, W = x.shape
    itemsize = jnp.dtype(x.dtype).itemsize
    sublane = {4: 8, 2: 16, 1: 32}.get(itemsize, 8)
    per_chan_bytes = _round_up(H, sublane) * _round_up(W, 128) * itemsize

    # Fat channel chunk (divisor of C, <= 256) within a v7x-safe input budget.
    in_budget = 24 * 1024 * 1024
    cap = min(256, max(1, in_budget // (2 * per_chan_bytes)))
    c_chunk = _largest_divisor_leq(C, cap)
    n_c = C // c_chunk

    scratch_h = SUB_OFF + _round_up(H + PAD, 8)
    scratch_w = LANE_OFF + _round_up(W + PAD, 128)

    need = (2 * c_chunk * per_chan_bytes                       # dbl-buf input
            + 2 * scratch_h * scratch_w * 4                    # padded maps
            + 2 * _round_up(H, 8) * _round_up(W, 128) * itemsize  # output bufs
            + (2 << 20))                                       # slack
    vmem_limit = int(min(max(need, 32 * 1024 * 1024), 100 * 1024 * 1024))

    w_flat = weight.astype(jnp.float32).reshape(-1)            # (98,)
    b = bias.astype(jnp.float32).reshape(-1)                   # (1,)

    kernel = _make_fused_kernel(H, W, c_chunk, np.float32(1.0 / C),
                                scratch_h, scratch_w)

    return pl.pallas_call(
        kernel,
        out_shape=jax.ShapeDtypeStruct((N, 1, H, W), x.dtype),
        grid=(N, n_c),
        in_specs=[
            pl.BlockSpec((1, c_chunk, H, W), lambda n, c: (n, c, 0, 0)),
            pl.BlockSpec(memory_space=pltpu.MemorySpace.SMEM),
            pl.BlockSpec(memory_space=pltpu.MemorySpace.SMEM),
        ],
        out_specs=pl.BlockSpec((1, 1, H, W), lambda n, c: (n, 0, 0, 0)),
        scratch_shapes=[
            pltpu.VMEM((scratch_h, scratch_w), jnp.float32),   # padded avg map
            pltpu.VMEM((scratch_h, scratch_w), jnp.float32),   # padded max map
        ],
        compiler_params=pltpu.CompilerParams(
            dimension_semantics=("parallel", "arbitrary"),
            vmem_limit_bytes=vmem_limit),
    )(x, w_flat, b)


def _reference(x, weight, bias):
    xf = x.astype(jnp.float32)
    avg = jnp.mean(xf, axis=1, keepdims=True)
    mx = jnp.max(xf, axis=1, keepdims=True)
    cat = jnp.concatenate([avg, mx], axis=1)                   # (N, 2, H, W)
    y = lax.conv_general_dilated(
        cat, weight.astype(jnp.float32), window_strides=(1, 1),
        padding=[(PAD, PAD), (PAD, PAD)],
        dimension_numbers=("NCHW", "OIHW", "NCHW"),
        precision=lax.Precision.HIGHEST)
    out = jax.nn.sigmoid(y + bias.astype(jnp.float32)[None, :, None, None])
    return out.astype(x.dtype)


if __name__ == "__main__":
    key = jax.random.PRNGKey(0)
    kx, kw, kb = jax.random.split(key, 3)

    # NCHW input consistent with the module's forward.
    x = jax.random.normal(kx, (2, 4, 16, 16), dtype=jnp.float32)

    # Deterministic synthetic parameters (nn.Conv2d(2, 1, 7, padding=3) shapes).
    weight = 0.1 * jax.random.normal(kw, (1, 2, 7, 7), dtype=jnp.float32)
    bias = 0.1 * jax.random.normal(kb, (1,), dtype=jnp.float32)

    fn = jax.jit(spatial_attention)
    out = jax.block_until_ready(fn(x, weight, bias))

    ref = jax.block_until_ready(_reference(x, weight, bias))
    np.testing.assert_allclose(np.asarray(out), np.asarray(ref),
                               atol=2e-5, rtol=2e-5)

    print("KERNEL_OK")
</pallas_src>

<mosaic_0001>
module attributes {stable_mosaic.version = 11 : i64} {
  func.func @kernel(%arg0: i32, %arg1: i32, %arg2: memref<1x4x16x16xf32, #tpu.memory_space<vmem>>, %arg3: memref<98xf32, #tpu.memory_space<smem>>, %arg4: memref<1xf32, #tpu.memory_space<smem>>, %arg5: memref<1x1x16x16xf32, #tpu.memory_space<vmem>>, %arg6: memref<32x256xf32, #tpu.memory_space<vmem>>, %arg7: memref<32x256xf32, #tpu.memory_space<vmem>>) attributes {dimension_semantics = [#tpu.dimension_semantics<parallel>, #tpu.dimension_semantics<arbitrary>], iteration_bounds = array<i64: 2, 1>, scalar_prefetch = 0 : i64, scratch_operands = 2 : i64, tpu.core_type = #tpu.core_type<tc>, window_params = [{transform_indices = @transform_0, window_bounds = array<i64: 1, 4, 16, 16>}, {transform_indices = @transform_1, window_bounds = array<i64: 98>}, {transform_indices = @transform_2, window_bounds = array<i64: 1>}, {transform_indices = @transform_3, window_bounds = array<i64: 1, 1, 16, 16>}]} {
    %c0 = arith.constant 0 : index
    %c0_0 = arith.constant 0 : index
    %c0_1 = arith.constant 0 : index
    %c0_2 = arith.constant 0 : index
    %0 = vector.load %arg2[%c0, %c0_0, %c0_1, %c0_2] : memref<1x4x16x16xf32, #tpu.memory_space<vmem>>, vector<1x4x16x16xf32>
    %1 = vector.shape_cast %0 : vector<1x4x16x16xf32> to vector<4x16x16xf32>
    %cst = arith.constant dense<0.000000e+00> : vector<16x16xf32>
    %2 = vector.multi_reduction <add>, %1, %cst [0] : vector<4x16x16xf32> to vector<16x16xf32>
    %cst_3 = arith.constant dense<0xFF800000> : vector<16x16xf32>
    %3 = vector.multi_reduction <maximumf>, %1, %cst_3 [0] : vector<4x16x16xf32> to vector<16x16xf32>
    %c0_i32 = arith.constant 0 : i32
    %4 = arith.cmpi eq, %arg1, %c0_i32 : i32
    %5 = arith.extui %4 : i1 to i32
    %c0_i32_4 = arith.constant 0 : i32
    %6 = arith.cmpi ne, %5, %c0_i32_4 : i32
    scf.if %6 {
      %cst_9 = arith.constant 0.000000e+00 : f32
      %13 = vector.broadcast %cst_9 : f32 to vector<32x256xf32>
      %c0_10 = arith.constant 0 : index
      %c0_11 = arith.constant 0 : index
      %14 = vector.load %arg6[%c0_10, %c0_11] : memref<32x256xf32, #tpu.memory_space<vmem>>, vector<32x256xf32>
      tpu.vector_store %arg6[%c0_10, %c0_11], %13 {strides = array<i32>} : memref<32x256xf32, #tpu.memory_space<vmem>>, vector<32x256xf32>,
      %cst_12 = arith.constant 0.000000e+00 : f32
      %15 = vector.broadcast %cst_12 : f32 to vector<32x256xf32>
      %c0_13 = arith.constant 0 : index
      %c0_14 = arith.constant 0 : index
      %16 = vector.load %arg7[%c0_13, %c0_14] : memref<32x256xf32, #tpu.memory_space<vmem>>, vector<32x256xf32>
      tpu.vector_store %arg7[%c0_13, %c0_14], %15 {strides = array<i32>} : memref<32x256xf32, #tpu.memory_space<vmem>>, vector<32x256xf32>,
      %c8 = arith.constant 8 : index
      %c128 = arith.constant 128 : index
      %17 = vector.load %arg6[%c8, %c128] : memref<32x256xf32, #tpu.memory_space<vmem>>, vector<16x16xf32>
      tpu.vector_store %arg6[%c8, %c128], %2 {strides = array<i32>} : memref<32x256xf32, #tpu.memory_space<vmem>>, vector<16x16xf32>,
      %c8_15 = arith.constant 8 : index
      %c128_16 = arith.constant 128 : index
      %18 = vector.load %arg7[%c8_15, %c128_16] : memref<32x256xf32, #tpu.memory_space<vmem>>, vector<16x16xf32>
      tpu.vector_store %arg7[%c8_15, %c128_16], %3 {strides = array<i32>} : memref<32x256xf32, #tpu.memory_space<vmem>>, vector<16x16xf32>,
    } else {
    }
    %c0_i32_5 = arith.constant 0 : i32
    %7 = arith.cmpi sgt, %arg1, %c0_i32_5 : i32
    %8 = arith.extui %7 : i1 to i32
    %c0_i32_6 = arith.constant 0 : i32
    %9 = arith.cmpi ne, %8, %c0_i32_6 : i32
    scf.if %9 {
      %c8 = arith.constant 8 : index
      %c128 = arith.constant 128 : index
      %13 = vector.load %arg6[%c8, %c128] : memref<32x256xf32, #tpu.memory_space<vmem>>, vector<16x16xf32>
      %14 = arith.addf %13, %2 : vector<16x16xf32>
      %c8_9 = arith.constant 8 : index
      %c128_10 = arith.constant 128 : index
      %15 = vector.load %arg6[%c8_9, %c128_10] : memref<32x256xf32, #tpu.memory_space<vmem>>, vector<16x16xf32>
      tpu.vector_store %arg6[%c8_9, %c128_10], %14 {strides = array<i32>} : memref<32x256xf32, #tpu.memory_space<vmem>>, vector<16x16xf32>,
      %c8_11 = arith.constant 8 : index
      %c128_12 = arith.constant 128 : index
      %16 = vector.load %arg7[%c8_11, %c128_12] : memref<32x256xf32, #tpu.memory_space<vmem>>, vector<16x16xf32>
      %17 = arith.maximumf %16, %3 : vector<16x16xf32>
      %c8_13 = arith.constant 8 : index
      %c128_14 = arith.constant 128 : index
      %18 = vector.load %arg7[%c8_13, %c128_14] : memref<32x256xf32, #tpu.memory_space<vmem>>, vector<16x16xf32>
      tpu.vector_store %arg7[%c8_13, %c128_14], %17 {strides = array<i32>} : memref<32x256xf32, #tpu.memory_space<vmem>>, vector<16x16xf32>,
    } else {
    }
    %c0_i32_7 = arith.constant 0 : i32
    %10 = arith.cmpi eq, %arg1, %c0_i32_7 : i32
    %11 = arith.extui %10 : i1 to i32
    %c0_i32_8 = arith.constant 0 : i32
    %12 = arith.cmpi ne, %11, %c0_i32_8 : i32
    scf.if %12 {
      %cst_9 = arith.constant 0.000000e+00 : f32
      %13 = vector.broadcast %cst_9 : f32 to vector<16x16xf32>
      %cst_10 = arith.constant 0.000000e+00 : f32
      %14 = vector.broadcast %cst_10 : f32 to vector<16x16xf32>
      %cst_11 = arith.constant 0.000000e+00 : f32
      %15 = vector.broadcast %cst_11 : f32 to vector<16x16xf32>
      %cst_12 = arith.constant 0.000000e+00 : f32
      %16 = vector.broadcast %cst_12 : f32 to vector<16x16xf32>
      %c0_13 = arith.constant 0 : index
      %c125 = arith.constant 125 : index
      %17 = vector.load %arg6[%c0_13, %c125] : memref<32x256xf32, #tpu.memory_space<vmem>>, vector<32x16xf32>
      %cst_14 = arith.constant 2.500000e-01 : f32
      %18 = vector.broadcast %cst_14 : f32 to vector<32x16xf32>
      %19 = arith.mulf %17, %18 : vector<32x16xf32>
      %c0_15 = arith.constant 0 : index
      %c125_16 = arith.constant 125 : index
      %20 = vector.load %arg7[%c0_15, %c125_16] : memref<32x256xf32, #tpu.memory_space<vmem>>, vector<32x16xf32>
      %c0_17 = arith.constant 0 : index
      %21 = memref.load %arg3[%c0_17] : memref<98xf32, #tpu.memory_space<smem>>
      %c49 = arith.constant 49 : index
      %22 = memref.load %arg3[%c49] : memref<98xf32, #tpu.memory_space<smem>>
      %23 = vector.extract_strided_slice %19 {offsets = [5, 0], sizes = [16, 16], strides = [1, 1]} : vector<32x16xf32> to vector<16x16xf32>
      %24 = vector.extract_strided_slice %20 {offsets = [5, 0], sizes = [16, 16], strides = [1, 1]} : vector<32x16xf32> to vector<16x16xf32>
      %25 = vector.broadcast %21 : f32 to vector<16x16xf32>
      %26 = arith.mulf %25, %23 : vector<16x16xf32>
      %27 = arith.addf %13, %26 : vector<16x16xf32>
      %28 = vector.broadcast %22 : f32 to vector<16x16xf32>
      %29 = arith.mulf %28, %24 : vector<16x16xf32>
      %30 = arith.addf %15, %29 : vector<16x16xf32>
      %c7 = arith.constant 7 : index
      %31 = memref.load %arg3[%c7] : memref<98xf32, #tpu.memory_space<smem>>
      %c56 = arith.constant 56 : index
      %32 = memref.load %arg3[%c56] : memref<98xf32, #tpu.memory_space<smem>>
      %33 = vector.extract_strided_slice %19 {offsets = [6, 0], sizes = [16, 16], strides = [1, 1]} : vector<32x16xf32> to vector<16x16xf32>
      %34 = vector.extract_strided_slice %20 {offsets = [6, 0], sizes = [16, 16], strides = [1, 1]} : vector<32x16xf32> to vector<16x16xf32>
      %35 = vector.broadcast %31 : f32 to vector<16x16xf32>
      %36 = arith.mulf %35, %33 : vector<16x16xf32>
      %37 = arith.addf %14, %36 : vector<16x16xf32>
      %38 = vector.broadcast %32 : f32 to vector<16x16xf32>
      %39 = arith.mulf %38, %34 : vector<16x16xf32>
      %40 = arith.addf %16, %39 : vector<16x16xf32>
      %c14 = arith.constant 14 : index
      %41 = memref.load %arg3[%c14] : memref<98xf32, #tpu.memory_space<smem>>
      %c63 = arith.constant 63 : index
      %42 = memref.load %arg3[%c63] : memref<98xf32, #tpu.memory_space<smem>>
      %43 = vector.extract_strided_slice %19 {offsets = [7, 0], sizes = [16, 16], strides = [1, 1]} : vector<32x16xf32> to vector<16x16xf32>
      %44 = vector.extract_strided_slice %20 {offsets = [7, 0], sizes = [16, 16], strides = [1, 1]} : vector<32x16xf32> to vector<16x16xf32>
      %45 = vector.broadcast %41 : f32 to vector<16x16xf32>
      %46 = arith.mulf %45, %43 : vector<16x16xf32>
      %47 = arith.addf %27, %46 : vector<16x16xf32>
      %48 = vector.broadcast %42 : f32 to vector<16x16xf32>
      %49 = arith.mulf %48, %44 : vector<16x16xf32>
      %50 = arith.addf %30, %49 : vector<16x16xf32>
      %c21 = arith.constant 21 : index
      %51 = memref.load %arg3[%c21] : memref<98xf32, #tpu.memory_space<smem>>
      %c70 = arith.constant 70 : index
      %52 = memref.load %arg3[%c70] : memref<98xf32, #tpu.memory_space<smem>>
      %53 = vector.extract_strided_slice %19 {offsets = [8, 0], sizes = [16, 16], strides = [1, 1]} : vector<32x16xf32> to vector<16x16xf32>
      %54 = vector.extract_strided_slice %20 {offsets = [8, 0], sizes = [16, 16], strides = [1, 1]} : vector<32x16xf32> to vector<16x16xf32>
      %55 = vector.broadcast %51 : f32 to vector<16x16xf32>
      %56 = arith.mulf %55, %53 : vector<16x16xf32>
      %57 = arith.addf %37, %56 : vector<16x16xf32>
      %58 = vector.broadcast %52 : f32 to vector<16x16xf32>
      %59 = arith.mulf %58, %54 : vector<16x16xf32>
      %60 = arith.addf %40, %59 : vector<16x16xf32>
      %c28 = arith.constant 28 : index
      %61 = memref.load %arg3[%c28] : memref<98xf32, #tpu.memory_space<smem>>
      %c77 = arith.constant 77 : index
      %62 = memref.load %arg3[%c77] : memref<98xf32, #tpu.memory_space<smem>>
      %63 = vector.extract_strided_slice %19 {offsets = [9, 0], sizes = [16, 16], strides = [1, 1]} : vector<32x16xf32> to vector<16x16xf32>
      %64 = vector.extract_strided_slice %20 {offsets = [9, 0], sizes = [16, 16], strides = [1, 1]} : vector<32x16xf32> to vector<16x16xf32>
      %65 = vector.broadcast %61 : f32 to vector<16x16xf32>
      %66 = arith.mulf %65, %63 : vector<16x16xf32>
      %67 = arith.addf %47, %66 : vector<16x16xf32>
      %68 = vector.broadcast %62 : f32 to vector<16x16xf32>
      %69 = arith.mulf %68, %64 : vector<16x16xf32>
      %70 = arith.addf %50, %69 : vector<16x16xf32>
      %c35 = arith.constant 35 : index
      %71 = memref.load %arg3[%c35] : memref<98xf32, #tpu.memory_space<smem>>
      %c84 = arith.constant 84 : index
      %72 = memref.load %arg3[%c84] : memref<98xf32, #tpu.memory_space<smem>>
      %73 = vector.extract_strided_slice %19 {offsets = [10, 0], sizes = [16, 16], strides = [1, 1]} : vector<32x16xf32> to vector<16x16xf32>
      %74 = vector.extract_strided_slice %20 {offsets = [10, 0], sizes = [16, 16], strides = [1, 1]} : vector<32x16xf32> to vector<16x16xf32>
      %75 = vector.broadcast %71 : f32 to vector<16x16xf32>
      %76 = arith.mulf %75, %73 : vector<16x16xf32>
      %77 = arith.addf %57, %76 : vector<16x16xf32>
      %78 = vector.broadcast %72 : f32 to vector<16x16xf32>
      %79 = arith.mulf %78, %74 : vector<16x16xf32>
      %80 = arith.addf %60, %79 : vector<16x16xf32>
      %c42 = arith.constant 42 : index
      %81 = memref.load %arg3[%c42] : memref<98xf32, #tpu.memory_space<smem>>
      %c91 = arith.constant 91 : index
      %82 = memref.load %arg3[%c91] : memref<98xf32, #tpu.memory_space<smem>>
      %83 = vector.extract_strided_slice %19 {offsets = [11, 0], sizes = [16, 16], strides = [1, 1]} : vector<32x16xf32> to vector<16x16xf32>
      %84 = vector.extract_strided_slice %20 {offsets = [11, 0], sizes = [16, 16], strides = [1, 1]} : vector<32x16xf32> to vector<16x16xf32>
      %85 = vector.broadcast %81 : f32 to vector<16x16xf32>
      %86 = arith.mulf %85, %83 : vector<16x16xf32>
      %87 = arith.addf %67, %86 : vector<16x16xf32>
      %88 = vector.broadcast %82 : f32 to vector<16x16xf32>
      %89 = arith.mulf %88, %84 : vector<16x16xf32>
      %90 = arith.addf %70, %89 : vector<16x16xf32>
      %c0_18 = arith.constant 0 : index
      %c126 = arith.constant 126 : index
      %91 = vector.load %arg6[%c0_18, %c126] : memref<32x256xf32, #tpu.memory_space<vmem>>, vector<32x16xf32>
      %cst_19 = arith.constant 2.500000e-01 : f32
      %92 = vector.broadcast %cst_19 : f32 to vector<32x16xf32>
      %93 = arith.mulf %91, %92 : vector<32x16xf32>
      %c0_20 = arith.constant 0 : index
      %c126_21 = arith.constant 126 : index
      %94 = vector.load %arg7[%c0_20, %c126_21] : memref<32x256xf32, #tpu.memory_space<vmem>>, vector<32x16xf32>
      %c1 = arith.constant 1 : index
      %95 = memref.load %arg3[%c1] : memref<98xf32, #tpu.memory_space<smem>>
      %c50 = arith.constant 50 : index
      %96 = memref.load %arg3[%c50] : memref<98xf32, #tpu.memory_space<smem>>
      %97 = vector.extract_strided_slice %93 {offsets = [5, 0], sizes = [16, 16], strides = [1, 1]} : vector<32x16xf32> to vector<16x16xf32>
      %98 = vector.extract_strided_slice %94 {offsets = [5, 0], sizes = [16, 16], strides = [1, 1]} : vector<32x16xf32> to vector<16x16xf32>
      %99 = vector.broadcast %95 : f32 to vector<16x16xf32>
      %100 = arith.mulf %99, %97 : vector<16x16xf32>
      %101 = arith.addf %87, %100 : vector<16x16xf32>
      %102 = vector.broadcast %96 : f32 to vector<16x16xf32>
      %103 = arith.mulf %102, %98 : vector<16x16xf32>
      %104 = arith.addf %90, %103 : vector<16x16xf32>
      %c8 = arith.constant 8 : index
      %105 = memref.load %arg3[%c8] : memref<98xf32, #tpu.memory_space<smem>>
      %c57 = arith.constant 57 : index
      %106 = memref.load %arg3[%c57] : memref<98xf32, #tpu.memory_space<smem>>
      %107 = vector.extract_strided_slice %93 {offsets = [6, 0], sizes = [16, 16], strides = [1, 1]} : vector<32x16xf32> to vector<16x16xf32>
      %108 = vector.extract_strided_slice %94 {offsets = [6, 0], sizes = [16, 16], strides = [1, 1]} : vector<32x16xf32> to vector<16x16xf32>
      %109 = vector.broadcast %105 : f32 to vector<16x16xf32>
      %110 = arith.mulf %109, %107 : vector<16x16xf32>
      %111 = arith.addf %77, %110 : vector<16x16xf32>
      %112 = vector.broadcast %106 : f32 to vector<16x16xf32>
      %113 = arith.mulf %112, %108 : vector<16x16xf32>
      %114 = arith.addf %80, %113 : vector<16x16xf32>
      %c15 = arith.constant 15 : index
      %115 = memref.load %arg3[%c15] : memref<98xf32, #tpu.memory_space<smem>>
      %c64 = arith.constant 64 : index
      %116 = memref.load %arg3[%c64] : memref<98xf32, #tpu.memory_space<smem>>
      %117 = vector.extract_strided_slice %93 {offsets = [7, 0], sizes = [16, 16], strides = [1, 1]} : vector<32x16xf32> to vector<16x16xf32>
      %118 = vector.extract_strided_slice %94 {offsets = [7, 0], sizes = [16, 16], strides = [1, 1]} : vector<32x16xf32> to vector<16x16xf32>
      %119 = vector.broadcast %115 : f32 to vector<16x16xf32>
      %120 = arith.mulf %119, %117 : vector<16x16xf32>
      %121 = arith.addf %101, %120 : vector<16x16xf32>
      %122 = vector.broadcast %116 : f32 to vector<16x16xf32>
      %123 = arith.mulf %122, %118 : vector<16x16xf32>
      %124 = arith.addf %104, %123 : vector<16x16xf32>
      %c22 = arith.constant 22 : index
      %125 = memref.load %arg3[%c22] : memref<98xf32, #tpu.memory_space<smem>>
      %c71 = arith.constant 71 : index
      %126 = memref.load %arg3[%c71] : memref<98xf32, #tpu.memory_space<smem>>
      %127 = vector.extract_strided_slice %93 {offsets = [8, 0], sizes = [16, 16], strides = [1, 1]} : vector<32x16xf32> to vector<16x16xf32>
      %128 = vector.extract_strided_slice %94 {offsets = [8, 0], sizes = [16, 16], strides = [1, 1]} : vector<32x16xf32> to vector<16x16xf32>
      %129 = vector.broadcast %125 : f32 to vector<16x16xf32>
      %130 = arith.mulf %129, %127 : vector<16x16xf32>
      %131 = arith.addf %111, %130 : vector<16x16xf32>
      %132 = vector.broadcast %126 : f32 to vector<16x16xf32>
      %133 = arith.mulf %132, %128 : vector<16x16xf32>
      %134 = arith.addf %114, %133 : vector<16x16xf32>
      %c29 = arith.constant 29 : index
      %135 = memref.load %arg3[%c29] : memref<98xf32, #tpu.memory_space<smem>>
      %c78 = arith.constant 78 : index
      %136 = memref.load %arg3[%c78] : memref<98xf32, #tpu.memory_space<smem>>
      %137 = vector.extract_strided_slice %93 {offsets = [9, 0], sizes = [16, 16], strides = [1, 1]} : vector<32x16xf32> to vector<16x16xf32>
      %138 = vector.extract_strided_slice %94 {offsets = [9, 0], sizes = [16, 16], strides = [1, 1]} : vector<32x16xf32> to vector<16x16xf32>
      %139 = vector.broadcast %135 : f32 to vector<16x16xf32>
      %140 = arith.mulf %139, %137 : vector<16x16xf32>
      %141 = arith.addf %121, %140 : vector<16x16xf32>
      %142 = vector.broadcast %136 : f32 to vector<16x16xf32>
      %143 = arith.mulf %142, %138 : vector<16x16xf32>
      %144 = arith.addf %124, %143 : vector<16x16xf32>
      %c36 = arith.constant 36 : index
      %145 = memref.load %arg3[%c36] : memref<98xf32, #tpu.memory_space<smem>>
      %c85 = arith.constant 85 : index
      %146 = memref.load %arg3[%c85] : memref<98xf32, #tpu.memory_space<smem>>
      %147 = vector.extract_strided_slice %93 {offsets = [10, 0], sizes = [16, 16], strides = [1, 1]} : vector<32x16xf32> to vector<16x16xf32>
      %148 = vector.extract_strided_slice %94 {offsets = [10, 0], sizes = [16, 16], strides = [1, 1]} : vector<32x16xf32> to vector<16x16xf32>
      %149 = vector.broadcast %145 : f32 to vector<16x16xf32>
      %150 = arith.mulf %149, %147 : vector<16x16xf32>
      %151 = arith.addf %131, %150 : vector<16x16xf32>
      %152 = vector.broadcast %146 : f32 to vector<16x16xf32>
      %153 = arith.mulf %152, %148 : vector<16x16xf32>
      %154 = arith.addf %134, %153 : vector<16x16xf32>
      %c43 = arith.constant 43 : index
      %155 = memref.load %arg3[%c43] : memref<98xf32, #tpu.memory_space<smem>>
      %c92 = arith.constant 92 : index
      %156 = memref.load %arg3[%c92] : memref<98xf32, #tpu.memory_space<smem>>
      %157 = vector.extract_strided_slice %93 {offsets = [11, 0], sizes = [16, 16], strides = [1, 1]} : vector<32x16xf32> to vector<16x16xf32>
      %158 = vector.extract_strided_slice %94 {offsets = [11, 0], sizes = [16, 16], strides = [1, 1]} : vector<32x16xf32> to vector<16x16xf32>
      %159 = vector.broadcast %155 : f32 to vector<16x16xf32>
      %160 = arith.mulf %159, %157 : vector<16x16xf32>
      %161 = arith.addf %141, %160 : vector<16x16xf32>
      %162 = vector.broadcast %156 : f32 to vector<16x16xf32>
      %163 = arith.mulf %162, %158 : vector<16x16xf32>
      %164 = arith.addf %144, %163 : vector<16x16xf32>
      %c0_22 = arith.constant 0 : index
      %c127 = arith.constant 127 : index
      %165 = vector.load %arg6[%c0_22, %c127] : memref<32x256xf32, #tpu.memory_space<vmem>>, vector<32x16xf32>
      %cst_23 = arith.constant 2.500000e-01 : f32
      %166 = vector.broadcast %cst_23 : f32 to vector<32x16xf32>
      %167 = arith.mulf %165, %166 : vector<32x16xf32>
      %c0_24 = arith.constant 0 : index
      %c127_25 = arith.constant 127 : index
      %168 = vector.load %arg7[%c0_24, %c127_25] : memref<32x256xf32, #tpu.memory_space<vmem>>, vector<32x16xf32>
      %c2 = arith.constant 2 : index
      %169 = memref.load %arg3[%c2] : memref<98xf32, #tpu.memory_space<smem>>
      %c51 = arith.constant 51 : index
      %170 = memref.load %arg3[%c51] : memref<98xf32, #tpu.memory_space<smem>>
      %171 = vector.extract_strided_slice %167 {offsets = [5, 0], sizes = [16, 16], strides = [1, 1]} : vector<32x16xf32> to vector<16x16xf32>
      %172 = vector.extract_strided_slice %168 {offsets = [5, 0], sizes = [16, 16], strides = [1, 1]} : vector<32x16xf32> to vector<16x16xf32>
      %173 = vector.broadcast %169 : f32 to vector<16x16xf32>
      %174 = arith.mulf %173, %171 : vector<16x16xf32>
      %175 = arith.addf %161, %174 : vector<16x16xf32>
      %176 = vector.broadcast %170 : f32 to vector<16x16xf32>
      %177 = arith.mulf %176, %172 : vector<16x16xf32>
      %178 = arith.addf %164, %177 : vector<16x16xf32>
      %c9 = arith.constant 9 : index
      %179 = memref.load %arg3[%c9] : memref<98xf32, #tpu.memory_space<smem>>
      %c58 = arith.constant 58 : index
      %180 = memref.load %arg3[%c58] : memref<98xf32, #tpu.memory_space<smem>>
      %181 = vector.extract_strided_slice %167 {offsets = [6, 0], sizes = [16, 16], strides = [1, 1]} : vector<32x16xf32> to vector<16x16xf32>
      %182 = vector.extract_strided_slice %168 {offsets = [6, 0], sizes = [16, 16], strides = [1, 1]} : vector<32x16xf32> to vector<16x16xf32>
      %183 = vector.broadcast %179 : f32 to vector<16x16xf32>
      %184 = arith.mulf %183, %181 : vector<16x16xf32>
      %185 = arith.addf %151, %184 : vector<16x16xf32>
      %186 = vector.broadcast %180 : f32 to vector<16x16xf32>
      %187 = arith.mulf %186, %182 : vector<16x16xf32>
      %188 = arith.addf %154, %187 : vector<16x16xf32>
      %c16 = arith.constant 16 : index
      %189 = memref.load %arg3[%c16] : memref<98xf32, #tpu.memory_space<smem>>
      %c65 = arith.constant 65 : index
      %190 = memref.load %arg3[%c65] : memref<98xf32, #tpu.memory_space<smem>>
      %191 = vector.extract_strided_slice %167 {offsets = [7, 0], sizes = [16, 16], strides = [1, 1]} : vector<32x16xf32> to vector<16x16xf32>
      %192 = vector.extract_strided_slice %168 {offsets = [7, 0], sizes = [16, 16], strides = [1, 1]} : vector<32x16xf32> to vector<16x16xf32>
      %193 = vector.broadcast %189 : f32 to vector<16x16xf32>
      %194 = arith.mulf %193, %191 : vector<16x16xf32>
      %195 = arith.addf %175, %194 : vector<16x16xf32>
      %196 = vector.broadcast %190 : f32 to vector<16x16xf32>
      %197 = arith.mulf %196, %192 : vector<16x16xf32>
      %198 = arith.addf %178, %197 : vector<16x16xf32>
      %c23 = arith.constant 23 : index
      %199 = memref.load %arg3[%c23] : memref<98xf32, #tpu.memory_space<smem>>
      %c72 = arith.constant 72 : index
      %200 = memref.load %arg3[%c72] : memref<98xf32, #tpu.memory_space<smem>>
      %201 = vector.extract_strided_slice %167 {offsets = [8, 0], sizes = [16, 16], strides = [1, 1]} : vector<32x16xf32> to vector<16x16xf32>
      %202 = vector.extract_strided_slice %168 {offsets = [8, 0], sizes = [16, 16], strides = [1, 1]} : vector<32x16xf32> to vector<16x16xf32>
      %203 = vector.broadcast %199 : f32 to vector<16x16xf32>
      %204 = arith.mulf %203, %201 : vector<16x16xf32>
      %205 = arith.addf %185, %204 : vector<16x16xf32>
      %206 = vector.broadcast %200 : f32 to vector<16x16xf32>
      %207 = arith.mulf %206, %202 : vector<16x16xf32>
      %208 = arith.addf %188, %207 : vector<16x16xf32>
      %c30 = arith.constant 30 : index
      %209 = memref.load %arg3[%c30] : memref<98xf32, #tpu.memory_space<smem>>
      %c79 = arith.constant 79 : index
      %210 = memref.load %arg3[%c79] : memref<98xf32, #tpu.memory_space<smem>>
      %211 = vector.extract_strided_slice %167 {offsets = [9, 0], sizes = [16, 16], strides = [1, 1]} : vector<32x16xf32> to vector<16x16xf32>
      %212 = vector.extract_strided_slice %168 {offsets = [9, 0], sizes = [16, 16], strides = [1, 1]} : vector<32x16xf32> to vector<16x16xf32>
      %213 = vector.broadcast %209 : f32 to vector<16x16xf32>
      %214 = arith.mulf %213, %211 : vector<16x16xf32>
      %215 = arith.addf %195, %214 : vector<16x16xf32>
      %216 = vector.broadcast %210 : f32 to vector<16x16xf32>
      %217 = arith.mulf %216, %212 : vector<16x16xf32>
      %218 = arith.addf %198, %217 : vector<16x16xf32>
      %c37 = arith.constant 37 : index
      %219 = memref.load %arg3[%c37] : memref<98xf32, #tpu.memory_space<smem>>
      %c86 = arith.constant 86 : index
      %220 = memref.load %arg3[%c86] : memref<98xf32, #tpu.memory_space<smem>>
      %221 = vector.extract_strided_slice %167 {offsets = [10, 0], sizes = [16, 16], strides = [1, 1]} : vector<32x16xf32> to vector<16x16xf32>
      %222 = vector.extract_strided_slice %168 {offsets = [10, 0], sizes = [16, 16], strides = [1, 1]} : vector<32x16xf32> to vector<16x16xf32>
      %223 = vector.broadcast %219 : f32 to vector<16x16xf32>
      %224 = arith.mulf %223, %221 : vector<16x16xf32>
      %225 = arith.addf %205, %224 : vector<16x16xf32>
      %226 = vector.broadcast %220 : f32 to vector<16x16xf32>
      %227 = arith.mulf %226, %222 : vector<16x16xf32>
      %228 = arith.addf %208, %227 : vector<16x16xf32>
      %c44 = arith.constant 44 : index
      %229 = memref.load %arg3[%c44] : memref<98xf32, #tpu.memory_space<smem>>
      %c93 = arith.constant 93 : index
      %230 = memref.load %arg3[%c93] : memref<98xf32, #tpu.memory_space<smem>>
      %231 = vector.extract_strided_slice %167 {offsets = [11, 0], sizes = [16, 16], strides = [1, 1]} : vector<32x16xf32> to vector<16x16xf32>
      %232 = vector.extract_strided_slice %168 {offsets = [11, 0], sizes = [16, 16], strides = [1, 1]} : vector<32x16xf32> to vector<16x16xf32>
      %233 = vector.broadcast %229 : f32 to vector<16x16xf32>
      %234 = arith.mulf %233, %231 : vector<16x16xf32>
      %235 = arith.addf %215, %234 : vector<16x16xf32>
      %236 = vector.broadcast %230 : f32 to vector<16x16xf32>
      %237 = arith.mulf %236, %232 : vector<16x16xf32>
      %238 = arith.addf %218, %237 : vector<16x16xf32>
      %c0_26 = arith.constant 0 : index
      %c128 = arith.constant 128 : index
      %239 = vector.load %arg6[%c0_26, %c128] : memref<32x256xf32, #tpu.memory_space<vmem>>, vector<32x16xf32>
      %cst_27 = arith.constant 2.500000e-01 : f32
      %240 = vector.broadcast %cst_27 : f32 to vector<32x16xf32>
      %241 = arith.mulf %239, %240 : vector<32x16xf32>
      %c0_28 = arith.constant 0 : index
      %c128_29 = arith.constant 128 : index
      %242 = vector.load %arg7[%c0_28, %c128_29] : memref<32x256xf32, #tpu.memory_space<vmem>>, vector<32x16xf32>
      %c3 = arith.constant 3 : index
      %243 = memref.load %arg3[%c3] : memref<98xf32, #tpu.memory_space<smem>>
      %c52 = arith.constant 52 : index
      %244 = memref.load %arg3[%c52] : memref<98xf32, #tpu.memory_space<smem>>
      %245 = vector.extract_strided_slice %241 {offsets = [5, 0], sizes = [16, 16], strides = [1, 1]} : vector<32x16xf32> to vector<16x16xf32>
      %246 = vector.extract_strided_slice %242 {offsets = [5, 0], sizes = [16, 16], strides = [1, 1]} : vector<32x16xf32> to vector<16x16xf32>
      %247 = vector.broadcast %243 : f32 to vector<16x16xf32>
      %248 = arith.mulf %247, %245 : vector<16x16xf32>
      %249 = arith.addf %235, %248 : vector<16x16xf32>
      %250 = vector.broadcast %244 : f32 to vector<16x16xf32>
      %251 = arith.mulf %250, %246 : vector<16x16xf32>
      %252 = arith.addf %238, %251 : vector<16x16xf32>
      %c10 = arith.constant 10 : index
      %253 = memref.load %arg3[%c10] : memref<98xf32, #tpu.memory_space<smem>>
      %c59 = arith.constant 59 : index
      %254 = memref.load %arg3[%c59] : memref<98xf32, #tpu.memory_space<smem>>
      %255 = vector.extract_strided_slice %241 {offsets = [6, 0], sizes = [16, 16], strides = [1, 1]} : vector<32x16xf32> to vector<16x16xf32>
      %256 = vector.extract_strided_slice %242 {offsets = [6, 0], sizes = [16, 16], strides = [1, 1]} : vector<32x16xf32> to vector<16x16xf32>
      %257 = vector.broadcast %253 : f32 to vector<16x16xf32>
      %258 = arith.mulf %257, %255 : vector<16x16xf32>
      %259 = arith.addf %225, %258 : vector<16x16xf32>
      %260 = vector.broadcast %254 : f32 to vector<16x16xf32>
      %261 = arith.mulf %260, %256 : vector<16x16xf32>
      %262 = arith.addf %228, %261 : vector<16x16xf32>
      %c17 = arith.constant 17 : index
      %263 = memref.load %arg3[%c17] : memref<98xf32, #tpu.memory_space<smem>>
      %c66 = arith.constant 66 : index
      %264 = memref.load %arg3[%c66] : memref<98xf32, #tpu.memory_space<smem>>
      %265 = vector.extract_strided_slice %241 {offsets = [7, 0], sizes = [16, 16], strides = [1, 1]} : vector<32x16xf32> to vector<16x16xf32>
      %266 = vector.extract_strided_slice %242 {offsets = [7, 0], sizes = [16, 16], strides = [1, 1]} : vector<32x16xf32> to vector<16x16xf32>
      %267 = vector.broadcast %263 : f32 to vector<16x16xf32>
      %268 = arith.mulf %267, %265 : vector<16x16xf32>
      %269 = arith.addf %249, %268 : vector<16x16xf32>
      %270 = vector.broadcast %264 : f32 to vector<16x16xf32>
      %271 = arith.mulf %270, %266 : vector<16x16xf32>
      %272 = arith.addf %252, %271 : vector<16x16xf32>
      %c24 = arith.constant 24 : index
      %273 = memref.load %arg3[%c24] : memref<98xf32, #tpu.memory_space<smem>>
      %c73 = arith.constant 73 : index
      %274 = memref.load %arg3[%c73] : memref<98xf32, #tpu.memory_space<smem>>
      %275 = vector.extract_strided_slice %241 {offsets = [8, 0], sizes = [16, 16], strides = [1, 1]} : vector<32x16xf32> to vector<16x16xf32>
      %276 = vector.extract_strided_slice %242 {offsets = [8, 0], sizes = [16, 16], strides = [1, 1]} : vector<32x16xf32> to vector<16x16xf32>
      %277 = vector.broadcast %273 : f32 to vector<16x16xf32>
      %278 = arith.mulf %277, %275 : vector<16x16xf32>
      %279 = arith.addf %259, %278 : vector<16x16xf32>
      %280 = vector.broadcast %274 : f32 to vector<16x16xf32>
      %281 = arith.mulf %280, %276 : vector<16x16xf32>
      %282 = arith.addf %262, %281 : vector<16x16xf32>
      %c31 = arith.constant 31 : index
      %283 = memref.load %arg3[%c31] : memref<98xf32, #tpu.memory_space<smem>>
      %c80 = arith.constant 80 : index
      %284 = memref.load %arg3[%c80] : memref<98xf32, #tpu.memory_space<smem>>
      %285 = vector.extract_strided_slice %241 {offsets = [9, 0], sizes = [16, 16], strides = [1, 1]} : vector<32x16xf32> to vector<16x16xf32>
      %286 = vector.extract_strided_slice %242 {offsets = [9, 0], sizes = [16, 16], strides = [1, 1]} : vector<32x16xf32> to vector<16x16xf32>
      %287 = vector.broadcast %283 : f32 to vector<16x16xf32>
      %288 = arith.mulf %287, %285 : vector<16x16xf32>
      %289 = arith.addf %269, %288 : vector<16x16xf32>
      %290 = vector.broadcast %284 : f32 to vector<16x16xf32>
      %291 = arith.mulf %290, %286 : vector<16x16xf32>
      %292 = arith.addf %272, %291 : vector<16x16xf32>
      %c38 = arith.constant 38 : index
      %293 = memref.load %arg3[%c38] : memref<98xf32, #tpu.memory_space<smem>>
      %c87 = arith.constant 87 : index
      %294 = memref.load %arg3[%c87] : memref<98xf32, #tpu.memory_space<smem>>
      %295 = vector.extract_strided_slice %241 {offsets = [10, 0], sizes = [16, 16], strides = [1, 1]} : vector<32x16xf32> to vector<16x16xf32>
      %296 = vector.extract_strided_slice %242 {offsets = [10, 0], sizes = [16, 16], strides = [1, 1]} : vector<32x16xf32> to vector<16x16xf32>
      %297 = vector.broadcast %293 : f32 to vector<16x16xf32>
      %298 = arith.mulf %297, %295 : vector<16x16xf32>
      %299 = arith.addf %279, %298 : vector<16x16xf32>
      %300 = vector.broadcast %294 : f32 to vector<16x16xf32>
      %301 = arith.mulf %300, %296 : vector<16x16xf32>
      %302 = arith.addf %282, %301 : vector<16x16xf32>
      %c45 = arith.constant 45 : index
      %303 = memref.load %arg3[%c45] : memref<98xf32, #tpu.memory_space<smem>>
      %c94 = arith.constant 94 : index
      %304 = memref.load %arg3[%c94] : memref<98xf32, #tpu.memory_space<smem>>
      %305 = vector.extract_strided_slice %241 {offsets = [11, 0], sizes = [16, 16], strides = [1, 1]} : vector<32x16xf32> to vector<16x16xf32>
      %306 = vector.extract_strided_slice %242 {offsets = [11, 0], sizes = [16, 16], strides = [1, 1]} : vector<32x16xf32> to vector<16x16xf32>
      %307 = vector.broadcast %303 : f32 to vector<16x16xf32>
      %308 = arith.mulf %307, %305 : vector<16x16xf32>
      %309 = arith.addf %289, %308 : vector<16x16xf32>
      %310 = vector.broadcast %304 : f32 to vector<16x16xf32>
      %311 = arith.mulf %310, %306 : vector<16x16xf32>
      %312 = arith.addf %292, %311 : vector<16x16xf32>
      %c0_30 = arith.constant 0 : index
      %c129 = arith.constant 129 : index
      %313 = vector.load %arg6[%c0_30, %c129] : memref<32x256xf32, #tpu.memory_space<vmem>>, vector<32x16xf32>
      %cst_31 = arith.constant 2.500000e-01 : f32
      %314 = vector.broadcast %cst_31 : f32 to vector<32x16xf32>
      %315 = arith.mulf %313, %314 : vector<32x16xf32>
      %c0_32 = arith.constant 0 : index
      %c129_33 = arith.constant 129 : index
      %316 = vector.load %arg7[%c0_32, %c129_33] : memref<32x256xf32, #tpu.memory_space<vmem>>, vector<32x16xf32>
      %c4 = arith.constant 4 : index
      %317 = memref.load %arg3[%c4] : memref<98xf32, #tpu.memory_space<smem>>
      %c53 = arith.constant 53 : index
      %318 = memref.load %arg3[%c53] : memref<98xf32, #tpu.memory_space<smem>>
      %319 = vector.extract_strided_slice %315 {offsets = [5, 0], sizes = [16, 16], strides = [1, 1]} : vector<32x16xf32> to vector<16x16xf32>
      %320 = vector.extract_strided_slice %316 {offsets = [5, 0], sizes = [16, 16], strides = [1, 1]} : vector<32x16xf32> to vector<16x16xf32>
      %321 = vector.broadcast %317 : f32 to vector<16x16xf32>
      %322 = arith.mulf %321, %319 : vector<16x16xf32>
      %323 = arith.addf %309, %322 : vector<16x16xf32>
      %324 = vector.broadcast %318 : f32 to vector<16x16xf32>
      %325 = arith.mulf %324, %320 : vector<16x16xf32>
      %326 = arith.addf %312, %325 : vector<16x16xf32>
      %c11 = arith.constant 11 : index
      %327 = memref.load %arg3[%c11] : memref<98xf32, #tpu.memory_space<smem>>
      %c60 = arith.constant 60 : index
      %328 = memref.load %arg3[%c60] : memref<98xf32, #tpu.memory_space<smem>>
      %329 = vector.extract_strided_slice %315 {offsets = [6, 0], sizes = [16, 16], strides = [1, 1]} : vector<32x16xf32> to vector<16x16xf32>
      %330 = vector.extract_strided_slice %316 {offsets = [6, 0], sizes = [16, 16], strides = [1, 1]} : vector<32x16xf32> to vector<16x16xf32>
      %331 = vector.broadcast %327 : f32 to vector<16x16xf32>
      %332 = arith.mulf %331, %329 : vector<16x16xf32>
      %333 = arith.addf %299, %332 : vector<16x16xf32>
      %334 = vector.broadcast %328 : f32 to vector<16x16xf32>
      %335 = arith.mulf %334, %330 : vector<16x16xf32>
      %336 = arith.addf %302, %335 : vector<16x16xf32>
      %c18 = arith.constant 18 : index
      %337 = memref.load %arg3[%c18] : memref<98xf32, #tpu.memory_space<smem>>
      %c67 = arith.constant 67 : index
      %338 = memref.load %arg3[%c67] : memref<98xf32, #tpu.memory_space<smem>>
      %339 = vector.extract_strided_slice %315 {offsets = [7, 0], sizes = [16, 16], strides = [1, 1]} : vector<32x16xf32> to vector<16x16xf32>
      %340 = vector.extract_strided_slice %316 {offsets = [7, 0], sizes = [16, 16], strides = [1, 1]} : vector<32x16xf32> to vector<16x16xf32>
      %341 = vector.broadcast %337 : f32 to vector<16x16xf32>
      %342 = arith.mulf %341, %339 : vector<16x16xf32>
      %343 = arith.addf %323, %342 : vector<16x16xf32>
      %344 = vector.broadcast %338 : f32 to vector<16x16xf32>
      %345 = arith.mulf %344, %340 : vector<16x16xf32>
      %346 = arith.addf %326, %345 : vector<16x16xf32>
      %c25 = arith.constant 25 : index
      %347 = memref.load %arg3[%c25] : memref<98xf32, #tpu.memory_space<smem>>
      %c74 = arith.constant 74 : index
      %348 = memref.load %arg3[%c74] : memref<98xf32, #tpu.memory_space<smem>>
      %349 = vector.extract_strided_slice %315 {offsets = [8, 0], sizes = [16, 16], strides = [1, 1]} : vector<32x16xf32> to vector<16x16xf32>
      %350 = vector.extract_strided_slice %316 {offsets = [8, 0], sizes = [16, 16], strides = [1, 1]} : vector<32x16xf32> to vector<16x16xf32>
      %351 = vector.broadcast %347 : f32 to vector<16x16xf32>
      %352 = arith.mulf %351, %349 : vector<16x16xf32>
      %353 = arith.addf %333, %352 : vector<16x16xf32>
      %354 = vector.broadcast %348 : f32 to vector<16x16xf32>
      %355 = arith.mulf %354, %350 : vector<16x16xf32>
      %356 = arith.addf %336, %355 : vector<16x16xf32>
      %c32 = arith.constant 32 : index
      %357 = memref.load %arg3[%c32] : memref<98xf32, #tpu.memory_space<smem>>
      %c81 = arith.constant 81 : index
      %358 = memref.load %arg3[%c81] : memref<98xf32, #tpu.memory_space<smem>>
      %359 = vector.extract_strided_slice %315 {offsets = [9, 0], sizes = [16, 16], strides = [1, 1]} : vector<32x16xf32> to vector<16x16xf32>
      %360 = vector.extract_strided_slice %316 {offsets = [9, 0], sizes = [16, 16], strides = [1, 1]} : vector<32x16xf32> to vector<16x16xf32>
      %361 = vector.broadcast %357 : f32 to vector<16x16xf32>
      %362 = arith.mulf %361, %359 : vector<16x16xf32>
      %363 = arith.addf %343, %362 : vector<16x16xf32>
      %364 = vector.broadcast %358 : f32 to vector<16x16xf32>
      %365 = arith.mulf %364, %360 : vector<16x16xf32>
      %366 = arith.addf %346, %365 : vector<16x16xf32>
      %c39 = arith.constant 39 : index
      %367 = memref.load %arg3[%c39] : memref<98xf32, #tpu.memory_space<smem>>
      %c88 = arith.constant 88 : index
      %368 = memref.load %arg3[%c88] : memref<98xf32, #tpu.memory_space<smem>>
      %369 = vector.extract_strided_slice %315 {offsets = [10, 0], sizes = [16, 16], strides = [1, 1]} : vector<32x16xf32> to vector<16x16xf32>
      %370 = vector.extract_strided_slice %316 {offsets = [10, 0], sizes = [16, 16], strides = [1, 1]} : vector<32x16xf32> to vector<16x16xf32>
      %371 = vector.broadcast %367 : f32 to vector<16x16xf32>
      %372 = arith.mulf %371, %369 : vector<16x16xf32>
      %373 = arith.addf %353, %372 : vector<16x16xf32>
      %374 = vector.broadcast %368 : f32 to vector<16x16xf32>
      %375 = arith.mulf %374, %370 : vector<16x16xf32>
      %376 = arith.addf %356, %375 : vector<16x16xf32>
      %c46 = arith.constant 46 : index
      %377 = memref.load %arg3[%c46] : memref<98xf32, #tpu.memory_space<smem>>
      %c95 = arith.constant 95 : index
      %378 = memref.load %arg3[%c95] : memref<98xf32, #tpu.memory_space<smem>>
      %379 = vector.extract_strided_slice %315 {offsets = [11, 0], sizes = [16, 16], strides = [1, 1]} : vector<32x16xf32> to vector<16x16xf32>
      %380 = vector.extract_strided_slice %316 {offsets = [11, 0], sizes = [16, 16], strides = [1, 1]} : vector<32x16xf32> to vector<16x16xf32>
      %381 = vector.broadcast %377 : f32 to vector<16x16xf32>
      %382 = arith.mulf %381, %379 : vector<16x16xf32>
      %383 = arith.addf %363, %382 : vector<16x16xf32>
      %384 = vector.broadcast %378 : f32 to vector<16x16xf32>
      %385 = arith.mulf %384, %380 : vector<16x16xf32>
      %386 = arith.addf %366, %385 : vector<16x16xf32>
      %c0_34 = arith.constant 0 : index
      %c130 = arith.constant 130 : index
      %387 = vector.load %arg6[%c0_34, %c130] : memref<32x256xf32, #tpu.memory_space<vmem>>, vector<32x16xf32>
      %cst_35 = arith.constant 2.500000e-01 : f32
      %388 = vector.broadcast %cst_35 : f32 to vector<32x16xf32>
      %389 = arith.mulf %387, %388 : vector<32x16xf32>
      %c0_36 = arith.constant 0 : index
      %c130_37 = arith.constant 130 : index
      %390 = vector.load %arg7[%c0_36, %c130_37] : memref<32x256xf32, #tpu.memory_space<vmem>>, vector<32x16xf32>
      %c5 = arith.constant 5 : index
      %391 = memref.load %arg3[%c5] : memref<98xf32, #tpu.memory_space<smem>>
      %c54 = arith.constant 54 : index
      %392 = memref.load %arg3[%c54] : memref<98xf32, #tpu.memory_space<smem>>
      %393 = vector.extract_strided_slice %389 {offsets = [5, 0], sizes = [16, 16], strides = [1, 1]} : vector<32x16xf32> to vector<16x16xf32>
      %394 = vector.extract_strided_slice %390 {offsets = [5, 0], sizes = [16, 16], strides = [1, 1]} : vector<32x16xf32> to vector<16x16xf32>
      %395 = vector.broadcast %391 : f32 to vector<16x16xf32>
      %396 = arith.mulf %395, %393 : vector<16x16xf32>
      %397 = arith.addf %383, %396 : vector<16x16xf32>
      %398 = vector.broadcast %392 : f32 to vector<16x16xf32>
      %399 = arith.mulf %398, %394 : vector<16x16xf32>
      %400 = arith.addf %386, %399 : vector<16x16xf32>
      %c12 = arith.constant 12 : index
      %401 = memref.load %arg3[%c12] : memref<98xf32, #tpu.memory_space<smem>>
      %c61 = arith.constant 61 : index
      %402 = memref.load %arg3[%c61] : memref<98xf32, #tpu.memory_space<smem>>
      %403 = vector.extract_strided_slice %389 {offsets = [6, 0], sizes = [16, 16], strides = [1, 1]} : vector<32x16xf32> to vector<16x16xf32>
      %404 = vector.extract_strided_slice %390 {offsets = [6, 0], sizes = [16, 16], strides = [1, 1]} : vector<32x16xf32> to vector<16x16xf32>
      %405 = vector.broadcast %401 : f32 to vector<16x16xf32>
      %406 = arith.mulf %405, %403 : vector<16x16xf32>
      %407 = arith.addf %373, %406 : vector<16x16xf32>
      %408 = vector.broadcast %402 : f32 to vector<16x16xf32>
      %409 = arith.mulf %408, %404 : vector<16x16xf32>
      %410 = arith.addf %376, %409 : vector<16x16xf32>
      %c19 = arith.constant 19 : index
      %411 = memref.load %arg3[%c19] : memref<98xf32, #tpu.memory_space<smem>>
      %c68 = arith.constant 68 : index
      %412 = memref.load %arg3[%c68] : memref<98xf32, #tpu.memory_space<smem>>
      %413 = vector.extract_strided_slice %389 {offsets = [7, 0], sizes = [16, 16], strides = [1, 1]} : vector<32x16xf32> to vector<16x16xf32>
      %414 = vector.extract_strided_slice %390 {offsets = [7, 0], sizes = [16, 16], strides = [1, 1]} : vector<32x16xf32> to vector<16x16xf32>
      %415 = vector.broadcast %411 : f32 to vector<16x16xf32>
      %416 = arith.mulf %415, %413 : vector<16x16xf32>
      %417 = arith.addf %397, %416 : vector<16x16xf32>
      %418 = vector.broadcast %412 : f32 to vector<16x16xf32>
      %419 = arith.mulf %418, %414 : vector<16x16xf32>
      %420 = arith.addf %400, %419 : vector<16x16xf32>
      %c26 = arith.constant 26 : index
      %421 = memref.load %arg3[%c26] : memref<98xf32, #tpu.memory_space<smem>>
      %c75 = arith.constant 75 : index
      %422 = memref.load %arg3[%c75] : memref<98xf32, #tpu.memory_space<smem>>
      %423 = vector.extract_strided_slice %389 {offsets = [8, 0], sizes = [16, 16], strides = [1, 1]} : vector<32x16xf32> to vector<16x16xf32>
      %424 = vector.extract_strided_slice %390 {offsets = [8, 0], sizes = [16, 16], strides = [1, 1]} : vector<32x16xf32> to vector<16x16xf32>
      %425 = vector.broadcast %421 : f32 to vector<16x16xf32>
      %426 = arith.mulf %425, %423 : vector<16x16xf32>
      %427 = arith.addf %407, %426 : vector<16x16xf32>
      %428 = vector.broadcast %422 : f32 to vector<16x16xf32>
      %429 = arith.mulf %428, %424 : vector<16x16xf32>
      %430 = arith.addf %410, %429 : vector<16x16xf32>
      %c33 = arith.constant 33 : index
      %431 = memref.load %arg3[%c33] : memref<98xf32, #tpu.memory_space<smem>>
      %c82 = arith.constant 82 : index
      %432 = memref.load %arg3[%c82] : memref<98xf32, #tpu.memory_space<smem>>
      %433 = vector.extract_strided_slice %389 {offsets = [9, 0], sizes = [16, 16], strides = [1, 1]} : vector<32x16xf32> to vector<16x16xf32>
      %434 = vector.extract_strided_slice %390 {offsets = [9, 0], sizes = [16, 16], strides = [1, 1]} : vector<32x16xf32> to vector<16x16xf32>
      %435 = vector.broadcast %431 : f32 to vector<16x16xf32>
      %436 = arith.mulf %435, %433 : vector<16x16xf32>
      %437 = arith.addf %417, %436 : vector<16x16xf32>
      %438 = vector.broadcast %432 : f32 to vector<16x16xf32>
      %439 = arith.mulf %438, %434 : vector<16x16xf32>
      %440 = arith.addf %420, %439 : vector<16x16xf32>
      %c40 = arith.constant 40 : index
      %441 = memref.load %arg3[%c40] : memref<98xf32, #tpu.memory_space<smem>>
      %c89 = arith.constant 89 : index
      %442 = memref.load %arg3[%c89] : memref<98xf32, #tpu.memory_space<smem>>
      %443 = vector.extract_strided_slice %389 {offsets = [10, 0], sizes = [16, 16], strides = [1, 1]} : vector<32x16xf32> to vector<16x16xf32>
      %444 = vector.extract_strided_slice %390 {offsets = [10, 0], sizes = [16, 16], strides = [1, 1]} : vector<32x16xf32> to vector<16x16xf32>
      %445 = vector.broadcast %441 : f32 to vector<16x16xf32>
      %446 = arith.mulf %445, %443 : vector<16x16xf32>
      %447 = arith.addf %427, %446 : vector<16x16xf32>
      %448 = vector.broadcast %442 : f32 to vector<16x16xf32>
      %449 = arith.mulf %448, %444 : vector<16x16xf32>
      %450 = arith.addf %430, %449 : vector<16x16xf32>
      %c47 = arith.constant 47 : index
      %451 = memref.load %arg3[%c47] : memref<98xf32, #tpu.memory_space<smem>>
      %c96 = arith.constant 96 : index
      %452 = memref.load %arg3[%c96] : memref<98xf32, #tpu.memory_space<smem>>
      %453 = vector.extract_strided_slice %389 {offsets = [11, 0], sizes = [16, 16], strides = [1, 1]} : vector<32x16xf32> to vector<16x16xf32>
      %454 = vector.extract_strided_slice %390 {offsets = [11, 0], sizes = [16, 16], strides = [1, 1]} : vector<32x16xf32> to vector<16x16xf32>
      %455 = vector.broadcast %451 : f32 to vector<16x16xf32>
      %456 = arith.mulf %455, %453 : vector<16x16xf32>
      %457 = arith.addf %437, %456 : vector<16x16xf32>
      %458 = vector.broadcast %452 : f32 to vector<16x16xf32>
      %459 = arith.mulf %458, %454 : vector<16x16xf32>
      %460 = arith.addf %440, %459 : vector<16x16xf32>
      %c0_38 = arith.constant 0 : index
      %c131 = arith.constant 131 : index
      %461 = vector.load %arg6[%c0_38, %c131] : memref<32x256xf32, #tpu.memory_space<vmem>>, vector<32x16xf32>
      %cst_39 = arith.constant 2.500000e-01 : f32
      %462 = vector.broadcast %cst_39 : f32 to vector<32x16xf32>
      %463 = arith.mulf %461, %462 : vector<32x16xf32>
      %c0_40 = arith.constant 0 : index
      %c131_41 = arith.constant 131 : index
      %464 = vector.load %arg7[%c0_40, %c131_41] : memref<32x256xf32, #tpu.memory_space<vmem>>, vector<32x16xf32>
      %c6 = arith.constant 6 : index
      %465 = memref.load %arg3[%c6] : memref<98xf32, #tpu.memory_space<smem>>
      %c55 = arith.constant 55 : index
      %466 = memref.load %arg3[%c55] : memref<98xf32, #tpu.memory_space<smem>>
      %467 = vector.extract_strided_slice %463 {offsets = [5, 0], sizes = [16, 16], strides = [1, 1]} : vector<32x16xf32> to vector<16x16xf32>
      %468 = vector.extract_strided_slice %464 {offsets = [5, 0], sizes = [16, 16], strides = [1, 1]} : vector<32x16xf32> to vector<16x16xf32>
      %469 = vector.broadcast %465 : f32 to vector<16x16xf32>
      %470 = arith.mulf %469, %467 : vector<16x16xf32>
      %471 = arith.addf %457, %470 : vector<16x16xf32>
      %472 = vector.broadcast %466 : f32 to vector<16x16xf32>
      %473 = arith.mulf %472, %468 : vector<16x16xf32>
      %474 = arith.addf %460, %473 : vector<16x16xf32>
      %c13 = arith.constant 13 : index
      %475 = memref.load %arg3[%c13] : memref<98xf32, #tpu.memory_space<smem>>
      %c62 = arith.constant 62 : index
      %476 = memref.load %arg3[%c62] : memref<98xf32, #tpu.memory_space<smem>>
      %477 = vector.extract_strided_slice %463 {offsets = [6, 0], sizes = [16, 16], strides = [1, 1]} : vector<32x16xf32> to vector<16x16xf32>
      %478 = vector.extract_strided_slice %464 {offsets = [6, 0], sizes = [16, 16], strides = [1, 1]} : vector<32x16xf32> to vector<16x16xf32>
      %479 = vector.broadcast %475 : f32 to vector<16x16xf32>
      %480 = arith.mulf %479, %477 : vector<16x16xf32>
      %481 = arith.addf %447, %480 : vector<16x16xf32>
      %482 = vector.broadcast %476 : f32 to vector<16x16xf32>
      %483 = arith.mulf %482, %478 : vector<16x16xf32>
      %484 = arith.addf %450, %483 : vector<16x16xf32>
      %c20 = arith.constant 20 : index
      %485 = memref.load %arg3[%c20] : memref<98xf32, #tpu.memory_space<smem>>
      %c69 = arith.constant 69 : index
      %486 = memref.load %arg3[%c69] : memref<98xf32, #tpu.memory_space<smem>>
      %487 = vector.extract_strided_slice %463 {offsets = [7, 0], sizes = [16, 16], strides = [1, 1]} : vector<32x16xf32> to vector<16x16xf32>
      %488 = vector.extract_strided_slice %464 {offsets = [7, 0], sizes = [16, 16], strides = [1, 1]} : vector<32x16xf32> to vector<16x16xf32>
      %489 = vector.broadcast %485 : f32 to vector<16x16xf32>
      %490 = arith.mulf %489, %487 : vector<16x16xf32>
      %491 = arith.addf %471, %490 : vector<16x16xf32>
      %492 = vector.broadcast %486 : f32 to vector<16x16xf32>
      %493 = arith.mulf %492, %488 : vector<16x16xf32>
      %494 = arith.addf %474, %493 : vector<16x16xf32>
      %c27 = arith.constant 27 : index
      %495 = memref.load %arg3[%c27] : memref<98xf32, #tpu.memory_space<smem>>
      %c76 = arith.constant 76 : index
      %496 = memref.load %arg3[%c76] : memref<98xf32, #tpu.memory_space<smem>>
      %497 = vector.extract_strided_slice %463 {offsets = [8, 0], sizes = [16, 16], strides = [1, 1]} : vector<32x16xf32> to vector<16x16xf32>
      %498 = vector.extract_strided_slice %464 {offsets = [8, 0], sizes = [16, 16], strides = [1, 1]} : vector<32x16xf32> to vector<16x16xf32>
      %499 = vector.broadcast %495 : f32 to vector<16x16xf32>
      %500 = arith.mulf %499, %497 : vector<16x16xf32>
      %501 = arith.addf %481, %500 : vector<16x16xf32>
      %502 = vector.broadcast %496 : f32 to vector<16x16xf32>
      %503 = arith.mulf %502, %498 : vector<16x16xf32>
      %504 = arith.addf %484, %503 : vector<16x16xf32>
      %c34 = arith.constant 34 : index
      %505 = memref.load %arg3[%c34] : memref<98xf32, #tpu.memory_space<smem>>
      %c83 = arith.constant 83 : index
      %506 = memref.load %arg3[%c83] : memref<98xf32, #tpu.memory_space<smem>>
      %507 = vector.extract_strided_slice %463 {offsets = [9, 0], sizes = [16, 16], strides = [1, 1]} : vector<32x16xf32> to vector<16x16xf32>
      %508 = vector.extract_strided_slice %464 {offsets = [9, 0], sizes = [16, 16], strides = [1, 1]} : vector<32x16xf32> to vector<16x16xf32>
      %509 = vector.broadcast %505 : f32 to vector<16x16xf32>
      %510 = arith.mulf %509, %507 : vector<16x16xf32>
      %511 = arith.addf %491, %510 : vector<16x16xf32>
      %512 = vector.broadcast %506 : f32 to vector<16x16xf32>
      %513 = arith.mulf %512, %508 : vector<16x16xf32>
      %514 = arith.addf %494, %513 : vector<16x16xf32>
      %c41 = arith.constant 41 : index
      %515 = memref.load %arg3[%c41] : memref<98xf32, #tpu.memory_space<smem>>
      %c90 = arith.constant 90 : index
      %516 = memref.load %arg3[%c90] : memref<98xf32, #tpu.memory_space<smem>>
      %517 = vector.extract_strided_slice %463 {offsets = [10, 0], sizes = [16, 16], strides = [1, 1]} : vector<32x16xf32> to vector<16x16xf32>
      %518 = vector.extract_strided_slice %464 {offsets = [10, 0], sizes = [16, 16], strides = [1, 1]} : vector<32x16xf32> to vector<16x16xf32>
      %519 = vector.broadcast %515 : f32 to vector<16x16xf32>
      %520 = arith.mulf %519, %517 : vector<16x16xf32>
      %521 = arith.addf %501, %520 : vector<16x16xf32>
      %522 = vector.broadcast %516 : f32 to vector<16x16xf32>
      %523 = arith.mulf %522, %518 : vector<16x16xf32>
      %524 = arith.addf %504, %523 : vector<16x16xf32>
      %c48 = arith.constant 48 : index
      %525 = memref.load %arg3[%c48] : memref<98xf32, #tpu.memory_space<smem>>
      %c97 = arith.constant 97 : index
      %526 = memref.load %arg3[%c97] : memref<98xf32, #tpu.memory_space<smem>>
      %527 = vector.extract_strided_slice %463 {offsets = [11, 0], sizes = [16, 16], strides = [1, 1]} : vector<32x16xf32> to vector<16x16xf32>
      %528 = vector.extract_strided_slice %464 {offsets = [11, 0], sizes = [16, 16], strides = [1, 1]} : vector<32x16xf32> to vector<16x16xf32>
      %529 = vector.broadcast %525 : f32 to vector<16x16xf32>
      %530 = arith.mulf %529, %527 : vector<16x16xf32>
      %531 = arith.addf %511, %530 : vector<16x16xf32>
      %532 = vector.broadcast %526 : f32 to vector<16x16xf32>
      %533 = arith.mulf %532, %528 : vector<16x16xf32>
      %534 = arith.addf %514, %533 : vector<16x16xf32>
      %535 = arith.addf %531, %521 : vector<16x16xf32>
      %536 = arith.addf %534, %524 : vector<16x16xf32>
      %537 = arith.addf %535, %536 : vector<16x16xf32>
      %c0_42 = arith.constant 0 : index
      %538 = memref.load %arg4[%c0_42] : memref<1xf32, #tpu.memory_space<smem>>
      %539 = vector.broadcast %538 : f32 to vector<16x16xf32>
      %540 = arith.addf %537, %539 : vector<16x16xf32>
      %541 = arith.negf %540 : vector<16x16xf32>
      %542 = math.exp %541 : vector<16x16xf32>
      %cst_43 = arith.constant 1.000000e+00 : f32
      %543 = vector.broadcast %cst_43 : f32 to vector<16x16xf32>
      %544 = arith.addf %543, %542 : vector<16x16xf32>
      %545 = arith.divf %543, %544 : vector<16x16xf32>
      %c0_44 = arith.constant 0 : index
      %c0_45 = arith.constant 0 : index
      %c0_46 = arith.constant 0 : index
      %c0_47 = arith.constant 0 : index
      %546 = vector.load %arg5[%c0_44, %c0_45, %c0_46, %c0_47] : memref<1x1x16x16xf32, #tpu.memory_space<vmem>>, vector<1x1x16x16xf32>
      %547 = vector.shape_cast %546 : vector<1x1x16x16xf32> to vector<16x16xf32>
      %548 = vector.shape_cast %545 : vector<16x16xf32> to vector<1x1x16x16xf32>
      tpu.vector_store %arg5[%c0_44, %c0_45, %c0_46, %c0_47], %548 {strides = array<i32>} : memref<1x1x16x16xf32, #tpu.memory_space<vmem>>, vector<1x1x16x16xf32>,
    } else {
    }
    return
  }
  func.func @transform_0(%arg0: i32, %arg1: i32) -> (i32, i32, i32, i32) {
    %c0_i32 = arith.constant 0 : i32
    %c0_i32_0 = arith.constant 0 : i32
    %c0_i32_1 = arith.constant 0 : i32
    return %arg0, %arg1, %c0_i32, %c0_i32_0 : i32, i32, i32, i32
  }
  func.func @transform_1(%arg0: i32, %arg1: i32) -> i32 {
    %c0_i32 = arith.constant 0 : i32
    %c0_i32_0 = arith.constant 0 : i32
    return %c0_i32 : i32
  }
  func.func @transform_2(%arg0: i32, %arg1: i32) -> i32 {
    %c0_i32 = arith.constant 0 : i32
    %c0_i32_0 = arith.constant 0 : i32
    return %c0_i32 : i32
  }
  func.func @transform_3(%arg0: i32, %arg1: i32) -> (i32, i32, i32, i32) {
    %c0_i32 = arith.constant 0 : i32
    %c0_i32_0 = arith.constant 0 : i32
    %c0_i32_1 = arith.constant 0 : i32
    %c0_i32_2 = arith.constant 0 : i32
    return %arg0, %c0_i32, %c0_i32_0, %c0_i32_1 : i32, i32, i32, i32
  }
}

</mosaic_0001>

<llo_original>
// kernel: spatial_attention.1
$region0: #{spatial_attention.1}
  #allocation0 [shape = 'u32[]', space=smem, size = 0x4, offset = 0x4, fixed_abs, tag = 'smem constant byte address 0x4 - core index']
  #allocation1 [shape = 'u32[144,128]{1,0:T(1,128)}', space=vmem, size = 0x12000, scoped, tag = 'internal scratch']
  #allocation2 [shape = 'f32[32,256]{1,0:T(8,128)}', space=vmem, size = 0x8000, scoped, tag = 'scratch operand']
  #allocation3 [shape = 'f32[32,256]{1,0:T(8,128)}', space=vmem, size = 0x8000, scoped, tag = 'scratch operand']
  #allocation4 [shape = 'f32[1]{0:T(128)S(6)}', space=smem, size = 0x200, scoped, tag = 'scoped memory for spatial_attention.1']
  %s0 = inlined_call_operand.hbm [shape: f32[2,4,16,16], index: 0, kind: input, shape index: {}]
  %s1 = inlined_call_operand.vmem [shape: f32[98], index: 1, kind: input, shape index: {}]
  %s2 = inlined_call_operand.<no memory space> [shape: f32[1], index: 2, kind: input, shape index: {}]
  %s3 = inlined_call_operand.hbm [shape: f32[2,1,16,16], index: 3, kind: output, shape index: {}]
  %s4 = sld [smem:[#allocation0]]
  $region65: #{spatial_attention.1} parent=0
    _
  %s6 = ssub.s32 1, %s4
  %s7 = scalar_select 0, %s6, %s4
  %8 = sst [smem:[#allocation4]] %s2
  $region1: #{spatial_attention.1} parent=0
    #allocation5 [shape = 'u8[65536]{0}', space=vmem, size = 0x10000, scoped, tag = 'input window, operand 0']
    #allocation6 [shape = 's32[2]{0}', space=sflag, size = 0x8, scoped, tag = 'scoped memory for spatial_attention.1']
    #allocation7 [shape = 's32[2]{0}', space=sflag, size = 0x8, scoped, tag = 'scoped memory for spatial_attention.1']
    #allocation8 [shape = 's32[2]{0}', space=sflag, size = 0x8, scoped, tag = 'scoped memory for spatial_attention.1']
    #allocation9 [shape = 'u8[512]{0}', space=smem, size = 0x200, scoped, tag = 'input window, operand 1, single buffered']
    #allocation10 [shape = 'u8[16384]{0}', space=vmem, size = 0x4000, scoped, tag = 'output window, operand 0']
    %9 = vsyncpa [#allocation6], 0
    %s10 = scalar_lea.sflag [#allocation6], 1
    %11 = vsyncpa %s10, 0
    %12 = vsyncpa [#allocation8], 0
    %13 = vsyncpa [#allocation7], 0
    %s14 = scalar_lea.sflag [#allocation7], 1
    %15 = vsyncpa %s14, 0
    loop: start=0, step=1, limit=4
    $region2: #{spatial_attention.1} parent=1 // loop_pre_header
      _
    $region3: #{spatial_attention.1} parent=1 // loop_header
      %s17 = sphi 0, %s21
      %p18 = scmp.ge.s32.totalorder %s17, 4
      %s24 = sphi 0, %s36
      %s25 = sphi 0, %s32
      %s26 = sphi 0, %s24
      %s27 = sphi 0, %s25
      %s28 = sphi 0, %s26
      %s29 = sphi 0, %s27
      %s41 = sphi 0, %s43
      %s44 = sphi 0, %s41
      %s45 = sphi 0, %s44
      %s61 = sphi 0, %s45
      %s65 = sphi 0, %s65
      %s67 = sphi 0, %s65
      %s68 = sphi 0, %s67
      %s82 = sphi 0, %s68
      %s86 = sphi 0, %s86
      %s88 = sphi 0, %s86
      %s89 = sphi 0, %s88
      %s103 = sphi 0, %s89
      %s109 = sphi 0, %s111
      %s112 = sphi 0, %s109
      %s113 = sphi 0, %s112
      %s129 = sphi 0, %s113
    $region4: #{spatial_attention.1} parent=1 // loop_header_branch
      %20 = sbr.rel (%p18) target = $region8
    $region5: #{spatial_attention.1} parent=1 // loop_body
      %s22 = ssub.s32 %s17, 1
      %s23 = ssub.s32 %s17, 2
      %s30 = sadd.s32 1, %s25
      %p31 = scmp.ge.s32.totalorder %s30, 1
      %s32 = scalar_select %p31, 0, %s30
      %s33 = sadd.s32 1, %s24
      %s34 = scalar_select %p31, %s33, %s24
      %p35 = scmp.ge.s32.totalorder %s34, 2
      %s36 = scalar_select %p35, 0, %s34
      %s37 = ssub.s32 %s24, %s36
      %s38 = ssub.s32 %s25, %s32
      %s39 = sor.u32 %s37, %s38
      %p40 = scmp.eq.s32.totalorder %s39, 0
      %s42 = sadd.s32 %s41, 1
      %s43 = scalar_select %p40, %s41, %s42
      %p46 = pneg %p40
      %p47 = scmp.eq.s32.totalorder %s17, 1
      %p48 = por %p46, %p47
      %p49 = scmp.ne.s32.totalorder %s41, %s44
      %p50 = scmp.eq.s32.totalorder %s17, 0
      %p51 = por %p49, %p50
      %p52 = scmp.ne.s32.totalorder %s41, %s44
      %p53 = scmp.eq.s32.totalorder %s22, 1
      %p54 = por %p52, %p53
      %p55 = scmp.ne.s32.totalorder %s44, %s45
      %p56 = scmp.eq.s32.totalorder %s22, 0
      %p57 = por %p55, %p56
      %p58 = scmp.ne.s32.totalorder %s44, %s45
      %p59 = scmp.eq.s32.totalorder %s23, 1
      %p60 = por %p58, %p59
      %p62 = scmp.ne.s32.totalorder %s45, %s61
      %p63 = scmp.eq.s32.totalorder %s23, 0
      %p64 = por %p62, %p63
      %s66 = sadd.s32 %s65, 1
      %p69 = scmp.eq.s32.totalorder %s17, 1
      %p70 = scmp.ne.s32.totalorder %s65, %s67
      %p71 = scmp.eq.s32.totalorder %s17, 0
      %p72 = por %p70, %p71
      %p73 = scmp.ne.s32.totalorder %s65, %s67
      %p74 = scmp.eq.s32.totalorder %s22, 1
      %p75 = por %p73, %p74
      %p76 = scmp.ne.s32.totalorder %s67, %s68
      %p77 = scmp.eq.s32.totalorder %s22, 0
      %p78 = por %p76, %p77
      %p79 = scmp.ne.s32.totalorder %s67, %s68
      %p80 = scmp.eq.s32.totalorder %s23, 1
      %p81 = por %p79, %p80
      %p83 = scmp.ne.s32.totalorder %s68, %s82
      %p84 = scmp.eq.s32.totalorder %s23, 0
      %p85 = por %p83, %p84
      %s87 = sadd.s32 %s86, 1
      %p90 = scmp.eq.s32.totalorder %s17, 1
      %p91 = scmp.ne.s32.totalorder %s86, %s88
      %p92 = scmp.eq.s32.totalorder %s17, 0
      %p93 = por %p91, %p92
      %p94 = scmp.ne.s32.totalorder %s86, %s88
      %p95 = scmp.eq.s32.totalorder %s22, 1
      %p96 = por %p94, %p95
      %p97 = scmp.ne.s32.totalorder %s88, %s89
      %p98 = scmp.eq.s32.totalorder %s22, 0
      %p99 = por %p97, %p98
      %p100 = scmp.ne.s32.totalorder %s88, %s89
      %p101 = scmp.eq.s32.totalorder %s23, 1
      %p102 = por %p100, %p101
      %p104 = scmp.ne.s32.totalorder %s89, %s103
      %p105 = scmp.eq.s32.totalorder %s23, 0
      %p106 = por %p104, %p105
      %s107 = ssub.s32 %s24, %s36
      %p108 = scmp.eq.s32.totalorder %s107, 0
      %s110 = sadd.s32 %s109, 1
      %s111 = scalar_select %p108, %s109, %s110
      %p114 = pneg %p108
      %p115 = scmp.eq.s32.totalorder %s17, 1
      %p116 = por %p114, %p115
      %p117 = scmp.ne.s32.totalorder %s109, %s112
      %p118 = scmp.eq.s32.totalorder %s17, 0
      %p119 = por %p117, %p118
      %p120 = scmp.ne.s32.totalorder %s109, %s112
      %p121 = scmp.eq.s32.totalorder %s22, 1
      %p122 = por %p120, %p121
      %p123 = scmp.ne.s32.totalorder %s112, %s113
      %p124 = scmp.eq.s32.totalorder %s22, 0
      %p125 = por %p123, %p124
      %p126 = scmp.ne.s32.totalorder %s112, %s113
      %p127 = scmp.eq.s32.totalorder %s23, 1
      %p128 = por %p126, %p127
      %p130 = scmp.ne.s32.totalorder %s113, %s129
      %p131 = scmp.eq.s32.totalorder %s23, 0
      %p132 = por %p130, %p131
      %p133 = scmp.le.s32.totalorder 1, %s17
      %p134 = scmp.lt.s32.totalorder %s17, 3
      %p135 = pnand %p133, %p134
      %p136 = pneg %p135
      // Predicated region
      $region9: #{spatial_attention.1} parent=5 // pred_check
        _
      $region10: #{spatial_attention.1} parent=5 // pred_check_branch
        %138 = sbr.rel (%p135) target = $region12
      $region11: #{spatial_attention.1} parent=5 // pred_region
        %s139 = ssub.s32 %s17, 1
        // Predicated region
        $region13: #{spatial_attention.1} parent=11 // pred_check
          %p140 = pneg %p78
        $region14: #{spatial_attention.1} parent=11 // pred_check_branch
          %142 = sbr.rel (%p140) target = $region16
        $region15: #{spatial_attention.1} parent=11 // pred_region
          %s144 = ssub.s32 16, 16
          %145 = vsyncadd [#allocation8], %s144
          %s147 = sshll.u32 %s1, 4
          %s148 = int_to_ptr.vmem [resolvable:$true] %s147
          %150 = dma.vmem_to_smem %s148, 16, [#allocation9], [#allocation8]
        $region16: #{spatial_attention.1} parent=11 // pred_fallthru
          _
        // Predicated region
        $region17: #{spatial_attention.1} parent=11 // pred_check
          %p151 = pneg %p99
        $region18: #{spatial_attention.1} parent=11 // pred_check_branch
          %153 = sbr.rel (%p151) target = $region20
        $region19: #{spatial_attention.1} parent=11 // pred_region
          _
        $region20: #{spatial_attention.1} parent=11 // pred_fallthru
          _
      $region12: #{spatial_attention.1} parent=5 // pred_fallthru
        _
      %p154 = scmp.lt.s32.totalorder %s17, 2
      // Predicated region
      $region21: #{spatial_attention.1} parent=5 // pred_check
        %p155 = pneg %p154
      $region22: #{spatial_attention.1} parent=5 // pred_check_branch
        %157 = sbr.rel (%p155) target = $region24
      $region23: #{spatial_attention.1} parent=5 // pred_region
        // Predicated region
        $region25: #{spatial_attention.1} parent=23 // pred_check
          %p158 = pneg %p51
        $region26: #{spatial_attention.1} parent=23 // pred_check_branch
          %160 = sbr.rel (%p158) target = $region28
        $region27: #{spatial_attention.1} parent=23 // pred_region
          %s161 = sand.u32 %s41, 1
          %s162 = scalar_lea.sflag [#allocation6], %s161
          %s163 = sand.u32 %s41, 1
          %s164 = smul.addr %s163, 64
          %s165 = scalar_lea.vmem [#allocation5], %s164
          %s166 = smul.u32 4, %s25
          %s168 = ssub.s32 1024, 1024
          %169 = vsyncadd %s162, %s168
          %s170 = smul.addr %s166, 2
          %s171 = smul.addr %s24, 8
          %s172 = sadd.s32 %s170, %s171
          %s173 = smul.addr %s172, 128
          %s174 = scalar_lea.hbm %s0, %s173
          %s175 = sshll.u32 %s165, 4
          %s176 = int_to_ptr.vmem [resolvable:$true] %s175
          %181 = dma.hbm_to_vmem [thread:$0]  %s174, 1024, %s176, %s162, 128, 128, 8
        $region28: #{spatial_attention.1} parent=23 // pred_fallthru
          _
      $region24: #{spatial_attention.1} parent=5 // pred_fallthru
        _
      %p182 = scmp.le.s32.totalorder 1, %s17
      %p183 = scmp.lt.s32.totalorder %s17, 3
      %p184 = pnand %p182, %p183
      %p185 = pneg %p184
      // Predicated region
      $region29: #{spatial_attention.1} parent=5 // pred_check
        _
      $region30: #{spatial_attention.1} parent=5 // pred_check_branch
        %187 = sbr.rel (%p184) target = $region32
      $region31: #{spatial_attention.1} parent=5 // pred_region
        %s188 = ssub.s32 %s17, 1
        %s189 = sand.u32 %s44, 1
        %s190 = scalar_lea.sflag [#allocation6], %s189
        %s191 = sand.u32 %s44, 1
        %s192 = smul.addr %s191, 64
        %s193 = scalar_lea.vmem [#allocation5], %s192
        // Predicated region
        $region33: #{spatial_attention.1} parent=31 // pred_check
          %p194 = pneg %p57
        $region34: #{spatial_attention.1} parent=31 // pred_check_branch
          %196 = sbr.rel (%p194) target = $region36
        $region35: #{spatial_attention.1} parent=31 // pred_region
          %197 = dma.done %s190, 1024
        $region36: #{spatial_attention.1} parent=31 // pred_fallthru
          _
        // Predicated region
        $region37: #{spatial_attention.1} parent=31 // pred_check
          %p198 = pneg %p78
        $region38: #{spatial_attention.1} parent=31 // pred_check_branch
          %200 = sbr.rel (%p198) target = $region40
        $region39: #{spatial_attention.1} parent=31 // pred_region
          %201 = dma.done [#allocation8], 16
        $region40: #{spatial_attention.1} parent=31 // pred_fallthru
          _
        %202 = sfence
        %s203 = sand.u32 %s44, 1
        %s204 = scalar_lea.sflag [#allocation6], %s203
        %s205 = sand.u32 %s44, 1
        %s206 = smul.addr %s205, 64
        %s207 = scalar_lea.vmem [#allocation5], %s206
        %p208 = pneg %p57
        %p209 = pneg %p54
        %p210 = pneg %p78
        %p211 = pneg %p75
        %p212 = pneg %p99
        %p213 = pneg %p96
        %p214 = pneg %p125
        %p215 = pneg %p122
        %s216 = sand.u32 %s112, 1
        %s217 = scalar_lea.sflag [#allocation7], %s216
        %s218 = sand.u32 %s112, 1
        %s219 = smul.addr %s218, 16
        %s220 = scalar_lea.vmem [#allocation10], %s219
        %s221 = smul.u32 4, %s27
        %v222 = vld [vmem:[%s193] sm:$0xff]
        %v223 = vld [vmem:[%s193 + $0x8] sm:$0xff]
        %v224 = vld [vmem:[%s193 + $0x10] sm:$0xff]
        %v225 = vld [vmem:[%s193 + $0x18] sm:$0xff]
        %v226 = vld [vmem:[%s193 + $0x20] sm:$0xff]
        %v227 = vld [vmem:[%s193 + $0x28] sm:$0xff]
        %v228 = vld [vmem:[%s193 + $0x30] sm:$0xff]
        %v229 = vld [vmem:[%s193 + $0x38] sm:$0xff]
        %vm230 = vcmask 130048
        %v231 = vsel %vm230, %v222, 0.0
        %v232 = vsel %vm230, %v224, 0.0
        %v233 = vadd.f32 %v231, %v232
        %v234 = vsel %vm230, %v226, 0.0
        %v235 = vadd.f32 %v233, %v234
        %v236 = vsel %vm230, %v228, 0.0
        %v237 = vadd.f32 %v235, %v236
        %v238 = vsel %vm230, %v223, 0.0
        %v239 = vsel %vm230, %v225, 0.0
        %v240 = vadd.f32 %v238, %v239
        %v241 = vsel %vm230, %v227, 0.0
        %v242 = vadd.f32 %v240, %v241
        %v243 = vsel %vm230, %v229, 0.0
        %v244 = vadd.f32 %v242, %v243
        %v245 = vsel %vm230, %v222, -inf
        %v246 = vsel %vm230, %v224, -inf
        %v247 = vsel %vm230, %v226, -inf
        %v248 = vmax.f32 %v245, %v247
        %v249 = vsel %vm230, %v228, -inf
        %v250 = vmax.f32 %v246, %v249
        %v251 = vmax.f32 %v248, %v250
        %v252 = vsel %vm230, %v223, -inf
        %v253 = vsel %vm230, %v225, -inf
        %v254 = vsel %vm230, %v227, -inf
        %v255 = vmax.f32 %v252, %v254
        %v256 = vsel %vm230, %v229, -inf
        %v257 = vmax.f32 %v253, %v256
        %v258 = vmax.f32 %v255, %v257
        %p259 = scmp.eq.s32.totalorder %s27, 0
        // Predicated region
        $region41: #{spatial_attention.1} parent=31 // pred_check
          %p260 = pneg %p259
        $region42: #{spatial_attention.1} parent=31 // pred_check_branch
          %262 = sbr.rel (%p260) target = $region44
        $region43: #{spatial_attention.1} parent=31 // pred_region
          %263 = vst [vmem:[#allocation2] sm:$0xff] 0.0
          %264 = vst [vmem:[#allocation2 + $0x8] sm:$0xff] 0.0
          %265 = vst [vmem:[#allocation2 + $0x10] sm:$0xff] 0.0
          %266 = vst [vmem:[#allocation2 + $0x18] sm:$0xff] 0.0
          %267 = vst [vmem:[#allocation2 + $0x20] sm:$0xff] 0.0
          %268 = vst [vmem:[#allocation2 + $0x28] sm:$0xff] 0.0
          %269 = vst [vmem:[#allocation2 + $0x30] sm:$0xff] 0.0
          %270 = vst [vmem:[#allocation2 + $0x38] sm:$0xff] 0.0
          %271 = vst [vmem:[#allocation3] sm:$0xff] 0.0
          %272 = vst [vmem:[#allocation3 + $0x8] sm:$0xff] 0.0
          %273 = vst [vmem:[#allocation3 + $0x10] sm:$0xff] 0.0
          %274 = vst [vmem:[#allocation3 + $0x18] sm:$0xff] 0.0
          %275 = vst [vmem:[#allocation3 + $0x20] sm:$0xff] 0.0
          %276 = vst [vmem:[#allocation3 + $0x28] sm:$0xff] 0.0
          %277 = vst [vmem:[#allocation3 + $0x30] sm:$0xff] 0.0
          %278 = vst [vmem:[#allocation3 + $0x38] sm:$0xff] 0.0
          %279 = vst.msk [vmem:[#allocation2 + $0x18] sm:$0xff] %vm230, %v237
          %280 = vst.msk [vmem:[#allocation2 + $0x28] sm:$0xff] %vm230, %v244
          %281 = vst.msk [vmem:[#allocation3 + $0x18] sm:$0xff] %vm230, %v251
          %282 = vst.msk [vmem:[#allocation3 + $0x28] sm:$0xff] %vm230, %v258
        $region44: #{spatial_attention.1} parent=31 // pred_fallthru
          _
        %p283 = scmp.gt.s32.totalorder %s27, 0
        // Predicated region
        $region45: #{spatial_attention.1} parent=31 // pred_check
          %p284 = pneg %p283
        $region46: #{spatial_attention.1} parent=31 // pred_check_branch
          %286 = sbr.rel (%p284) target = $region48
        $region47: #{spatial_attention.1} parent=31 // pred_region
          %v287 = vld [vmem:[#allocation2 + $0x18] sm:$0xff]
          %v288 = vld [vmem:[#allocation2 + $0x28] sm:$0xff]
          %v289 = vadd.f32 %v287, %v237
          %v290 = vadd.f32 %v288, %v244
          %291 = vst.msk [vmem:[#allocation2 + $0x18] sm:$0xff] %vm230, %v289
          %292 = vst.msk [vmem:[#allocation2 + $0x28] sm:$0xff] %vm230, %v290
          %v293 = vld [vmem:[#allocation3 + $0x18] sm:$0xff]
          %v294 = vld [vmem:[#allocation3 + $0x28] sm:$0xff]
          %v295 = vmax.f32 %v293, %v251
          %v296 = vmax.f32 %v294, %v258
          %297 = vst.msk [vmem:[#allocation3 + $0x18] sm:$0xff] %vm230, %v295
          %298 = vst.msk [vmem:[#allocation3 + $0x28] sm:$0xff] %vm230, %v296
        $region48: #{spatial_attention.1} parent=31 // pred_fallthru
          _
        // Predicated region
        $region49: #{spatial_attention.1} parent=31 // pred_check
          %p299 = pneg %p259
        $region50: #{spatial_attention.1} parent=31 // pred_check_branch
          %301 = sbr.rel (%p299) target = $region52
        $region51: #{spatial_attention.1} parent=31 // pred_region
          %v302 = vld [vmem:[#allocation2] sm:$0xff]
          %v303 = vld [vmem:[#allocation2 + $0x8] sm:$0xff]
          %v304 = vld [vmem:[#allocation2 + $0x10] sm:$0xff]
          %v305 = vld [vmem:[#allocation2 + $0x18] sm:$0xff]
          %v306 = vld [vmem:[#allocation2 + $0x20] sm:$0xff]
          %v307 = vld [vmem:[#allocation2 + $0x28] sm:$0xff]
          %v308 = vld [vmem:[#allocation2 + $0x30] sm:$0xff]
          %v309 = vld [vmem:[#allocation2 + $0x38] sm:$0xff]
          %v310 = vmul.f32 %v302, 0.25
          %v311 = vmul.f32 %v303, 0.25
          %v312 = vmul.f32 %v304, 0.25
          %v313 = vmul.f32 %v305, 0.25
          %v314 = vmul.f32 %v306, 0.25
          %v315 = vmul.f32 %v307, 0.25
          %v316 = vmul.f32 %v308, 0.25
          %v317 = vmul.f32 %v309, 0.25
          %v318 = vld [vmem:[#allocation3] sm:$0xff]
          %v319 = vld [vmem:[#allocation3 + $0x8] sm:$0xff]
          %v320 = vld [vmem:[#allocation3 + $0x10] sm:$0xff]
          %v321 = vld [vmem:[#allocation3 + $0x18] sm:$0xff]
          %v322 = vld [vmem:[#allocation3 + $0x20] sm:$0xff]
          %v323 = vld [vmem:[#allocation3 + $0x28] sm:$0xff]
          %v324 = vld [vmem:[#allocation3 + $0x30] sm:$0xff]
          %v325 = vld [vmem:[#allocation3 + $0x38] sm:$0xff]
          %s326 = sld [smem:[#allocation9]]
          %s327 = sld [smem:[#allocation9 + $0x31]]
          %v328 = vstv %s326
          %v329 = vmul.f32 %v328, %v310
          %v330 = vmul.f32 %v328, %v311
          %v331 = vmul.f32 %v328, %v312
          %v332 = vmul.f32 %v328, %v313
          %v333 = vmul.f32 %v328, %v314
          %v334 = vmul.f32 %v328, %v315
          %v335 = vadd.f32 %v329, 0.0
          %v336 = vadd.f32 %v330, 0.0
          %v337 = vadd.f32 %v331, 0.0
          %v338 = vadd.f32 %v332, 0.0
          %v339 = vadd.f32 %v333, 0.0
          %v340 = vadd.f32 %v334, 0.0
          %v341 = vstv %s327
          %v342 = vmul.f32 %v341, %v318
          %v343 = vmul.f32 %v341, %v319
          %v344 = vmul.f32 %v341, %v320
          %v345 = vmul.f32 %v341, %v321
          %v346 = vmul.f32 %v341, %v322
          %v347 = vmul.f32 %v341, %v323
          %v348 = vadd.f32 %v342, 0.0
          %v349 = vadd.f32 %v343, 0.0
          %v350 = vadd.f32 %v344, 0.0
          %v351 = vadd.f32 %v345, 0.0
          %v352 = vadd.f32 %v346, 0.0
          %v353 = vadd.f32 %v347, 0.0
          %s354 = sld [smem:[#allocation9 + $0x7]]
          %s355 = sld [smem:[#allocation9 + $0x38]]
          %v356 = vstv %s354
          %v357 = vmul.f32 %v356, %v310
          %v358 = vmul.f32 %v356, %v311
          %v359 = vmul.f32 %v356, %v312
          %v360 = vmul.f32 %v356, %v313
          %v361 = vmul.f32 %v356, %v314
          %v362 = vmul.f32 %v356, %v315
          %v363 = vadd.f32 %v357, 0.0
          %v364 = vadd.f32 %v358, 0.0
          %v365 = vadd.f32 %v359, 0.0
          %v366 = vadd.f32 %v360, 0.0
          %v367 = vadd.f32 %v361, 0.0
          %v368 = vadd.f32 %v362, 0.0
          %v369 = vstv %s355
          %v370 = vmul.f32 %v369, %v318
          %v371 = vmul.f32 %v369, %v319
          %v372 = vmul.f32 %v369, %v320
          %v373 = vmul.f32 %v369, %v321
          %v374 = vmul.f32 %v369, %v322
          %v375 = vmul.f32 %v369, %v323
          %v376 = vadd.f32 %v370, 0.0
          %v377 = vadd.f32 %v371, 0.0
          %v378 = vadd.f32 %v372, 0.0
          %v379 = vadd.f32 %v373, 0.0
          %v380 = vadd.f32 %v374, 0.0
          %v381 = vadd.f32 %v375, 0.0
          %s382 = sld [smem:[#allocation9 + $0xe]]
          %s383 = sld [smem:[#allocation9 + $0x3f]]
          %v384 = vstv %s382
          %v385 = vmul.f32 %v384, %v310
          %v386 = vmul.f32 %v384, %v311
          %v387 = vmul.f32 %v384, %v312
          %v388 = vmul.f32 %v384, %v313
          %v389 = vmul.f32 %v384, %v314
          %v390 = vmul.f32 %v384, %v315
          %vm397 = vcmask 1045504
          %v398 = vrot.slane %v385, 2
          %v399 = vrot.slane %v387, 2
          %v400 = vsel %vm397, %v398, %v399
          %v401 = vrot.slane %v386, 2
          %v402 = vrot.slane %v388, 2
          %v403 = vsel %vm397, %v401, %v402
          %v404 = vrot.slane %v389, 2
          %v405 = vsel %vm397, %v399, %v404
          %v406 = vrot.slane %v390, 2
          %v407 = vsel %vm397, %v402, %v406
          %v414 = vadd.f32 %v335, %v400
          %v415 = vadd.f32 %v336, %v403
          %v416 = vadd.f32 %v337, %v405
          %v417 = vadd.f32 %v338, %v407
          %v418 = vadd.f32 %v339, %v404
          %v419 = vadd.f32 %v340, %v406
          %v420 = vstv %s383
          %v421 = vmul.f32 %v420, %v318
          %v422 = vmul.f32 %v420, %v319
          %v423 = vmul.f32 %v420, %v320
          %v424 = vmul.f32 %v420, %v321
          %v425 = vmul.f32 %v420, %v322
          %v426 = vmul.f32 %v420, %v323
          %v433 = vrot.slane %v421, 2
          %v434 = vrot.slane %v423, 2
          %v435 = vsel %vm397, %v433, %v434
          %v436 = vrot.slane %v422, 2
          %v437 = vrot.slane %v424, 2
          %v438 = vsel %vm397, %v436, %v437
          %v439 = vrot.slane %v425, 2
          %v440 = vsel %vm397, %v434, %v439
          %v441 = vrot.slane %v426, 2
          %v442 = vsel %vm397, %v437, %v441
          %v449 = vadd.f32 %v348, %v435
          %v450 = vadd.f32 %v349, %v438
          %v451 = vadd.f32 %v350, %v440
          %v452 = vadd.f32 %v351, %v442
          %v453 = vadd.f32 %v352, %v439
          %v454 = vadd.f32 %v353, %v441
          %s455 = sld [smem:[#allocation9 + $0x15]]
          %s456 = sld [smem:[#allocation9 + $0x46]]
          %v457 = vstv %s455
          %v458 = vmul.f32 %v457, %v312
          %v459 = vmul.f32 %v457, %v313
          %v460 = vmul.f32 %v457, %v314
          %v461 = vmul.f32 %v457, %v315
          %v466 = vrot.slane %v458, 2
          %v467 = vrot.slane %v459, 2
          %v468 = vrot.slane %v460, 2
          %v469 = vsel %vm397, %v466, %v468
          %v470 = vrot.slane %v461, 2
          %v471 = vsel %vm397, %v467, %v470
          %v478 = vadd.f32 %v363, %v466
          %v479 = vadd.f32 %v364, %v467
          %v480 = vadd.f32 %v365, %v469
          %v481 = vadd.f32 %v366, %v471
          %v482 = vadd.f32 %v367, %v468
          %v483 = vadd.f32 %v368, %v470
          %v484 = vstv %s456
          %v485 = vmul.f32 %v484, %v320
          %v486 = vmul.f32 %v484, %v321
          %v487 = vmul.f32 %v484, %v322
          %v488 = vmul.f32 %v484, %v323
          %v493 = vrot.slane %v485, 2
          %v494 = vrot.slane %v486, 2
          %v495 = vrot.slane %v487, 2
          %v496 = vsel %vm397, %v493, %v495
          %v497 = vrot.slane %v488, 2
          %v498 = vsel %vm397, %v494, %v497
          %v505 = vadd.f32 %v376, %v493
          %v506 = vadd.f32 %v377, %v494
          %v507 = vadd.f32 %v378, %v496
          %v508 = vadd.f32 %v379, %v498
          %v509 = vadd.f32 %v380, %v495
          %v510 = vadd.f32 %v381, %v497
          %s511 = sld [smem:[#allocation9 + $0x1c]]
          %s512 = sld [smem:[#allocation9 + $0x4d]]
          %v513 = vstv %s511
          %v514 = vmul.f32 %v513, %v312
          %v515 = vmul.f32 %v513, %v313
          %v516 = vmul.f32 %v513, %v314
          %v517 = vmul.f32 %v513, %v315
          %v518 = vmul.f32 %v513, %v316
          %v519 = vmul.f32 %v513, %v317
          %vm526 = vcmask 1043456
          %v527 = vrot.slane %v514, 4
          %v528 = vrot.slane %v515, 4
          %v529 = vrot.slane %v516, 4
          %v530 = vsel %vm526, %v527, %v529
          %v531 = vrot.slane %v517, 4
          %v532 = vsel %vm526, %v528, %v531
          %v533 = vrot.slane %v518, 4
          %v534 = vsel %vm526, %v529, %v533
          %v535 = vrot.slane %v519, 4
          %v536 = vsel %vm526, %v531, %v535
          %v543 = vadd.f32 %v414, %v527
          %v544 = vadd.f32 %v415, %v528
          %v545 = vadd.f32 %v416, %v530
          %v546 = vadd.f32 %v417, %v532
          %v547 = vadd.f32 %v418, %v534
          %v548 = vadd.f32 %v419, %v536
          %v549 = vstv %s512
          %v550 = vmul.f32 %v549, %v320
          %v551 = vmul.f32 %v549, %v321
          %v552 = vmul.f32 %v549, %v322
          %v553 = vmul.f32 %v549, %v323
          %v554 = vmul.f32 %v549, %v324
          %v555 = vmul.f32 %v549, %v325
          %v562 = vrot.slane %v550, 4
          %v563 = vrot.slane %v551, 4
          %v564 = vrot.slane %v552, 4
          %v565 = vsel %vm526, %v562, %v564
          %v566 = vrot.slane %v553, 4
          %v567 = vsel %vm526, %v563, %v566
          %v568 = vrot.slane %v554, 4
          %v569 = vsel %vm526, %v564, %v568
          %v570 = vrot.slane %v555, 4
          %v571 = vsel %vm526, %v566, %v570
          %v578 = vadd.f32 %v449, %v562
          %v579 = vadd.f32 %v450, %v563
          %v580 = vadd.f32 %v451, %v565
          %v581 = vadd.f32 %v452, %v567
          %v582 = vadd.f32 %v453, %v569
          %v583 = vadd.f32 %v454, %v571
          %s584 = sld [smem:[#allocation9 + $0x23]]
          %s585 = sld [smem:[#allocation9 + $0x54]]
          %v586 = vstv %s584
          %v587 = vmul.f32 %v586, %v312
          %v588 = vmul.f32 %v586, %v313
          %v589 = vmul.f32 %v586, %v314
          %v590 = vmul.f32 %v586, %v315
          %v591 = vmul.f32 %v586, %v316
          %v592 = vmul.f32 %v586, %v317
          %v599 = vrot.slane %v587, 4
          %v600 = vrot.slane %v588, 4
          %v601 = vrot.slane %v589, 4
          %v602 = vsel %vm526, %v599, %v601
          %v603 = vrot.slane %v590, 4
          %v604 = vsel %vm526, %v600, %v603
          %v605 = vrot.slane %v591, 4
          %v606 = vsel %vm526, %v601, %v605
          %v607 = vrot.slane %v592, 4
          %v608 = vsel %vm526, %v603, %v607
          %v615 = vadd.f32 %v478, %v599
          %v616 = vadd.f32 %v479, %v600
          %v617 = vadd.f32 %v480, %v602
          %v618 = vadd.f32 %v481, %v604
          %v619 = vadd.f32 %v482, %v606
          %v620 = vadd.f32 %v483, %v608
          %v621 = vstv %s585
          %v622 = vmul.f32 %v621, %v320
          %v623 = vmul.f32 %v621, %v321
          %v624 = vmul.f32 %v621, %v322
          %v625 = vmul.f32 %v621, %v323
          %v626 = vmul.f32 %v621, %v324
          %v627 = vmul.f32 %v621, %v325
          %v634 = vrot.slane %v622, 4
          %v635 = vrot.slane %v623, 4
          %v636 = vrot.slane %v624, 4
          %v637 = vsel %vm526, %v634, %v636
          %v638 = vrot.slane %v625, 4
          %v639 = vsel %vm526, %v635, %v638
          %v640 = vrot.slane %v626, 4
          %v641 = vsel %vm526, %v636, %v640
          %v642 = vrot.slane %v627, 4
          %v643 = vsel %vm526, %v638, %v642
          %v650 = vadd.f32 %v505, %v634
          %v651 = vadd.f32 %v506, %v635
          %v652 = vadd.f32 %v507, %v637
          %v653 = vadd.f32 %v508, %v639
          %v654 = vadd.f32 %v509, %v641
          %v655 = vadd.f32 %v510, %v643
          %s656 = sld [smem:[#allocation9 + $0x2a]]
          %s657 = sld [smem:[#allocation9 + $0x5b]]
          %v658 = vstv %s656
          %v659 = vmul.f32 %v658, %v312
          %v660 = vmul.f32 %v658, %v313
          %v661 = vmul.f32 %v658, %v314
          %v662 = vmul.f32 %v658, %v315
          %v663 = vmul.f32 %v658, %v316
          %v664 = vmul.f32 %v658, %v317
          %vm671 = vcmask 1041408
          %v672 = vrot.slane %v659, 6
          %v673 = vrot.slane %v660, 6
          %v674 = vrot.slane %v661, 6
          %v675 = vsel %vm671, %v672, %v674
          %v676 = vrot.slane %v662, 6
          %v677 = vsel %vm671, %v673, %v676
          %v678 = vrot.slane %v663, 6
          %v679 = vsel %vm671, %v674, %v678
          %v680 = vrot.slane %v664, 6
          %v681 = vsel %vm671, %v676, %v680
          %v688 = vadd.f32 %v543, %v672
          %v689 = vadd.f32 %v544, %v673
          %v690 = vadd.f32 %v545, %v675
          %v691 = vadd.f32 %v546, %v677
          %v692 = vadd.f32 %v547, %v679
          %v693 = vadd.f32 %v548, %v681
          %v694 = vstv %s657
          %v695 = vmul.f32 %v694, %v320
          %v696 = vmul.f32 %v694, %v321
          %v697 = vmul.f32 %v694, %v322
          %v698 = vmul.f32 %v694, %v323
          %v699 = vmul.f32 %v694, %v324
          %v700 = vmul.f32 %v694, %v325
          %v707 = vrot.slane %v695, 6
          %v708 = vrot.slane %v696, 6
          %v709 = vrot.slane %v697, 6
          %v710 = vsel %vm671, %v707, %v709
          %v711 = vrot.slane %v698, 6
          %v712 = vsel %vm671, %v708, %v711
          %v713 = vrot.slane %v699, 6
          %v714 = vsel %vm671, %v709, %v713
          %v715 = vrot.slane %v700, 6
          %v716 = vsel %vm671, %v711, %v715
          %v723 = vadd.f32 %v578, %v707
          %v724 = vadd.f32 %v579, %v708
          %v725 = vadd.f32 %v580, %v710
          %v726 = vadd.f32 %v581, %v712
          %v727 = vadd.f32 %v582, %v714
          %v728 = vadd.f32 %v583, %v716
          %s729 = sld [smem:[#allocation9 + $0x1]]
          %s730 = sld [smem:[#allocation9 + $0x32]]
          %v731 = vstv %s729
          %v732 = vmul.f32 %v731, %v310
          %v733 = vmul.f32 %v731, %v311
          %v734 = vmul.f32 %v731, %v312
          %v735 = vmul.f32 %v731, %v313
          %v736 = vmul.f32 %v731, %v314
          %v737 = vmul.f32 %v731, %v315
          %744 = vrot.lane.b32.xlu0 %v732, 127
          %v745 = vpop.permute.xlu0 %744
          %746 = vrot.lane.b32.xlu0 %v733, 127
          %v747 = vpop.permute.xlu0 %746
          %748 = vrot.lane.b32.xlu0 %v734, 127
          %v749 = vpop.permute.xlu0 %748
          %750 = vrot.lane.b32.xlu0 %v735, 127
          %v751 = vpop.permute.xlu0 %750
          %752 = vrot.lane.b32.xlu0 %v736, 127
          %v753 = vpop.permute.xlu0 %752
          %754 = vrot.lane.b32.xlu0 %v737, 127
          %v755 = vpop.permute.xlu0 %754
          %vm756 = vcmask 1039360
          %v757 = vsel %vm756, %v745, %v747
          %v758 = vsel %vm756, %v749, %v751
          %v759 = vsel %vm756, %v753, %v755
          %v766 = vadd.f32 %v688, %v757
          %v767 = vadd.f32 %v689, %v747
          %v768 = vadd.f32 %v690, %v758
          %v769 = vadd.f32 %v691, %v751
          %v770 = vadd.f32 %v692, %v759
          %v771 = vadd.f32 %v693, %v755
          %v772 = vstv %s730
          %v773 = vmul.f32 %v772, %v318
          %v774 = vmul.f32 %v772, %v319
          %v775 = vmul.f32 %v772, %v320
          %v776 = vmul.f32 %v772, %v321
          %v777 = vmul.f32 %v772, %v322
          %v778 = vmul.f32 %v772, %v323
          %785 = vrot.lane.b32.xlu0 %v773, 127
          %v786 = vpop.permute.xlu0 %785
          %787 = vrot.lane.b32.xlu0 %v774, 127
          %v788 = vpop.permute.xlu0 %787
          %789 = vrot.lane.b32.xlu0 %v775, 127
          %v790 = vpop.permute.xlu0 %789
          %791 = vrot.lane.b32.xlu0 %v776, 127
          %v792 = vpop.permute.xlu0 %791
          %793 = vrot.lane.b32.xlu0 %v777, 127
          %v794 = vpop.permute.xlu0 %793
          %795 = vrot.lane.b32.xlu0 %v778, 127
          %v796 = vpop.permute.xlu0 %795
          %v797 = vsel %vm756, %v786, %v788
          %v798 = vsel %vm756, %v790, %v792
          %v799 = vsel %vm756, %v794, %v796
          %v806 = vadd.f32 %v723, %v797
          %v807 = vadd.f32 %v724, %v788
          %v808 = vadd.f32 %v725, %v798
          %v809 = vadd.f32 %v726, %v792
          %v810 = vadd.f32 %v727, %v799
          %v811 = vadd.f32 %v728, %v796
          %s812 = sld [smem:[#allocation9 + $0x8]]
          %s813 = sld [smem:[#allocation9 + $0x39]]
          %v814 = vstv %s812
          %v815 = vmul.f32 %v814, %v310
          %v816 = vmul.f32 %v814, %v311
          %v817 = vmul.f32 %v814, %v312
          %v818 = vmul.f32 %v814, %v313
          %v819 = vmul.f32 %v814, %v314
          %v820 = vmul.f32 %v814, %v315
          %827 = vrot.lane.b32.xlu0 %v815, 127
          %v828 = vpop.permute.xlu0 %827
          %829 = vrot.lane.b32.xlu0 %v816, 127
          %v830 = vpop.permute.xlu0 %829
          %831 = vrot.lane.b32.xlu0 %v817, 127
          %v832 = vpop.permute.xlu0 %831
          %833 = vrot.lane.b32.xlu0 %v818, 127
          %v834 = vpop.permute.xlu0 %833
          %835 = vrot.lane.b32.xlu0 %v819, 127
          %v836 = vpop.permute.xlu0 %835
          %837 = vrot.lane.b32.xlu0 %v820, 127
          %v838 = vpop.permute.xlu0 %837
          %v839 = vsel %vm756, %v828, %v830
          %v840 = vsel %vm756, %v832, %v834
          %v841 = vsel %vm756, %v836, %v838
          %v848 = vadd.f32 %v615, %v839
          %v849 = vadd.f32 %v616, %v830
          %v850 = vadd.f32 %v617, %v840
          %v851 = vadd.f32 %v618, %v834
          %v852 = vadd.f32 %v619, %v841
          %v853 = vadd.f32 %v620, %v838
          %v854 = vstv %s813
          %v855 = vmul.f32 %v854, %v318
          %v856 = vmul.f32 %v854, %v319
          %v857 = vmul.f32 %v854, %v320
          %v858 = vmul.f32 %v854, %v321
          %v859 = vmul.f32 %v854, %v322
          %v860 = vmul.f32 %v854, %v323
          %867 = vrot.lane.b32.xlu0 %v855, 127
          %v868 = vpop.permute.xlu0 %867
          %869 = vrot.lane.b32.xlu0 %v856, 127
          %v870 = vpop.permute.xlu0 %869
          %871 = vrot.lane.b32.xlu0 %v857, 127
          %v872 = vpop.permute.xlu0 %871
          %873 = vrot.lane.b32.xlu0 %v858, 127
          %v874 = vpop.permute.xlu0 %873
          %875 = vrot.lane.b32.xlu0 %v859, 127
          %v876 = vpop.permute.xlu0 %875
          %877 = vrot.lane.b32.xlu0 %v860, 127
          %v878 = vpop.permute.xlu0 %877
          %v879 = vsel %vm756, %v868, %v870
          %v880 = vsel %vm756, %v872, %v874
          %v881 = vsel %vm756, %v876, %v878
          %v888 = vadd.f32 %v650, %v879
          %v889 = vadd.f32 %v651, %v870
          %v890 = vadd.f32 %v652, %v880
          %v891 = vadd.f32 %v653, %v874
          %v892 = vadd.f32 %v654, %v881
          %v893 = vadd.f32 %v655, %v878
          %s894 = sld [smem:[#allocation9 + $0xf]]
          %s895 = sld [smem:[#allocation9 + $0x40]]
          %v896 = vstv %s894
          %v897 = vmul.f32 %v896, %v310
          %v898 = vmul.f32 %v896, %v311
          %v899 = vmul.f32 %v896, %v312
          %v900 = vmul.f32 %v896, %v313
          %v901 = vmul.f32 %v896, %v314
          %v902 = vmul.f32 %v896, %v315
          %v909 = vrot.slane %v897, 2
          %v910 = vrot.slane %v899, 2
          %v911 = vsel %vm397, %v909, %v910
          %v912 = vrot.slane %v898, 2
          %v913 = vrot.slane %v900, 2
          %v914 = vsel %vm397, %v912, %v913
          %v915 = vrot.slane %v901, 2
          %v916 = vsel %vm397, %v910, %v915
          %v917 = vrot.slane %v902, 2
          %v918 = vsel %vm397, %v913, %v917
          %919 = vrot.lane.b32.xlu0 %v911, 127
          %v920 = vpop.permute.xlu0 %919
          %921 = vrot.lane.b32.xlu0 %v914, 127
          %v922 = vpop.permute.xlu0 %921
          %923 = vrot.lane.b32.xlu0 %v916, 127
          %v924 = vpop.permute.xlu0 %923
          %925 = vrot.lane.b32.xlu0 %v918, 127
          %v926 = vpop.permute.xlu0 %925
          %927 = vrot.lane.b32.xlu0 %v915, 127
          %v928 = vpop.permute.xlu0 %927
          %929 = vrot.lane.b32.xlu0 %v917, 127
          %v930 = vpop.permute.xlu0 %929
          %v931 = vsel %vm756, %v920, %v922
          %v932 = vsel %vm756, %v924, %v926
          %v933 = vsel %vm756, %v928, %v930
          %v940 = vadd.f32 %v766, %v931
          %v941 = vadd.f32 %v767, %v922
          %v942 = vadd.f32 %v768, %v932
          %v943 = vadd.f32 %v769, %v926
          %v944 = vadd.f32 %v770, %v933
          %v945 = vadd.f32 %v771, %v930
          %v946 = vstv %s895
          %v947 = vmul.f32 %v946, %v318
          %v948 = vmul.f32 %v946, %v319
          %v949 = vmul.f32 %v946, %v320
          %v950 = vmul.f32 %v946, %v321
          %v951 = vmul.f32 %v946, %v322
          %v952 = vmul.f32 %v946, %v323
          %v959 = vrot.slane %v947, 2
          %v960 = vrot.slane %v949, 2
          %v961 = vsel %vm397, %v959, %v960
          %v962 = vrot.slane %v948, 2
          %v963 = vrot.slane %v950, 2
          %v964 = vsel %vm397, %v962, %v963
          %v965 = vrot.slane %v951, 2
          %v966 = vsel %vm397, %v960, %v965
          %v967 = vrot.slane %v952, 2
          %v968 = vsel %vm397, %v963, %v967
          %969 = vrot.lane.b32.xlu0 %v961, 127
          %v970 = vpop.permute.xlu0 %969
          %971 = vrot.lane.b32.xlu0 %v964, 127
          %v972 = vpop.permute.xlu0 %971
          %973 = vrot.lane.b32.xlu0 %v966, 127
          %v974 = vpop.permute.xlu0 %973
          %975 = vrot.lane.b32.xlu0 %v968, 127
          %v976 = vpop.permute.xlu0 %975
          %977 = vrot.lane.b32.xlu0 %v965, 127
          %v978 = vpop.permute.xlu0 %977
          %979 = vrot.lane.b32.xlu0 %v967, 127
          %v980 = vpop.permute.xlu0 %979
          %v981 = vsel %vm756, %v970, %v972
          %v982 = vsel %vm756, %v974, %v976
          %v983 = vsel %vm756, %v978, %v980
          %v990 = vadd.f32 %v806, %v981
          %v991 = vadd.f32 %v807, %v972
          %v992 = vadd.f32 %v808, %v982
          %v993 = vadd.f32 %v809, %v976
          %v994 = vadd.f32 %v810, %v983
          %v995 = vadd.f32 %v811, %v980
          %s996 = sld [smem:[#allocation9 + $0x16]]
          %s997 = sld [smem:[#allocation9 + $0x47]]
          %v998 = vstv %s996
          %v999 = vmul.f32 %v998, %v312
          %v1000 = vmul.f32 %v998, %v313
          %v1001 = vmul.f32 %v998, %v314
          %v1002 = vmul.f32 %v998, %v315
          %v1007 = vrot.slane %v999, 2
          %v1008 = vrot.slane %v1000, 2
          %v1009 = vrot.slane %v1001, 2
          %v1010 = vsel %vm397, %v1007, %v1009
          %v1011 = vrot.slane %v1002, 2
          %v1012 = vsel %vm397, %v1008, %v1011
          %1013 = vrot.lane.b32.xlu0 %v1007, 127
          %v1014 = vpop.permute.xlu0 %1013
          %1015 = vrot.lane.b32.xlu0 %v1008, 127
          %v1016 = vpop.permute.xlu0 %1015
          %1017 = vrot.lane.b32.xlu0 %v1010, 127
          %v1018 = vpop.permute.xlu0 %1017
          %1019 = vrot.lane.b32.xlu0 %v1012, 127
          %v1020 = vpop.permute.xlu0 %1019
          %1021 = vrot.lane.b32.xlu0 %v1009, 127
          %v1022 = vpop.permute.xlu0 %1021
          %1023 = vrot.lane.b32.xlu0 %v1011, 127
          %v1024 = vpop.permute.xlu0 %1023
          %v1025 = vsel %vm756, %v1014, %v1016
          %v1026 = vsel %vm756, %v1018, %v1020
          %v1027 = vsel %vm756, %v1022, %v1024
          %v1034 = vadd.f32 %v848, %v1025
          %v1035 = vadd.f32 %v849, %v1016
          %v1036 = vadd.f32 %v850, %v1026
          %v1037 = vadd.f32 %v851, %v1020
          %v1038 = vadd.f32 %v852, %v1027
          %v1039 = vadd.f32 %v853, %v1024
          %v1040 = vstv %s997
          %v1041 = vmul.f32 %v1040, %v320
          %v1042 = vmul.f32 %v1040, %v321
          %v1043 = vmul.f32 %v1040, %v322
          %v1044 = vmul.f32 %v1040, %v323
          %v1049 = vrot.slane %v1041, 2
          %v1050 = vrot.slane %v1042, 2
          %v1051 = vrot.slane %v1043, 2
          %v1052 = vsel %vm397, %v1049, %v1051
          %v1053 = vrot.slane %v1044, 2
          %v1054 = vsel %vm397, %v1050, %v1053
          %1055 = vrot.lane.b32.xlu0 %v1049, 127
          %v1056 = vpop.permute.xlu0 %1055
          %1057 = vrot.lane.b32.xlu0 %v1050, 127
          %v1058 = vpop.permute.xlu0 %1057
          %1059 = vrot.lane.b32.xlu0 %v1052, 127
          %v1060 = vpop.permute.xlu0 %1059
          %1061 = vrot.lane.b32.xlu0 %v1054, 127
          %v1062 = vpop.permute.xlu0 %1061
          %1063 = vrot.lane.b32.xlu0 %v1051, 127
          %v1064 = vpop.permute.xlu0 %1063
          %1065 = vrot.lane.b32.xlu0 %v1053, 127
          %v1066 = vpop.permute.xlu0 %1065
          %v1067 = vsel %vm756, %v1056, %v1058
          %v1068 = vsel %vm756, %v1060, %v1062
          %v1069 = vsel %vm756, %v1064, %v1066
          %v1076 = vadd.f32 %v888, %v1067
          %v1077 = vadd.f32 %v889, %v1058
          %v1078 = vadd.f32 %v890, %v1068
          %v1079 = vadd.f32 %v891, %v1062
          %v1080 = vadd.f32 %v892, %v1069
          %v1081 = vadd.f32 %v893, %v1066
          %s1082 = sld [smem:[#allocation9 + $0x1d]]
          %s1083 = sld [smem:[#allocation9 + $0x4e]]
          %v1084 = vstv %s1082
          %v1085 = vmul.f32 %v1084, %v312
          %v1086 = vmul.f32 %v1084, %v313
          %v1087 = vmul.f32 %v1084, %v314
          %v1088 = vmul.f32 %v1084, %v315
          %v1089 = vmul.f32 %v1084, %v316
          %v1090 = vmul.f32 %v1084, %v317
          %v1097 = vrot.slane %v1085, 4
          %v1098 = vrot.slane %v1086, 4
          %v1099 = vrot.slane %v1087, 4
          %v1100 = vsel %vm526, %v1097, %v1099
          %v1101 = vrot.slane %v1088, 4
          %v1102 = vsel %vm526, %v1098, %v1101
          %v1103 = vrot.slane %v1089, 4
          %v1104 = vsel %vm526, %v1099, %v1103
          %v1105 = vrot.slane %v1090, 4
          %v1106 = vsel %vm526, %v1101, %v1105
          %1107 = vrot.lane.b32.xlu0 %v1097, 127
          %v1108 = vpop.permute.xlu0 %1107
          %1109 = vrot.lane.b32.xlu0 %v1098, 127
          %v1110 = vpop.permute.xlu0 %1109
          %1111 = vrot.lane.b32.xlu0 %v1100, 127
          %v1112 = vpop.permute.xlu0 %1111
          %1113 = vrot.lane.b32.xlu0 %v1102, 127
          %v1114 = vpop.permute.xlu0 %1113
          %1115 = vrot.lane.b32.xlu0 %v1104, 127
          %v1116 = vpop.permute.xlu0 %1115
          %1117 = vrot.lane.b32.xlu0 %v1106, 127
          %v1118 = vpop.permute.xlu0 %1117
          %v1119 = vsel %vm756, %v1108, %v1110
          %v1120 = vsel %vm756, %v1112, %v1114
          %v1121 = vsel %vm756, %v1116, %v1118
          %v1128 = vadd.f32 %v940, %v1119
          %v1129 = vadd.f32 %v941, %v1110
          %v1130 = vadd.f32 %v942, %v1120
          %v1131 = vadd.f32 %v943, %v1114
          %v1132 = vadd.f32 %v944, %v1121
          %v1133 = vadd.f32 %v945, %v1118
          %v1134 = vstv %s1083
          %v1135 = vmul.f32 %v1134, %v320
          %v1136 = vmul.f32 %v1134, %v321
          %v1137 = vmul.f32 %v1134, %v322
          %v1138 = vmul.f32 %v1134, %v323
          %v1139 = vmul.f32 %v1134, %v324
          %v1140 = vmul.f32 %v1134, %v325
          %v1147 = vrot.slane %v1135, 4
          %v1148 = vrot.slane %v1136, 4
          %v1149 = vrot.slane %v1137, 4
          %v1150 = vsel %vm526, %v1147, %v1149
          %v1151 = vrot.slane %v1138, 4
          %v1152 = vsel %vm526, %v1148, %v1151
          %v1153 = vrot.slane %v1139, 4
          %v1154 = vsel %vm526, %v1149, %v1153
          %v1155 = vrot.slane %v1140, 4
          %v1156 = vsel %vm526, %v1151, %v1155
          %1157 = vrot.lane.b32.xlu0 %v1147, 127
          %v1158 = vpop.permute.xlu0 %1157
          %1159 = vrot.lane.b32.xlu0 %v1148, 127
          %v1160 = vpop.permute.xlu0 %1159
          %1161 = vrot.lane.b32.xlu0 %v1150, 127
          %v1162 = vpop.permute.xlu0 %1161
          %1163 = vrot.lane.b32.xlu0 %v1152, 127
          %v1164 = vpop.permute.xlu0 %1163
          %1165 = vrot.lane.b32.xlu0 %v1154, 127
          %v1166 = vpop.permute.xlu0 %1165
          %1167 = vrot.lane.b32.xlu0 %v1156, 127
          %v1168 = vpop.permute.xlu0 %1167
          %v1169 = vsel %vm756, %v1158, %v1160
          %v1170 = vsel %vm756, %v1162, %v1164
          %v1171 = vsel %vm756, %v1166, %v1168
          %v1178 = vadd.f32 %v990, %v1169
          %v1179 = vadd.f32 %v991, %v1160
          %v1180 = vadd.f32 %v992, %v1170
          %v1181 = vadd.f32 %v993, %v1164
          %v1182 = vadd.f32 %v994, %v1171
          %v1183 = vadd.f32 %v995, %v1168
          %s1184 = sld [smem:[#allocation9 + $0x24]]
          %s1185 = sld [smem:[#allocation9 + $0x55]]
          %v1186 = vstv %s1184
          %v1187 = vmul.f32 %v1186, %v312
          %v1188 = vmul.f32 %v1186, %v313
          %v1189 = vmul.f32 %v1186, %v314
          %v1190 = vmul.f32 %v1186, %v315
          %v1191 = vmul.f32 %v1186, %v316
          %v1192 = vmul.f32 %v1186, %v317
          %v1199 = vrot.slane %v1187, 4
          %v1200 = vrot.slane %v1188, 4
          %v1201 = vrot.slane %v1189, 4
          %v1202 = vsel %vm526, %v1199, %v1201
          %v1203 = vrot.slane %v1190, 4
          %v1204 = vsel %vm526, %v1200, %v1203
          %v1205 = vrot.slane %v1191, 4
          %v1206 = vsel %vm526, %v1201, %v1205
          %v1207 = vrot.slane %v1192, 4
          %v1208 = vsel %vm526, %v1203, %v1207
          %1209 = vrot.lane.b32.xlu0 %v1199, 127
          %v1210 = vpop.permute.xlu0 %1209
          %1211 = vrot.lane.b32.xlu0 %v1200, 127
          %v1212 = vpop.permute.xlu0 %1211
          %1213 = vrot.lane.b32.xlu0 %v1202, 127
          %v1214 = vpop.permute.xlu0 %1213
          %1215 = vrot.lane.b32.xlu0 %v1204, 127
          %v1216 = vpop.permute.xlu0 %1215
          %1217 = vrot.lane.b32.xlu0 %v1206, 127
          %v1218 = vpop.permute.xlu0 %1217
          %1219 = vrot.lane.b32.xlu0 %v1208, 127
          %v1220 = vpop.permute.xlu0 %1219
          %v1221 = vsel %vm756, %v1210, %v1212
          %v1222 = vsel %vm756, %v1214, %v1216
          %v1223 = vsel %vm756, %v1218, %v1220
          %v1230 = vadd.f32 %v1034, %v1221
          %v1231 = vadd.f32 %v1035, %v1212
          %v1232 = vadd.f32 %v1036, %v1222
          %v1233 = vadd.f32 %v1037, %v1216
          %v1234 = vadd.f32 %v1038, %v1223
          %v1235 = vadd.f32 %v1039, %v1220
          %v1236 = vstv %s1185
          %v1237 = vmul.f32 %v1236, %v320
          %v1238 = vmul.f32 %v1236, %v321
          %v1239 = vmul.f32 %v1236, %v322
          %v1240 = vmul.f32 %v1236, %v323
          %v1241 = vmul.f32 %v1236, %v324
          %v1242 = vmul.f32 %v1236, %v325
          %v1249 = vrot.slane %v1237, 4
          %v1250 = vrot.slane %v1238, 4
          %v1251 = vrot.slane %v1239, 4
          %v1252 = vsel %vm526, %v1249, %v1251
          %v1253 = vrot.slane %v1240, 4
          %v1254 = vsel %vm526, %v1250, %v1253
          %v1255 = vrot.slane %v1241, 4
          %v1256 = vsel %vm526, %v1251, %v1255
          %v1257 = vrot.slane %v1242, 4
          %v1258 = vsel %vm526, %v1253, %v1257
          %1259 = vrot.lane.b32.xlu0 %v1249, 127
          %v1260 = vpop.permute.xlu0 %1259
          %1261 = vrot.lane.b32.xlu0 %v1250, 127
          %v1262 = vpop.permute.xlu0 %1261
          %1263 = vrot.lane.b32.xlu0 %v1252, 127
          %v1264 = vpop.permute.xlu0 %1263
          %1265 = vrot.lane.b32.xlu0 %v1254, 127
          %v1266 = vpop.permute.xlu0 %1265
          %1267 = vrot.lane.b32.xlu0 %v1256, 127
          %v1268 = vpop.permute.xlu0 %1267
          %1269 = vrot.lane.b32.xlu0 %v1258, 127
          %v1270 = vpop.permute.xlu0 %1269
          %v1271 = vsel %vm756, %v1260, %v1262
          %v1272 = vsel %vm756, %v1264, %v1266
          %v1273 = vsel %vm756, %v1268, %v1270
          %v1280 = vadd.f32 %v1076, %v1271
          %v1281 = vadd.f32 %v1077, %v1262
          %v1282 = vadd.f32 %v1078, %v1272
          %v1283 = vadd.f32 %v1079, %v1266
          %v1284 = vadd.f32 %v1080, %v1273
          %v1285 = vadd.f32 %v1081, %v1270
          %s1286 = sld [smem:[#allocation9 + $0x2b]]
          %s1287 = sld [smem:[#allocation9 + $0x5c]]
          %v1288 = vstv %s1286
          %v1289 = vmul.f32 %v1288, %v312
          %v1290 = vmul.f32 %v1288, %v313
          %v1291 = vmul.f32 %v1288, %v314
          %v1292 = vmul.f32 %v1288, %v315
          %v1293 = vmul.f32 %v1288, %v316
          %v1294 = vmul.f32 %v1288, %v317
          %v1301 = vrot.slane %v1289, 6
          %v1302 = vrot.slane %v1290, 6
          %v1303 = vrot.slane %v1291, 6
          %v1304 = vsel %vm671, %v1301, %v1303
          %v1305 = vrot.slane %v1292, 6
          %v1306 = vsel %vm671, %v1302, %v1305
          %v1307 = vrot.slane %v1293, 6
          %v1308 = vsel %vm671, %v1303, %v1307
          %v1309 = vrot.slane %v1294, 6
          %v1310 = vsel %vm671, %v1305, %v1309
          %1311 = vrot.lane.b32.xlu0 %v1301, 127
          %v1312 = vpop.permute.xlu0 %1311
          %1313 = vrot.lane.b32.xlu0 %v1302, 127
          %v1314 = vpop.permute.xlu0 %1313
          %1315 = vrot.lane.b32.xlu0 %v1304, 127
          %v1316 = vpop.permute.xlu0 %1315
          %1317 = vrot.lane.b32.xlu0 %v1306, 127
          %v1318 = vpop.permute.xlu0 %1317
          %1319 = vrot.lane.b32.xlu0 %v1308, 127
          %v1320 = vpop.permute.xlu0 %1319
          %1321 = vrot.lane.b32.xlu0 %v1310, 127
          %v1322 = vpop.permute.xlu0 %1321
          %v1323 = vsel %vm756, %v1312, %v1314
          %v1324 = vsel %vm756, %v1316, %v1318
          %v1325 = vsel %vm756, %v1320, %v1322
          %v1332 = vadd.f32 %v1128, %v1323
          %v1333 = vadd.f32 %v1129, %v1314
          %v1334 = vadd.f32 %v1130, %v1324
          %v1335 = vadd.f32 %v1131, %v1318
          %v1336 = vadd.f32 %v1132, %v1325
          %v1337 = vadd.f32 %v1133, %v1322
          %v1338 = vstv %s1287
          %v1339 = vmul.f32 %v1338, %v320
          %v1340 = vmul.f32 %v1338, %v321
          %v1341 = vmul.f32 %v1338, %v322
          %v1342 = vmul.f32 %v1338, %v323
          %v1343 = vmul.f32 %v1338, %v324
          %v1344 = vmul.f32 %v1338, %v325
          %v1351 = vrot.slane %v1339, 6
          %v1352 = vrot.slane %v1340, 6
          %v1353 = vrot.slane %v1341, 6
          %v1354 = vsel %vm671, %v1351, %v1353
          %v1355 = vrot.slane %v1342, 6
          %v1356 = vsel %vm671, %v1352, %v1355
          %v1357 = vrot.slane %v1343, 6
          %v1358 = vsel %vm671, %v1353, %v1357
          %v1359 = vrot.slane %v1344, 6
          %v1360 = vsel %vm671, %v1355, %v1359
          %1361 = vrot.lane.b32.xlu0 %v1351, 127
          %v1362 = vpop.permute.xlu0 %1361
          %1363 = vrot.lane.b32.xlu0 %v1352, 127
          %v1364 = vpop.permute.xlu0 %1363
          %1365 = vrot.lane.b32.xlu0 %v1354, 127
          %v1366 = vpop.permute.xlu0 %1365
          %1367 = vrot.lane.b32.xlu0 %v1356, 127
          %v1368 = vpop.permute.xlu0 %1367
          %1369 = vrot.lane.b32.xlu0 %v1358, 127
          %v1370 = vpop.permute.xlu0 %1369
          %1371 = vrot.lane.b32.xlu0 %v1360, 127
          %v1372 = vpop.permute.xlu0 %1371
          %v1373 = vsel %vm756, %v1362, %v1364
          %v1374 = vsel %vm756, %v1366, %v1368
          %v1375 = vsel %vm756, %v1370, %v1372
          %v1382 = vadd.f32 %v1178, %v1373
          %v1383 = vadd.f32 %v1179, %v1364
          %v1384 = vadd.f32 %v1180, %v1374
          %v1385 = vadd.f32 %v1181, %v1368
          %v1386 = vadd.f32 %v1182, %v1375
          %v1387 = vadd.f32 %v1183, %v1372
          %s1388 = sld [smem:[#allocation9 + $0x2]]
          %s1389 = sld [smem:[#allocation9 + $0x33]]
          %v1390 = vstv %s1388
          %v1391 = vmul.f32 %v1390, %v310
          %v1392 = vmul.f32 %v1390, %v311
          %v1393 = vmul.f32 %v1390, %v312
          %v1394 = vmul.f32 %v1390, %v313
          %v1395 = vmul.f32 %v1390, %v314
          %v1396 = vmul.f32 %v1390, %v315
          %1403 = vrot.lane.b32.xlu0 %v1391, 126
          %v1404 = vpop.permute.xlu0 %1403
          %1405 = vrot.lane.b32.xlu0 %v1392, 126
          %v1406 = vpop.permute.xlu0 %1405
          %1407 = vrot.lane.b32.xlu0 %v1393, 126
          %v1408 = vpop.permute.xlu0 %1407
          %1409 = vrot.lane.b32.xlu0 %v1394, 126
          %v1410 = vpop.permute.xlu0 %1409
          %1411 = vrot.lane.b32.xlu0 %v1395, 126
          %v1412 = vpop.permute.xlu0 %1411
          %1413 = vrot.lane.b32.xlu0 %v1396, 126
          %v1414 = vpop.permute.xlu0 %1413
          %vm1415 = vcmask 1031168
          %v1416 = vsel %vm1415, %v1404, %v1406
          %v1417 = vsel %vm1415, %v1408, %v1410
          %v1418 = vsel %vm1415, %v1412, %v1414
          %v1425 = vadd.f32 %v1332, %v1416
          %v1426 = vadd.f32 %v1333, %v1406
          %v1427 = vadd.f32 %v1334, %v1417
          %v1428 = vadd.f32 %v1335, %v1410
          %v1429 = vadd.f32 %v1336, %v1418
          %v1430 = vadd.f32 %v1337, %v1414
          %v1431 = vstv %s1389
          %v1432 = vmul.f32 %v1431, %v318
          %v1433 = vmul.f32 %v1431, %v319
          %v1434 = vmul.f32 %v1431, %v320
          %v1435 = vmul.f32 %v1431, %v321
          %v1436 = vmul.f32 %v1431, %v322
          %v1437 = vmul.f32 %v1431, %v323
          %1444 = vrot.lane.b32.xlu0 %v1432, 126
          %v1445 = vpop.permute.xlu0 %1444
          %1446 = vrot.lane.b32.xlu0 %v1433, 126
          %v1447 = vpop.permute.xlu0 %1446
          %1448 = vrot.lane.b32.xlu0 %v1434, 126
          %v1449 = vpop.permute.xlu0 %1448
          %1450 = vrot.lane.b32.xlu0 %v1435, 126
          %v1451 = vpop.permute.xlu0 %1450
          %1452 = vrot.lane.b32.xlu0 %v1436, 126
          %v1453 = vpop.permute.xlu0 %1452
          %1454 = vrot.lane.b32.xlu0 %v1437, 126
          %v1455 = vpop.permute.xlu0 %1454
          %v1456 = vsel %vm1415, %v1445, %v1447
          %v1457 = vsel %vm1415, %v1449, %v1451
          %v1458 = vsel %vm1415, %v1453, %v1455
          %v1465 = vadd.f32 %v1382, %v1456
          %v1466 = vadd.f32 %v1383, %v1447
          %v1467 = vadd.f32 %v1384, %v1457
          %v1468 = vadd.f32 %v1385, %v1451
          %v1469 = vadd.f32 %v1386, %v1458
          %v1470 = vadd.f32 %v1387, %v1455
          %s1471 = sld [smem:[#allocation9 + $0x9]]
          %s1472 = sld [smem:[#allocation9 + $0x3a]]
          %v1473 = vstv %s1471
          %v1474 = vmul.f32 %v1473, %v310
          %v1475 = vmul.f32 %v1473, %v311
          %v1476 = vmul.f32 %v1473, %v312
          %v1477 = vmul.f32 %v1473, %v313
          %v1478 = vmul.f32 %v1473, %v314
          %v1479 = vmul.f32 %v1473, %v315
          %1486 = vrot.lane.b32.xlu0 %v1474, 126
          %v1487 = vpop.permute.xlu0 %1486
          %1488 = vrot.lane.b32.xlu0 %v1475, 126
          %v1489 = vpop.permute.xlu0 %1488
          %1490 = vrot.lane.b32.xlu0 %v1476, 126
          %v1491 = vpop.permute.xlu0 %1490
          %1492 = vrot.lane.b32.xlu0 %v1477, 126
          %v1493 = vpop.permute.xlu0 %1492
          %1494 = vrot.lane.b32.xlu0 %v1478, 126
          %v1495 = vpop.permute.xlu0 %1494
          %1496 = vrot.lane.b32.xlu0 %v1479, 126
          %v1497 = vpop.permute.xlu0 %1496
          %v1498 = vsel %vm1415, %v1487, %v1489
          %v1499 = vsel %vm1415, %v1491, %v1493
          %v1500 = vsel %vm1415, %v1495, %v1497
          %v1507 = vadd.f32 %v1230, %v1498
          %v1508 = vadd.f32 %v1231, %v1489
          %v1509 = vadd.f32 %v1232, %v1499
          %v1510 = vadd.f32 %v1233, %v1493
          %v1511 = vadd.f32 %v1234, %v1500
          %v1512 = vadd.f32 %v1235, %v1497
          %v1513 = vstv %s1472
          %v1514 = vmul.f32 %v1513, %v318
          %v1515 = vmul.f32 %v1513, %v319
          %v1516 = vmul.f32 %v1513, %v320
          %v1517 = vmul.f32 %v1513, %v321
          %v1518 = vmul.f32 %v1513, %v322
          %v1519 = vmul.f32 %v1513, %v323
          %1526 = vrot.lane.b32.xlu0 %v1514, 126
          %v1527 = vpop.permute.xlu0 %1526
          %1528 = vrot.lane.b32.xlu0 %v1515, 126
          %v1529 = vpop.permute.xlu0 %1528
          %1530 = vrot.lane.b32.xlu0 %v1516, 126
          %v1531 = vpop.permute.xlu0 %1530
          %1532 = vrot.lane.b32.xlu0 %v1517, 126
          %v1533 = vpop.permute.xlu0 %1532
          %1534 = vrot.lane.b32.xlu0 %v1518, 126
          %v1535 = vpop.permute.xlu0 %1534
          %1536 = vrot.lane.b32.xlu0 %v1519, 126
          %v1537 = vpop.permute.xlu0 %1536
          %v1538 = vsel %vm1415, %v1527, %v1529
          %v1539 = vsel %vm1415, %v1531, %v1533
          %v1540 = vsel %vm1415, %v1535, %v1537
          %v1547 = vadd.f32 %v1280, %v1538
          %v1548 = vadd.f32 %v1281, %v1529
          %v1549 = vadd.f32 %v1282, %v1539
          %v1550 = vadd.f32 %v1283, %v1533
          %v1551 = vadd.f32 %v1284, %v1540
          %v1552 = vadd.f32 %v1285, %v1537
          %s1553 = sld [smem:[#allocation9 + $0x10]]
          %s1554 = sld [smem:[#allocation9 + $0x41]]
          %v1555 = vstv %s1553
          %v1556 = vmul.f32 %v1555, %v310
          %v1557 = vmul.f32 %v1555, %v311
          %v1558 = vmul.f32 %v1555, %v312
          %v1559 = vmul.f32 %v1555, %v313
          %v1560 = vmul.f32 %v1555, %v314
          %v1561 = vmul.f32 %v1555, %v315
          %v1568 = vrot.slane %v1556, 2
          %v1569 = vrot.slane %v1558, 2
          %v1570 = vsel %vm397, %v1568, %v1569
          %v1571 = vrot.slane %v1557, 2
          %v1572 = vrot.slane %v1559, 2
          %v1573 = vsel %vm397, %v1571, %v1572
          %v1574 = vrot.slane %v1560, 2
          %v1575 = vsel %vm397, %v1569, %v1574
          %v1576 = vrot.slane %v1561, 2
          %v1577 = vsel %vm397, %v1572, %v1576
          %1578 = vrot.lane.b32.xlu0 %v1570, 126
          %v1579 = vpop.permute.xlu0 %1578
          %1580 = vrot.lane.b32.xlu0 %v1573, 126
          %v1581 = vpop.permute.xlu0 %1580
          %1582 = vrot.lane.b32.xlu0 %v1575, 126
          %v1583 = vpop.permute.xlu0 %1582
          %1584 = vrot.lane.b32.xlu0 %v1577, 126
          %v1585 = vpop.permute.xlu0 %1584
          %1586 = vrot.lane.b32.xlu0 %v1574, 126
          %v1587 = vpop.permute.xlu0 %1586
          %1588 = vrot.lane.b32.xlu0 %v1576, 126
          %v1589 = vpop.permute.xlu0 %1588
          %v1590 = vsel %vm1415, %v1579, %v1581
          %v1591 = vsel %vm1415, %v1583, %v1585
          %v1592 = vsel %vm1415, %v1587, %v1589
          %v1599 = vadd.f32 %v1425, %v1590
          %v1600 = vadd.f32 %v1426, %v1581
          %v1601 = vadd.f32 %v1427, %v1591
          %v1602 = vadd.f32 %v1428, %v1585
          %v1603 = vadd.f32 %v1429, %v1592
          %v1604 = vadd.f32 %v1430, %v1589
          %v1605 = vstv %s1554
          %v1606 = vmul.f32 %v1605, %v318
          %v1607 = vmul.f32 %v1605, %v319
          %v1608 = vmul.f32 %v1605, %v320
          %v1609 = vmul.f32 %v1605, %v321
          %v1610 = vmul.f32 %v1605, %v322
          %v1611 = vmul.f32 %v1605, %v323
          %v1618 = vrot.slane %v1606, 2
          %v1619 = vrot.slane %v1608, 2
          %v1620 = vsel %vm397, %v1618, %v1619
          %v1621 = vrot.slane %v1607, 2
          %v1622 = vrot.slane %v1609, 2
          %v1623 = vsel %vm397, %v1621, %v1622
          %v1624 = vrot.slane %v1610, 2
          %v1625 = vsel %vm397, %v1619, %v1624
          %v1626 = vrot.slane %v1611, 2
          %v1627 = vsel %vm397, %v1622, %v1626
          %1628 = vrot.lane.b32.xlu0 %v1620, 126
          %v1629 = vpop.permute.xlu0 %1628
          %1630 = vrot.lane.b32.xlu0 %v1623, 126
          %v1631 = vpop.permute.xlu0 %1630
          %1632 = vrot.lane.b32.xlu0 %v1625, 126
          %v1633 = vpop.permute.xlu0 %1632
          %1634 = vrot.lane.b32.xlu0 %v1627, 126
          %v1635 = vpop.permute.xlu0 %1634
          %1636 = vrot.lane.b32.xlu0 %v1624, 126
          %v1637 = vpop.permute.xlu0 %1636
          %1638 = vrot.lane.b32.xlu0 %v1626, 126
          %v1639 = vpop.permute.xlu0 %1638
          %v1640 = vsel %vm1415, %v1629, %v1631
          %v1641 = vsel %vm1415, %v1633, %v1635
          %v1642 = vsel %vm1415, %v1637, %v1639
          %v1649 = vadd.f32 %v1465, %v1640
          %v1650 = vadd.f32 %v1466, %v1631
          %v1651 = vadd.f32 %v1467, %v1641
          %v1652 = vadd.f32 %v1468, %v1635
          %v1653 = vadd.f32 %v1469, %v1642
          %v1654 = vadd.f32 %v1470, %v1639
          %s1655 = sld [smem:[#allocation9 + $0x17]]
          %s1656 = sld [smem:[#allocation9 + $0x48]]
          %v1657 = vstv %s1655
          %v1658 = vmul.f32 %v1657, %v312
          %v1659 = vmul.f32 %v1657, %v313
          %v1660 = vmul.f32 %v1657, %v314
          %v1661 = vmul.f32 %v1657, %v315
          %v1666 = vrot.slane %v1658, 2
          %v1667 = vrot.slane %v1659, 2
          %v1668 = vrot.slane %v1660, 2
          %v1669 = vsel %vm397, %v1666, %v1668
          %v1670 = vrot.slane %v1661, 2
          %v1671 = vsel %vm397, %v1667, %v1670
          %1672 = vrot.lane.b32.xlu0 %v1666, 126
          %v1673 = vpop.permute.xlu0 %1672
          %1674 = vrot.lane.b32.xlu0 %v1667, 126
          %v1675 = vpop.permute.xlu0 %1674
          %1676 = vrot.lane.b32.xlu0 %v1669, 126
          %v1677 = vpop.permute.xlu0 %1676
          %1678 = vrot.lane.b32.xlu0 %v1671, 126
          %v1679 = vpop.permute.xlu0 %1678
          %1680 = vrot.lane.b32.xlu0 %v1668, 126
          %v1681 = vpop.permute.xlu0 %1680
          %1682 = vrot.lane.b32.xlu0 %v1670, 126
          %v1683 = vpop.permute.xlu0 %1682
          %v1684 = vsel %vm1415, %v1673, %v1675
          %v1685 = vsel %vm1415, %v1677, %v1679
          %v1686 = vsel %vm1415, %v1681, %v1683
          %v1693 = vadd.f32 %v1507, %v1684
          %v1694 = vadd.f32 %v1508, %v1675
          %v1695 = vadd.f32 %v1509, %v1685
          %v1696 = vadd.f32 %v1510, %v1679
          %v1697 = vadd.f32 %v1511, %v1686
          %v1698 = vadd.f32 %v1512, %v1683
          %v1699 = vstv %s1656
          %v1700 = vmul.f32 %v1699, %v320
          %v1701 = vmul.f32 %v1699, %v321
          %v1702 = vmul.f32 %v1699, %v322
          %v1703 = vmul.f32 %v1699, %v323
          %v1708 = vrot.slane %v1700, 2
          %v1709 = vrot.slane %v1701, 2
          %v1710 = vrot.slane %v1702, 2
          %v1711 = vsel %vm397, %v1708, %v1710
          %v1712 = vrot.slane %v1703, 2
          %v1713 = vsel %vm397, %v1709, %v1712
          %1714 = vrot.lane.b32.xlu0 %v1708, 126
          %v1715 = vpop.permute.xlu0 %1714
          %1716 = vrot.lane.b32.xlu0 %v1709, 126
          %v1717 = vpop.permute.xlu0 %1716
          %1718 = vrot.lane.b32.xlu0 %v1711, 126
          %v1719 = vpop.permute.xlu0 %1718
          %1720 = vrot.lane.b32.xlu0 %v1713, 126
          %v1721 = vpop.permute.xlu0 %1720
          %1722 = vrot.lane.b32.xlu0 %v1710, 126
          %v1723 = vpop.permute.xlu0 %1722
          %1724 = vrot.lane.b32.xlu0 %v1712, 126
          %v1725 = vpop.permute.xlu0 %1724
          %v1726 = vsel %vm1415, %v1715, %v1717
          %v1727 = vsel %vm1415, %v1719, %v1721
          %v1728 = vsel %vm1415, %v1723, %v1725
          %v1735 = vadd.f32 %v1547, %v1726
          %v1736 = vadd.f32 %v1548, %v1717
          %v1737 = vadd.f32 %v1549, %v1727
          %v1738 = vadd.f32 %v1550, %v1721
          %v1739 = vadd.f32 %v1551, %v1728
          %v1740 = vadd.f32 %v1552, %v1725
          %s1741 = sld [smem:[#allocation9 + $0x1e]]
          %s1742 = sld [smem:[#allocation9 + $0x4f]]
          %v1743 = vstv %s1741
          %v1744 = vmul.f32 %v1743, %v312
          %v1745 = vmul.f32 %v1743, %v313
          %v1746 = vmul.f32 %v1743, %v314
          %v1747 = vmul.f32 %v1743, %v315
          %v1748 = vmul.f32 %v1743, %v316
          %v1749 = vmul.f32 %v1743, %v317
          %v1756 = vrot.slane %v1744, 4
          %v1757 = vrot.slane %v1745, 4
          %v1758 = vrot.slane %v1746, 4
          %v1759 = vsel %vm526, %v1756, %v1758
          %v1760 = vrot.slane %v1747, 4
          %v1761 = vsel %vm526, %v1757, %v1760
          %v1762 = vrot.slane %v1748, 4
          %v1763 = vsel %vm526, %v1758, %v1762
          %v1764 = vrot.slane %v1749, 4
          %v1765 = vsel %vm526, %v1760, %v1764
          %1766 = vrot.lane.b32.xlu0 %v1756, 126
          %v1767 = vpop.permute.xlu0 %1766
          %1768 = vrot.lane.b32.xlu0 %v1757, 126
          %v1769 = vpop.permute.xlu0 %1768
          %1770 = vrot.lane.b32.xlu0 %v1759, 126
          %v1771 = vpop.permute.xlu0 %1770
          %1772 = vrot.lane.b32.xlu0 %v1761, 126
          %v1773 = vpop.permute.xlu0 %1772
          %1774 = vrot.lane.b32.xlu0 %v1763, 126
          %v1775 = vpop.permute.xlu0 %1774
          %1776 = vrot.lane.b32.xlu0 %v1765, 126
          %v1777 = vpop.permute.xlu0 %1776
          %v1778 = vsel %vm1415, %v1767, %v1769
          %v1779 = vsel %vm1415, %v1771, %v1773
          %v1780 = vsel %vm1415, %v1775, %v1777
          %v1787 = vadd.f32 %v1599, %v1778
          %v1788 = vadd.f32 %v1600, %v1769
          %v1789 = vadd.f32 %v1601, %v1779
          %v1790 = vadd.f32 %v1602, %v1773
          %v1791 = vadd.f32 %v1603, %v1780
          %v1792 = vadd.f32 %v1604, %v1777
          %v1793 = vstv %s1742
          %v1794 = vmul.f32 %v1793, %v320
          %v1795 = vmul.f32 %v1793, %v321
          %v1796 = vmul.f32 %v1793, %v322
          %v1797 = vmul.f32 %v1793, %v323
          %v1798 = vmul.f32 %v1793, %v324
          %v1799 = vmul.f32 %v1793, %v325
          %v1806 = vrot.slane %v1794, 4
          %v1807 = vrot.slane %v1795, 4
          %v1808 = vrot.slane %v1796, 4
          %v1809 = vsel %vm526, %v1806, %v1808
          %v1810 = vrot.slane %v1797, 4
          %v1811 = vsel %vm526, %v1807, %v1810
          %v1812 = vrot.slane %v1798, 4
          %v1813 = vsel %vm526, %v1808, %v1812
          %v1814 = vrot.slane %v1799, 4
          %v1815 = vsel %vm526, %v1810, %v1814
          %1816 = vrot.lane.b32.xlu0 %v1806, 126
          %v1817 = vpop.permute.xlu0 %1816
          %1818 = vrot.lane.b32.xlu0 %v1807, 126
          %v1819 = vpop.permute.xlu0 %1818
          %1820 = vrot.lane.b32.xlu0 %v1809, 126
          %v1821 = vpop.permute.xlu0 %1820
          %1822 = vrot.lane.b32.xlu0 %v1811, 126
          %v1823 = vpop.permute.xlu0 %1822
          %1824 = vrot.lane.b32.xlu0 %v1813, 126
          %v1825 = vpop.permute.xlu0 %1824
          %1826 = vrot.lane.b32.xlu0 %v1815, 126
          %v1827 = vpop.permute.xlu0 %1826
          %v1828 = vsel %vm1415, %v1817, %v1819
          %v1829 = vsel %vm1415, %v1821, %v1823
          %v1830 = vsel %vm1415, %v1825, %v1827
          %v1837 = vadd.f32 %v1649, %v1828
          %v1838 = vadd.f32 %v1650, %v1819
          %v1839 = vadd.f32 %v1651, %v1829
          %v1840 = vadd.f32 %v1652, %v1823
          %v1841 = vadd.f32 %v1653, %v1830
          %v1842 = vadd.f32 %v1654, %v1827
          %s1843 = sld [smem:[#allocation9 + $0x25]]
          %s1844 = sld [smem:[#allocation9 + $0x56]]
          %v1845 = vstv %s1843
          %v1846 = vmul.f32 %v1845, %v312
          %v1847 = vmul.f32 %v1845, %v313
          %v1848 = vmul.f32 %v1845, %v314
          %v1849 = vmul.f32 %v1845, %v315
          %v1850 = vmul.f32 %v1845, %v316
          %v1851 = vmul.f32 %v1845, %v317
          %v1858 = vrot.slane %v1846, 4
          %v1859 = vrot.slane %v1847, 4
          %v1860 = vrot.slane %v1848, 4
          %v1861 = vsel %vm526, %v1858, %v1860
          %v1862 = vrot.slane %v1849, 4
          %v1863 = vsel %vm526, %v1859, %v1862
          %v1864 = vrot.slane %v1850, 4
          %v1865 = vsel %vm526, %v1860, %v1864
          %v1866 = vrot.slane %v1851, 4
          %v1867 = vsel %vm526, %v1862, %v1866
          %1868 = vrot.lane.b32.xlu0 %v1858, 126
          %v1869 = vpop.permute.xlu0 %1868
          %1870 = vrot.lane.b32.xlu0 %v1859, 126
          %v1871 = vpop.permute.xlu0 %1870
          %1872 = vrot.lane.b32.xlu0 %v1861, 126
          %v1873 = vpop.permute.xlu0 %1872
          %1874 = vrot.lane.b32.xlu0 %v1863, 126
          %v1875 = vpop.permute.xlu0 %1874
          %1876 = vrot.lane.b32.xlu0 %v1865, 126
          %v1877 = vpop.permute.xlu0 %1876
          %1878 = vrot.lane.b32.xlu0 %v1867, 126
          %v1879 = vpop.permute.xlu0 %1878
          %v1880 = vsel %vm1415, %v1869, %v1871
          %v1881 = vsel %vm1415, %v1873, %v1875
          %v1882 = vsel %vm1415, %v1877, %v1879
          %v1889 = vadd.f32 %v1693, %v1880
          %v1890 = vadd.f32 %v1694, %v1871
          %v1891 = vadd.f32 %v1695, %v1881
          %v1892 = vadd.f32 %v1696, %v1875
          %v1893 = vadd.f32 %v1697, %v1882
          %v1894 = vadd.f32 %v1698, %v1879
          %v1895 = vstv %s1844
          %v1896 = vmul.f32 %v1895, %v320
          %v1897 = vmul.f32 %v1895, %v321
          %v1898 = vmul.f32 %v1895, %v322
          %v1899 = vmul.f32 %v1895, %v323
          %v1900 = vmul.f32 %v1895, %v324
          %v1901 = vmul.f32 %v1895, %v325
          %v1908 = vrot.slane %v1896, 4
          %v1909 = vrot.slane %v1897, 4
          %v1910 = vrot.slane %v1898, 4
          %v1911 = vsel %vm526, %v1908, %v1910
          %v1912 = vrot.slane %v1899, 4
          %v1913 = vsel %vm526, %v1909, %v1912
          %v1914 = vrot.slane %v1900, 4
          %v1915 = vsel %vm526, %v1910, %v1914
          %v1916 = vrot.slane %v1901, 4
          %v1917 = vsel %vm526, %v1912, %v1916
          %1918 = vrot.lane.b32.xlu0 %v1908, 126
          %v1919 = vpop.permute.xlu0 %1918
          %1920 = vrot.lane.b32.xlu0 %v1909, 126
          %v1921 = vpop.permute.xlu0 %1920
          %1922 = vrot.lane.b32.xlu0 %v1911, 126
          %v1923 = vpop.permute.xlu0 %1922
          %1924 = vrot.lane.b32.xlu0 %v1913, 126
          %v1925 = vpop.permute.xlu0 %1924
          %1926 = vrot.lane.b32.xlu0 %v1915, 126
          %v1927 = vpop.permute.xlu0 %1926
          %1928 = vrot.lane.b32.xlu0 %v1917, 126
          %v1929 = vpop.permute.xlu0 %1928
          %v1930 = vsel %vm1415, %v1919, %v1921
          %v1931 = vsel %vm1415, %v1923, %v1925
          %v1932 = vsel %vm1415, %v1927, %v1929
          %v1939 = vadd.f32 %v1735, %v1930
          %v1940 = vadd.f32 %v1736, %v1921
          %v1941 = vadd.f32 %v1737, %v1931
          %v1942 = vadd.f32 %v1738, %v1925
          %v1943 = vadd.f32 %v1739, %v1932
          %v1944 = vadd.f32 %v1740, %v1929
          %s1945 = sld [smem:[#allocation9 + $0x2c]]
          %s1946 = sld [smem:[#allocation9 + $0x5d]]
          %v1947 = vstv %s1945
          %v1948 = vmul.f32 %v1947, %v312
          %v1949 = vmul.f32 %v1947, %v313
          %v1950 = vmul.f32 %v1947, %v314
          %v1951 = vmul.f32 %v1947, %v315
          %v1952 = vmul.f32 %v1947, %v316
          %v1953 = vmul.f32 %v1947, %v317
          %v1960 = vrot.slane %v1948, 6
          %v1961 = vrot.slane %v1949, 6
          %v1962 = vrot.slane %v1950, 6
          %v1963 = vsel %vm671, %v1960, %v1962
          %v1964 = vrot.slane %v1951, 6
          %v1965 = vsel %vm671, %v1961, %v1964
          %v1966 = vrot.slane %v1952, 6
          %v1967 = vsel %vm671, %v1962, %v1966
          %v1968 = vrot.slane %v1953, 6
          %v1969 = vsel %vm671, %v1964, %v1968
          %1970 = vrot.lane.b32.xlu0 %v1960, 126
          %v1971 = vpop.permute.xlu0 %1970
          %1972 = vrot.lane.b32.xlu0 %v1961, 126
          %v1973 = vpop.permute.xlu0 %1972
          %1974 = vrot.lane.b32.xlu0 %v1963, 126
          %v1975 = vpop.permute.xlu0 %1974
          %1976 = vrot.lane.b32.xlu0 %v1965, 126
          %v1977 = vpop.permute.xlu0 %1976
          %1978 = vrot.lane.b32.xlu0 %v1967, 126
          %v1979 = vpop.permute.xlu0 %1978
          %1980 = vrot.lane.b32.xlu0 %v1969, 126
          %v1981 = vpop.permute.xlu0 %1980
          %v1982 = vsel %vm1415, %v1971, %v1973
          %v1983 = vsel %vm1415, %v1975, %v1977
          %v1984 = vsel %vm1415, %v1979, %v1981
          %v1991 = vadd.f32 %v1787, %v1982
          %v1992 = vadd.f32 %v1788, %v1973
          %v1993 = vadd.f32 %v1789, %v1983
          %v1994 = vadd.f32 %v1790, %v1977
          %v1995 = vadd.f32 %v1791, %v1984
          %v1996 = vadd.f32 %v1792, %v1981
          %v1997 = vstv %s1946
          %v1998 = vmul.f32 %v1997, %v320
          %v1999 = vmul.f32 %v1997, %v321
          %v2000 = vmul.f32 %v1997, %v322
          %v2001 = vmul.f32 %v1997, %v323
          %v2002 = vmul.f32 %v1997, %v324
          %v2003 = vmul.f32 %v1997, %v325
          %v2010 = vrot.slane %v1998, 6
          %v2011 = vrot.slane %v1999, 6
          %v2012 = vrot.slane %v2000, 6
          %v2013 = vsel %vm671, %v2010, %v2012
          %v2014 = vrot.slane %v2001, 6
          %v2015 = vsel %vm671, %v2011, %v2014
          %v2016 = vrot.slane %v2002, 6
          %v2017 = vsel %vm671, %v2012, %v2016
          %v2018 = vrot.slane %v2003, 6
          %v2019 = vsel %vm671, %v2014, %v2018
          %2020 = vrot.lane.b32.xlu0 %v2010, 126
          %v2021 = vpop.permute.xlu0 %2020
          %2022 = vrot.lane.b32.xlu0 %v2011, 126
          %v2023 = vpop.permute.xlu0 %2022
          %2024 = vrot.lane.b32.xlu0 %v2013, 126
          %v2025 = vpop.permute.xlu0 %2024
          %2026 = vrot.lane.b32.xlu0 %v2015, 126
          %v2027 = vpop.permute.xlu0 %2026
          %2028 = vrot.lane.b32.xlu0 %v2017, 126
          %v2029 = vpop.permute.xlu0 %2028
          %2030 = vrot.lane.b32.xlu0 %v2019, 126
          %v2031 = vpop.permute.xlu0 %2030
          %v2032 = vsel %vm1415, %v2021, %v2023
          %v2033 = vsel %vm1415, %v2025, %v2027
          %v2034 = vsel %vm1415, %v2029, %v2031
          %v2041 = vadd.f32 %v1837, %v2032
          %v2042 = vadd.f32 %v1838, %v2023
          %v2043 = vadd.f32 %v1839, %v2033
          %v2044 = vadd.f32 %v1840, %v2027
          %v2045 = vadd.f32 %v1841, %v2034
          %v2046 = vadd.f32 %v1842, %v2031
          %s2047 = sld [smem:[#allocation9 + $0x3]]
          %s2048 = sld [smem:[#allocation9 + $0x34]]
          %v2049 = vstv %s2047
          %v2050 = vmul.f32 %v2049, %v311
          %v2051 = vmul.f32 %v2049, %v313
          %v2052 = vmul.f32 %v2049, %v315
          %2056 = vrot.lane.b32.xlu0 %v2050, 125
          %v2057 = vpop.permute.xlu0 %2056
          %2058 = vrot.lane.b32.xlu0 %v2051, 125
          %v2059 = vpop.permute.xlu0 %2058
          %2060 = vrot.lane.b32.xlu0 %v2052, 125
          %v2061 = vpop.permute.xlu0 %2060
          %v2065 = vadd.f32 %v1991, %v2057
          %v2066 = vadd.f32 %v1992, %v2057
          %v2067 = vadd.f32 %v1993, %v2059
          %v2068 = vadd.f32 %v1994, %v2059
          %v2069 = vadd.f32 %v1995, %v2061
          %v2070 = vadd.f32 %v1996, %v2061
          %v2071 = vstv %s2048
          %v2072 = vmul.f32 %v2071, %v319
          %v2073 = vmul.f32 %v2071, %v321
          %v2074 = vmul.f32 %v2071, %v323
          %2078 = vrot.lane.b32.xlu0 %v2072, 125
          %v2079 = vpop.permute.xlu0 %2078
          %2080 = vrot.lane.b32.xlu0 %v2073, 125
          %v2081 = vpop.permute.xlu0 %2080
          %2082 = vrot.lane.b32.xlu0 %v2074, 125
          %v2083 = vpop.permute.xlu0 %2082
          %v2087 = vadd.f32 %v2041, %v2079
          %v2088 = vadd.f32 %v2042, %v2079
          %v2089 = vadd.f32 %v2043, %v2081
          %v2090 = vadd.f32 %v2044, %v2081
          %v2091 = vadd.f32 %v2045, %v2083
          %v2092 = vadd.f32 %v2046, %v2083
          %s2093 = sld [smem:[#allocation9 + $0xa]]
          %s2094 = sld [smem:[#allocation9 + $0x3b]]
          %v2095 = vstv %s2093
          %v2096 = vmul.f32 %v2095, %v311
          %v2097 = vmul.f32 %v2095, %v313
          %v2098 = vmul.f32 %v2095, %v315
          %2102 = vrot.lane.b32.xlu0 %v2096, 125
          %v2103 = vpop.permute.xlu0 %2102
          %2104 = vrot.lane.b32.xlu0 %v2097, 125
          %v2105 = vpop.permute.xlu0 %2104
          %2106 = vrot.lane.b32.xlu0 %v2098, 125
          %v2107 = vpop.permute.xlu0 %2106
          %v2111 = vadd.f32 %v1889, %v2103
          %v2112 = vadd.f32 %v1890, %v2103
          %v2113 = vadd.f32 %v1891, %v2105
          %v2114 = vadd.f32 %v1892, %v2105
          %v2115 = vadd.f32 %v1893, %v2107
          %v2116 = vadd.f32 %v1894, %v2107
          %v2117 = vstv %s2094
          %v2118 = vmul.f32 %v2117, %v319
          %v2119 = vmul.f32 %v2117, %v321
          %v2120 = vmul.f32 %v2117, %v323
          %2124 = vrot.lane.b32.xlu0 %v2118, 125
          %v2125 = vpop.permute.xlu0 %2124
          %2126 = vrot.lane.b32.xlu0 %v2119, 125
          %v2127 = vpop.permute.xlu0 %2126
          %2128 = vrot.lane.b32.xlu0 %v2120, 125
          %v2129 = vpop.permute.xlu0 %2128
          %v2133 = vadd.f32 %v1939, %v2125
          %v2134 = vadd.f32 %v1940, %v2125
          %v2135 = vadd.f32 %v1941, %v2127
          %v2136 = vadd.f32 %v1942, %v2127
          %v2137 = vadd.f32 %v1943, %v2129
          %v2138 = vadd.f32 %v1944, %v2129
          %s2139 = sld [smem:[#allocation9 + $0x11]]
          %s2140 = sld [smem:[#allocation9 + $0x42]]
          %v2141 = vstv %s2139
          %v2142 = vmul.f32 %v2141, %v311
          %v2143 = vmul.f32 %v2141, %v313
          %v2144 = vmul.f32 %v2141, %v315
          %v2148 = vrot.slane %v2142, 2
          %v2149 = vrot.slane %v2143, 2
          %v2150 = vsel %vm397, %v2148, %v2149
          %v2151 = vrot.slane %v2144, 2
          %v2152 = vsel %vm397, %v2149, %v2151
          %2153 = vrot.lane.b32.xlu0 %v2150, 125
          %v2154 = vpop.permute.xlu0 %2153
          %2155 = vrot.lane.b32.xlu0 %v2152, 125
          %v2156 = vpop.permute.xlu0 %2155
          %2157 = vrot.lane.b32.xlu0 %v2151, 125
          %v2158 = vpop.permute.xlu0 %2157
          %v2162 = vadd.f32 %v2065, %v2154
          %v2163 = vadd.f32 %v2066, %v2154
          %v2164 = vadd.f32 %v2067, %v2156
          %v2165 = vadd.f32 %v2068, %v2156
          %v2166 = vadd.f32 %v2069, %v2158
          %v2167 = vadd.f32 %v2070, %v2158
          %v2168 = vstv %s2140
          %v2169 = vmul.f32 %v2168, %v319
          %v2170 = vmul.f32 %v2168, %v321
          %v2171 = vmul.f32 %v2168, %v323
          %v2175 = vrot.slane %v2169, 2
          %v2176 = vrot.slane %v2170, 2
          %v2177 = vsel %vm397, %v2175, %v2176
          %v2178 = vrot.slane %v2171, 2
          %v2179 = vsel %vm397, %v2176, %v2178
          %2180 = vrot.lane.b32.xlu0 %v2177, 125
          %v2181 = vpop.permute.xlu0 %2180
          %2182 = vrot.lane.b32.xlu0 %v2179, 125
          %v2183 = vpop.permute.xlu0 %2182
          %2184 = vrot.lane.b32.xlu0 %v2178, 125
          %v2185 = vpop.permute.xlu0 %2184
          %v2189 = vadd.f32 %v2087, %v2181
          %v2190 = vadd.f32 %v2088, %v2181
          %v2191 = vadd.f32 %v2089, %v2183
          %v2192 = vadd.f32 %v2090, %v2183
          %v2193 = vadd.f32 %v2091, %v2185
          %v2194 = vadd.f32 %v2092, %v2185
          %s2195 = sld [smem:[#allocation9 + $0x18]]
          %s2196 = sld [smem:[#allocation9 + $0x49]]
          %v2197 = vstv %s2195
          %v2198 = vmul.f32 %v2197, %v313
          %v2199 = vmul.f32 %v2197, %v315
          %v2202 = vrot.slane %v2198, 2
          %v2203 = vrot.slane %v2199, 2
          %v2204 = vsel %vm397, %v2202, %v2203
          %2205 = vrot.lane.b32.xlu0 %v2202, 125
          %v2206 = vpop.permute.xlu0 %2205
          %2207 = vrot.lane.b32.xlu0 %v2204, 125
          %v2208 = vpop.permute.xlu0 %2207
          %2209 = vrot.lane.b32.xlu0 %v2203, 125
          %v2210 = vpop.permute.xlu0 %2209
          %v2214 = vadd.f32 %v2111, %v2206
          %v2215 = vadd.f32 %v2112, %v2206
          %v2216 = vadd.f32 %v2113, %v2208
          %v2217 = vadd.f32 %v2114, %v2208
          %v2218 = vadd.f32 %v2115, %v2210
          %v2219 = vadd.f32 %v2116, %v2210
          %v2220 = vstv %s2196
          %v2221 = vmul.f32 %v2220, %v321
          %v2222 = vmul.f32 %v2220, %v323
          %v2225 = vrot.slane %v2221, 2
          %v2226 = vrot.slane %v2222, 2
          %v2227 = vsel %vm397, %v2225, %v2226
          %2228 = vrot.lane.b32.xlu0 %v2225, 125
          %v2229 = vpop.permute.xlu0 %2228
          %2230 = vrot.lane.b32.xlu0 %v2227, 125
          %v2231 = vpop.permute.xlu0 %2230
          %2232 = vrot.lane.b32.xlu0 %v2226, 125
          %v2233 = vpop.permute.xlu0 %2232
          %v2237 = vadd.f32 %v2133, %v2229
          %v2238 = vadd.f32 %v2134, %v2229
          %v2239 = vadd.f32 %v2135, %v2231
          %v2240 = vadd.f32 %v2136, %v2231
          %v2241 = vadd.f32 %v2137, %v2233
          %v2242 = vadd.f32 %v2138, %v2233
          %s2243 = sld [smem:[#allocation9 + $0x1f]]
          %s2244 = sld [smem:[#allocation9 + $0x50]]
          %v2245 = vstv %s2243
          %v2246 = vmul.f32 %v2245, %v313
          %v2247 = vmul.f32 %v2245, %v315
          %v2248 = vmul.f32 %v2245, %v317
          %v2252 = vrot.slane %v2246, 4
          %v2253 = vrot.slane %v2247, 4
          %v2254 = vsel %vm526, %v2252, %v2253
          %v2255 = vrot.slane %v2248, 4
          %v2256 = vsel %vm526, %v2253, %v2255
          %2257 = vrot.lane.b32.xlu0 %v2252, 125
          %v2258 = vpop.permute.xlu0 %2257
          %2259 = vrot.lane.b32.xlu0 %v2254, 125
          %v2260 = vpop.permute.xlu0 %2259
          %2261 = vrot.lane.b32.xlu0 %v2256, 125
          %v2262 = vpop.permute.xlu0 %2261
          %v2266 = vadd.f32 %v2162, %v2258
          %v2267 = vadd.f32 %v2163, %v2258
          %v2268 = vadd.f32 %v2164, %v2260
          %v2269 = vadd.f32 %v2165, %v2260
          %v2270 = vadd.f32 %v2166, %v2262
          %v2271 = vadd.f32 %v2167, %v2262
          %v2272 = vstv %s2244
          %v2273 = vmul.f32 %v2272, %v321
          %v2274 = vmul.f32 %v2272, %v323
          %v2275 = vmul.f32 %v2272, %v325
          %v2279 = vrot.slane %v2273, 4
          %v2280 = vrot.slane %v2274, 4
          %v2281 = vsel %vm526, %v2279, %v2280
          %v2282 = vrot.slane %v2275, 4
          %v2283 = vsel %vm526, %v2280, %v2282
          %2284 = vrot.lane.b32.xlu0 %v2279, 125
          %v2285 = vpop.permute.xlu0 %2284
          %2286 = vrot.lane.b32.xlu0 %v2281, 125
          %v2287 = vpop.permute.xlu0 %2286
          %2288 = vrot.lane.b32.xlu0 %v2283, 125
          %v2289 = vpop.permute.xlu0 %2288
          %v2293 = vadd.f32 %v2189, %v2285
          %v2294 = vadd.f32 %v2190, %v2285
          %v2295 = vadd.f32 %v2191, %v2287
          %v2296 = vadd.f32 %v2192, %v2287
          %v2297 = vadd.f32 %v2193, %v2289
          %v2298 = vadd.f32 %v2194, %v2289
          %s2299 = sld [smem:[#allocation9 + $0x26]]
          %s2300 = sld [smem:[#allocation9 + $0x57]]
          %v2301 = vstv %s2299
          %v2302 = vmul.f32 %v2301, %v313
          %v2303 = vmul.f32 %v2301, %v315
          %v2304 = vmul.f32 %v2301, %v317
          %v2308 = vrot.slane %v2302, 4
          %v2309 = vrot.slane %v2303, 4
          %v2310 = vsel %vm526, %v2308, %v2309
          %v2311 = vrot.slane %v2304, 4
          %v2312 = vsel %vm526, %v2309, %v2311
          %2313 = vrot.lane.b32.xlu0 %v2308, 125
          %v2314 = vpop.permute.xlu0 %2313
          %2315 = vrot.lane.b32.xlu0 %v2310, 125
          %v2316 = vpop.permute.xlu0 %2315
          %2317 = vrot.lane.b32.xlu0 %v2312, 125
          %v2318 = vpop.permute.xlu0 %2317
          %v2322 = vadd.f32 %v2214, %v2314
          %v2323 = vadd.f32 %v2215, %v2314
          %v2324 = vadd.f32 %v2216, %v2316
          %v2325 = vadd.f32 %v2217, %v2316
          %v2326 = vadd.f32 %v2218, %v2318
          %v2327 = vadd.f32 %v2219, %v2318
          %v2328 = vstv %s2300
          %v2329 = vmul.f32 %v2328, %v321
          %v2330 = vmul.f32 %v2328, %v323
          %v2331 = vmul.f32 %v2328, %v325
          %v2335 = vrot.slane %v2329, 4
          %v2336 = vrot.slane %v2330, 4
          %v2337 = vsel %vm526, %v2335, %v2336
          %v2338 = vrot.slane %v2331, 4
          %v2339 = vsel %vm526, %v2336, %v2338
          %2340 = vrot.lane.b32.xlu0 %v2335, 125
          %v2341 = vpop.permute.xlu0 %2340
          %2342 = vrot.lane.b32.xlu0 %v2337, 125
          %v2343 = vpop.permute.xlu0 %2342
          %2344 = vrot.lane.b32.xlu0 %v2339, 125
          %v2345 = vpop.permute.xlu0 %2344
          %v2349 = vadd.f32 %v2237, %v2341
          %v2350 = vadd.f32 %v2238, %v2341
          %v2351 = vadd.f32 %v2239, %v2343
          %v2352 = vadd.f32 %v2240, %v2343
          %v2353 = vadd.f32 %v2241, %v2345
          %v2354 = vadd.f32 %v2242, %v2345
          %s2355 = sld [smem:[#allocation9 + $0x2d]]
          %s2356 = sld [smem:[#allocation9 + $0x5e]]
          %v2357 = vstv %s2355
          %v2358 = vmul.f32 %v2357, %v313
          %v2359 = vmul.f32 %v2357, %v315
          %v2360 = vmul.f32 %v2357, %v317
          %v2364 = vrot.slane %v2358, 6
          %v2365 = vrot.slane %v2359, 6
          %v2366 = vsel %vm671, %v2364, %v2365
          %v2367 = vrot.slane %v2360, 6
          %v2368 = vsel %vm671, %v2365, %v2367
          %2369 = vrot.lane.b32.xlu0 %v2364, 125
          %v2370 = vpop.permute.xlu0 %2369
          %2371 = vrot.lane.b32.xlu0 %v2366, 125
          %v2372 = vpop.permute.xlu0 %2371
          %2373 = vrot.lane.b32.xlu0 %v2368, 125
          %v2374 = vpop.permute.xlu0 %2373
          %v2378 = vadd.f32 %v2266, %v2370
          %v2379 = vadd.f32 %v2267, %v2370
          %v2380 = vadd.f32 %v2268, %v2372
          %v2381 = vadd.f32 %v2269, %v2372
          %v2382 = vadd.f32 %v2270, %v2374
          %v2383 = vadd.f32 %v2271, %v2374
          %v2384 = vstv %s2356
          %v2385 = vmul.f32 %v2384, %v321
          %v2386 = vmul.f32 %v2384, %v323
          %v2387 = vmul.f32 %v2384, %v325
          %v2391 = vrot.slane %v2385, 6
          %v2392 = vrot.slane %v2386, 6
          %v2393 = vsel %vm671, %v2391, %v2392
          %v2394 = vrot.slane %v2387, 6
          %v2395 = vsel %vm671, %v2392, %v2394
          %2396 = vrot.lane.b32.xlu0 %v2391, 125
          %v2397 = vpop.permute.xlu0 %2396
          %2398 = vrot.lane.b32.xlu0 %v2393, 125
          %v2399 = vpop.permute.xlu0 %2398
          %2400 = vrot.lane.b32.xlu0 %v2395, 125
          %v2401 = vpop.permute.xlu0 %2400
          %v2405 = vadd.f32 %v2293, %v2397
          %v2406 = vadd.f32 %v2294, %v2397
          %v2407 = vadd.f32 %v2295, %v2399
          %v2408 = vadd.f32 %v2296, %v2399
          %v2409 = vadd.f32 %v2297, %v2401
          %v2410 = vadd.f32 %v2298, %v2401
          %s2411 = sld [smem:[#allocation9 + $0x4]]
          %s2412 = sld [smem:[#allocation9 + $0x35]]
          %v2413 = vstv %s2411
          %v2414 = vmul.f32 %v2413, %v311
          %v2415 = vmul.f32 %v2413, %v313
          %v2416 = vmul.f32 %v2413, %v315
          %2420 = vrot.lane.b32.xlu0 %v2414, 124
          %v2421 = vpop.permute.xlu0 %2420
          %2422 = vrot.lane.b32.xlu0 %v2415, 124
          %v2423 = vpop.permute.xlu0 %2422
          %2424 = vrot.lane.b32.xlu0 %v2416, 124
          %v2425 = vpop.permute.xlu0 %2424
          %v2429 = vadd.f32 %v2378, %v2421
          %v2430 = vadd.f32 %v2379, %v2421
          %v2431 = vadd.f32 %v2380, %v2423
          %v2432 = vadd.f32 %v2381, %v2423
          %v2433 = vadd.f32 %v2382, %v2425
          %v2434 = vadd.f32 %v2383, %v2425
          %v2435 = vstv %s2412
          %v2436 = vmul.f32 %v2435, %v319
          %v2437 = vmul.f32 %v2435, %v321
          %v2438 = vmul.f32 %v2435, %v323
          %2442 = vrot.lane.b32.xlu0 %v2436, 124
          %v2443 = vpop.permute.xlu0 %2442
          %2444 = vrot.lane.b32.xlu0 %v2437, 124
          %v2445 = vpop.permute.xlu0 %2444
          %2446 = vrot.lane.b32.xlu0 %v2438, 124
          %v2447 = vpop.permute.xlu0 %2446
          %v2451 = vadd.f32 %v2405, %v2443
          %v2452 = vadd.f32 %v2406, %v2443
          %v2453 = vadd.f32 %v2407, %v2445
          %v2454 = vadd.f32 %v2408, %v2445
          %v2455 = vadd.f32 %v2409, %v2447
          %v2456 = vadd.f32 %v2410, %v2447
          %s2457 = sld [smem:[#allocation9 + $0xb]]
          %s2458 = sld [smem:[#allocation9 + $0x3c]]
          %v2459 = vstv %s2457
          %v2460 = vmul.f32 %v2459, %v311
          %v2461 = vmul.f32 %v2459, %v313
          %v2462 = vmul.f32 %v2459, %v315
          %2466 = vrot.lane.b32.xlu0 %v2460, 124
          %v2467 = vpop.permute.xlu0 %2466
          %2468 = vrot.lane.b32.xlu0 %v2461, 124
          %v2469 = vpop.permute.xlu0 %2468
          %2470 = vrot.lane.b32.xlu0 %v2462, 124
          %v2471 = vpop.permute.xlu0 %2470
          %v2475 = vadd.f32 %v2322, %v2467
          %v2476 = vadd.f32 %v2323, %v2467
          %v2477 = vadd.f32 %v2324, %v2469
          %v2478 = vadd.f32 %v2325, %v2469
          %v2479 = vadd.f32 %v2326, %v2471
          %v2480 = vadd.f32 %v2327, %v2471
          %v2481 = vstv %s2458
          %v2482 = vmul.f32 %v2481, %v319
          %v2483 = vmul.f32 %v2481, %v321
          %v2484 = vmul.f32 %v2481, %v323
          %2488 = vrot.lane.b32.xlu0 %v2482, 124
          %v2489 = vpop.permute.xlu0 %2488
          %2490 = vrot.lane.b32.xlu0 %v2483, 124
          %v2491 = vpop.permute.xlu0 %2490
          %2492 = vrot.lane.b32.xlu0 %v2484, 124
          %v2493 = vpop.permute.xlu0 %2492
          %v2497 = vadd.f32 %v2349, %v2489
          %v2498 = vadd.f32 %v2350, %v2489
          %v2499 = vadd.f32 %v2351, %v2491
          %v2500 = vadd.f32 %v2352, %v2491
          %v2501 = vadd.f32 %v2353, %v2493
          %v2502 = vadd.f32 %v2354, %v2493
          %s2503 = sld [smem:[#allocation9 + $0x12]]
          %s2504 = sld [smem:[#allocation9 + $0x43]]
          %v2505 = vstv %s2503
          %v2506 = vmul.f32 %v2505, %v311
          %v2507 = vmul.f32 %v2505, %v313
          %v2508 = vmul.f32 %v2505, %v315
          %v2512 = vrot.slane %v2506, 2
          %v2513 = vrot.slane %v2507, 2
          %v2514 = vsel %vm397, %v2512, %v2513
          %v2515 = vrot.slane %v2508, 2
          %v2516 = vsel %vm397, %v2513, %v2515
          %2517 = vrot.lane.b32.xlu0 %v2514, 124
          %v2518 = vpop.permute.xlu0 %2517
          %2519 = vrot.lane.b32.xlu0 %v2516, 124
          %v2520 = vpop.permute.xlu0 %2519
          %2521 = vrot.lane.b32.xlu0 %v2515, 124
          %v2522 = vpop.permute.xlu0 %2521
          %v2526 = vadd.f32 %v2429, %v2518
          %v2527 = vadd.f32 %v2430, %v2518
          %v2528 = vadd.f32 %v2431, %v2520
          %v2529 = vadd.f32 %v2432, %v2520
          %v2530 = vadd.f32 %v2433, %v2522
          %v2531 = vadd.f32 %v2434, %v2522
          %v2532 = vstv %s2504
          %v2533 = vmul.f32 %v2532, %v319
          %v2534 = vmul.f32 %v2532, %v321
          %v2535 = vmul.f32 %v2532, %v323
          %v2539 = vrot.slane %v2533, 2
          %v2540 = vrot.slane %v2534, 2
          %v2541 = vsel %vm397, %v2539, %v2540
          %v2542 = vrot.slane %v2535, 2
          %v2543 = vsel %vm397, %v2540, %v2542
          %2544 = vrot.lane.b32.xlu0 %v2541, 124
          %v2545 = vpop.permute.xlu0 %2544
          %2546 = vrot.lane.b32.xlu0 %v2543, 124
          %v2547 = vpop.permute.xlu0 %2546
          %2548 = vrot.lane.b32.xlu0 %v2542, 124
          %v2549 = vpop.permute.xlu0 %2548
          %v2553 = vadd.f32 %v2451, %v2545
          %v2554 = vadd.f32 %v2452, %v2545
          %v2555 = vadd.f32 %v2453, %v2547
          %v2556 = vadd.f32 %v2454, %v2547
          %v2557 = vadd.f32 %v2455, %v2549
          %v2558 = vadd.f32 %v2456, %v2549
          %s2559 = sld [smem:[#allocation9 + $0x19]]
          %s2560 = sld [smem:[#allocation9 + $0x4a]]
          %v2561 = vstv %s2559
          %v2562 = vmul.f32 %v2561, %v313
          %v2563 = vmul.f32 %v2561, %v315
          %v2566 = vrot.slane %v2562, 2
          %v2567 = vrot.slane %v2563, 2
          %v2568 = vsel %vm397, %v2566, %v2567
          %2569 = vrot.lane.b32.xlu0 %v2566, 124
          %v2570 = vpop.permute.xlu0 %2569
          %2571 = vrot.lane.b32.xlu0 %v2568, 124
          %v2572 = vpop.permute.xlu0 %2571
          %2573 = vrot.lane.b32.xlu0 %v2567, 124
          %v2574 = vpop.permute.xlu0 %2573
          %v2578 = vadd.f32 %v2475, %v2570
          %v2579 = vadd.f32 %v2476, %v2570
          %v2580 = vadd.f32 %v2477, %v2572
          %v2581 = vadd.f32 %v2478, %v2572
          %v2582 = vadd.f32 %v2479, %v2574
          %v2583 = vadd.f32 %v2480, %v2574
          %v2584 = vstv %s2560
          %v2585 = vmul.f32 %v2584, %v321
          %v2586 = vmul.f32 %v2584, %v323
          %v2589 = vrot.slane %v2585, 2
          %v2590 = vrot.slane %v2586, 2
          %v2591 = vsel %vm397, %v2589, %v2590
          %2592 = vrot.lane.b32.xlu0 %v2589, 124
          %v2593 = vpop.permute.xlu0 %2592
          %2594 = vrot.lane.b32.xlu0 %v2591, 124
          %v2595 = vpop.permute.xlu0 %2594
          %2596 = vrot.lane.b32.xlu0 %v2590, 124
          %v2597 = vpop.permute.xlu0 %2596
          %v2601 = vadd.f32 %v2497, %v2593
          %v2602 = vadd.f32 %v2498, %v2593
          %v2603 = vadd.f32 %v2499, %v2595
          %v2604 = vadd.f32 %v2500, %v2595
          %v2605 = vadd.f32 %v2501, %v2597
          %v2606 = vadd.f32 %v2502, %v2597
          %s2607 = sld [smem:[#allocation9 + $0x20]]
          %s2608 = sld [smem:[#allocation9 + $0x51]]
          %v2609 = vstv %s2607
          %v2610 = vmul.f32 %v2609, %v313
          %v2611 = vmul.f32 %v2609, %v315
          %v2612 = vmul.f32 %v2609, %v317
          %v2616 = vrot.slane %v2610, 4
          %v2617 = vrot.slane %v2611, 4
          %v2618 = vsel %vm526, %v2616, %v2617
          %v2619 = vrot.slane %v2612, 4
          %v2620 = vsel %vm526, %v2617, %v2619
          %2621 = vrot.lane.b32.xlu0 %v2616, 124
          %v2622 = vpop.permute.xlu0 %2621
          %2623 = vrot.lane.b32.xlu0 %v2618, 124
          %v2624 = vpop.permute.xlu0 %2623
          %2625 = vrot.lane.b32.xlu0 %v2620, 124
          %v2626 = vpop.permute.xlu0 %2625
          %v2630 = vadd.f32 %v2526, %v2622
          %v2631 = vadd.f32 %v2527, %v2622
          %v2632 = vadd.f32 %v2528, %v2624
          %v2633 = vadd.f32 %v2529, %v2624
          %v2634 = vadd.f32 %v2530, %v2626
          %v2635 = vadd.f32 %v2531, %v2626
          %v2636 = vstv %s2608
          %v2637 = vmul.f32 %v2636, %v321
          %v2638 = vmul.f32 %v2636, %v323
          %v2639 = vmul.f32 %v2636, %v325
          %v2643 = vrot.slane %v2637, 4
          %v2644 = vrot.slane %v2638, 4
          %v2645 = vsel %vm526, %v2643, %v2644
          %v2646 = vrot.slane %v2639, 4
          %v2647 = vsel %vm526, %v2644, %v2646
          %2648 = vrot.lane.b32.xlu0 %v2643, 124
          %v2649 = vpop.permute.xlu0 %2648
          %2650 = vrot.lane.b32.xlu0 %v2645, 124
          %v2651 = vpop.permute.xlu0 %2650
          %2652 = vrot.lane.b32.xlu0 %v2647, 124
          %v2653 = vpop.permute.xlu0 %2652
          %v2657 = vadd.f32 %v2553, %v2649
          %v2658 = vadd.f32 %v2554, %v2649
          %v2659 = vadd.f32 %v2555, %v2651
          %v2660 = vadd.f32 %v2556, %v2651
          %v2661 = vadd.f32 %v2557, %v2653
          %v2662 = vadd.f32 %v2558, %v2653
          %s2663 = sld [smem:[#allocation9 + $0x27]]
          %s2664 = sld [smem:[#allocation9 + $0x58]]
          %v2665 = vstv %s2663
          %v2666 = vmul.f32 %v2665, %v313
          %v2667 = vmul.f32 %v2665, %v315
          %v2668 = vmul.f32 %v2665, %v317
          %v2672 = vrot.slane %v2666, 4
          %v2673 = vrot.slane %v2667, 4
          %v2674 = vsel %vm526, %v2672, %v2673
          %v2675 = vrot.slane %v2668, 4
          %v2676 = vsel %vm526, %v2673, %v2675
          %2677 = vrot.lane.b32.xlu0 %v2672, 124
          %v2678 = vpop.permute.xlu0 %2677
          %2679 = vrot.lane.b32.xlu0 %v2674, 124
          %v2680 = vpop.permute.xlu0 %2679
          %2681 = vrot.lane.b32.xlu0 %v2676, 124
          %v2682 = vpop.permute.xlu0 %2681
          %v2686 = vadd.f32 %v2578, %v2678
          %v2687 = vadd.f32 %v2579, %v2678
          %v2688 = vadd.f32 %v2580, %v2680
          %v2689 = vadd.f32 %v2581, %v2680
          %v2690 = vadd.f32 %v2582, %v2682
          %v2691 = vadd.f32 %v2583, %v2682
          %v2692 = vstv %s2664
          %v2693 = vmul.f32 %v2692, %v321
          %v2694 = vmul.f32 %v2692, %v323
          %v2695 = vmul.f32 %v2692, %v325
          %v2699 = vrot.slane %v2693, 4
          %v2700 = vrot.slane %v2694, 4
          %v2701 = vsel %vm526, %v2699, %v2700
          %v2702 = vrot.slane %v2695, 4
          %v2703 = vsel %vm526, %v2700, %v2702
          %2704 = vrot.lane.b32.xlu0 %v2699, 124
          %v2705 = vpop.permute.xlu0 %2704
          %2706 = vrot.lane.b32.xlu0 %v2701, 124
          %v2707 = vpop.permute.xlu0 %2706
          %2708 = vrot.lane.b32.xlu0 %v2703, 124
          %v2709 = vpop.permute.xlu0 %2708
          %v2713 = vadd.f32 %v2601, %v2705
          %v2714 = vadd.f32 %v2602, %v2705
          %v2715 = vadd.f32 %v2603, %v2707
          %v2716 = vadd.f32 %v2604, %v2707
          %v2717 = vadd.f32 %v2605, %v2709
          %v2718 = vadd.f32 %v2606, %v2709
          %s2719 = sld [smem:[#allocation9 + $0x2e]]
          %s2720 = sld [smem:[#allocation9 + $0x5f]]
          %v2721 = vstv %s2719
          %v2722 = vmul.f32 %v2721, %v313
          %v2723 = vmul.f32 %v2721, %v315
          %v2724 = vmul.f32 %v2721, %v317
          %v2728 = vrot.slane %v2722, 6
          %v2729 = vrot.slane %v2723, 6
          %v2730 = vsel %vm671, %v2728, %v2729
          %v2731 = vrot.slane %v2724, 6
          %v2732 = vsel %vm671, %v2729, %v2731
          %2733 = vrot.lane.b32.xlu0 %v2728, 124
          %v2734 = vpop.permute.xlu0 %2733
          %2735 = vrot.lane.b32.xlu0 %v2730, 124
          %v2736 = vpop.permute.xlu0 %2735
          %2737 = vrot.lane.b32.xlu0 %v2732, 124
          %v2738 = vpop.permute.xlu0 %2737
          %v2742 = vadd.f32 %v2630, %v2734
          %v2743 = vadd.f32 %v2631, %v2734
          %v2744 = vadd.f32 %v2632, %v2736
          %v2745 = vadd.f32 %v2633, %v2736
          %v2746 = vadd.f32 %v2634, %v2738
          %v2747 = vadd.f32 %v2635, %v2738
          %v2748 = vstv %s2720
          %v2749 = vmul.f32 %v2748, %v321
          %v2750 = vmul.f32 %v2748, %v323
          %v2751 = vmul.f32 %v2748, %v325
          %v2755 = vrot.slane %v2749, 6
          %v2756 = vrot.slane %v2750, 6
          %v2757 = vsel %vm671, %v2755, %v2756
          %v2758 = vrot.slane %v2751, 6
          %v2759 = vsel %vm671, %v2756, %v2758
          %2760 = vrot.lane.b32.xlu0 %v2755, 124
          %v2761 = vpop.permute.xlu0 %2760
          %2762 = vrot.lane.b32.xlu0 %v2757, 124
          %v2763 = vpop.permute.xlu0 %2762
          %2764 = vrot.lane.b32.xlu0 %v2759, 124
          %v2765 = vpop.permute.xlu0 %2764
          %v2769 = vadd.f32 %v2657, %v2761
          %v2770 = vadd.f32 %v2658, %v2761
          %v2771 = vadd.f32 %v2659, %v2763
          %v2772 = vadd.f32 %v2660, %v2763
          %v2773 = vadd.f32 %v2661, %v2765
          %v2774 = vadd.f32 %v2662, %v2765
          %s2775 = sld [smem:[#allocation9 + $0x5]]
          %s2776 = sld [smem:[#allocation9 + $0x36]]
          %v2777 = vstv %s2775
          %v2778 = vmul.f32 %v2777, %v311
          %v2779 = vmul.f32 %v2777, %v313
          %v2780 = vmul.f32 %v2777, %v315
          %2784 = vrot.lane.b32.xlu0 %v2778, 123
          %v2785 = vpop.permute.xlu0 %2784
          %2786 = vrot.lane.b32.xlu0 %v2779, 123
          %v2787 = vpop.permute.xlu0 %2786
          %2788 = vrot.lane.b32.xlu0 %v2780, 123
          %v2789 = vpop.permute.xlu0 %2788
          %v2793 = vadd.f32 %v2742, %v2785
          %v2794 = vadd.f32 %v2743, %v2785
          %v2795 = vadd.f32 %v2744, %v2787
          %v2796 = vadd.f32 %v2745, %v2787
          %v2797 = vadd.f32 %v2746, %v2789
          %v2798 = vadd.f32 %v2747, %v2789
          %v2799 = vstv %s2776
          %v2800 = vmul.f32 %v2799, %v319
          %v2801 = vmul.f32 %v2799, %v321
          %v2802 = vmul.f32 %v2799, %v323
          %2806 = vrot.lane.b32.xlu0 %v2800, 123
          %v2807 = vpop.permute.xlu0 %2806
          %2808 = vrot.lane.b32.xlu0 %v2801, 123
          %v2809 = vpop.permute.xlu0 %2808
          %2810 = vrot.lane.b32.xlu0 %v2802, 123
          %v2811 = vpop.permute.xlu0 %2810
          %v2815 = vadd.f32 %v2769, %v2807
          %v2816 = vadd.f32 %v2770, %v2807
          %v2817 = vadd.f32 %v2771, %v2809
          %v2818 = vadd.f32 %v2772, %v2809
          %v2819 = vadd.f32 %v2773, %v2811
          %v2820 = vadd.f32 %v2774, %v2811
          %s2821 = sld [smem:[#allocation9 + $0xc]]
          %s2822 = sld [smem:[#allocation9 + $0x3d]]
          %v2823 = vstv %s2821
          %v2824 = vmul.f32 %v2823, %v311
          %v2825 = vmul.f32 %v2823, %v313
          %v2826 = vmul.f32 %v2823, %v315
          %2830 = vrot.lane.b32.xlu0 %v2824, 123
          %v2831 = vpop.permute.xlu0 %2830
          %2832 = vrot.lane.b32.xlu0 %v2825, 123
          %v2833 = vpop.permute.xlu0 %2832
          %2834 = vrot.lane.b32.xlu0 %v2826, 123
          %v2835 = vpop.permute.xlu0 %2834
          %v2839 = vadd.f32 %v2686, %v2831
          %v2840 = vadd.f32 %v2687, %v2831
          %v2841 = vadd.f32 %v2688, %v2833
          %v2842 = vadd.f32 %v2689, %v2833
          %v2843 = vadd.f32 %v2690, %v2835
          %v2844 = vadd.f32 %v2691, %v2835
          %v2845 = vstv %s2822
          %v2846 = vmul.f32 %v2845, %v319
          %v2847 = vmul.f32 %v2845, %v321
          %v2848 = vmul.f32 %v2845, %v323
          %2852 = vrot.lane.b32.xlu0 %v2846, 123
          %v2853 = vpop.permute.xlu0 %2852
          %2854 = vrot.lane.b32.xlu0 %v2847, 123
          %v2855 = vpop.permute.xlu0 %2854
          %2856 = vrot.lane.b32.xlu0 %v2848, 123
          %v2857 = vpop.permute.xlu0 %2856
          %v2861 = vadd.f32 %v2713, %v2853
          %v2862 = vadd.f32 %v2714, %v2853
          %v2863 = vadd.f32 %v2715, %v2855
          %v2864 = vadd.f32 %v2716, %v2855
          %v2865 = vadd.f32 %v2717, %v2857
          %v2866 = vadd.f32 %v2718, %v2857
          %s2867 = sld [smem:[#allocation9 + $0x13]]
          %s2868 = sld [smem:[#allocation9 + $0x44]]
          %v2869 = vstv %s2867
          %v2870 = vmul.f32 %v2869, %v311
          %v2871 = vmul.f32 %v2869, %v313
          %v2872 = vmul.f32 %v2869, %v315
          %v2876 = vrot.slane %v2870, 2
          %v2877 = vrot.slane %v2871, 2
          %v2878 = vsel %vm397, %v2876, %v2877
          %v2879 = vrot.slane %v2872, 2
          %v2880 = vsel %vm397, %v2877, %v2879
          %2881 = vrot.lane.b32.xlu0 %v2878, 123
          %v2882 = vpop.permute.xlu0 %2881
          %2883 = vrot.lane.b32.xlu0 %v2880, 123
          %v2884 = vpop.permute.xlu0 %2883
          %2885 = vrot.lane.b32.xlu0 %v2879, 123
          %v2886 = vpop.permute.xlu0 %2885
          %v2890 = vadd.f32 %v2793, %v2882
          %v2891 = vadd.f32 %v2794, %v2882
          %v2892 = vadd.f32 %v2795, %v2884
          %v2893 = vadd.f32 %v2796, %v2884
          %v2894 = vadd.f32 %v2797, %v2886
          %v2895 = vadd.f32 %v2798, %v2886
          %v2896 = vstv %s2868
          %v2897 = vmul.f32 %v2896, %v319
          %v2898 = vmul.f32 %v2896, %v321
          %v2899 = vmul.f32 %v2896, %v323
          %v2903 = vrot.slane %v2897, 2
          %v2904 = vrot.slane %v2898, 2
          %v2905 = vsel %vm397, %v2903, %v2904
          %v2906 = vrot.slane %v2899, 2
          %v2907 = vsel %vm397, %v2904, %v2906
          %2908 = vrot.lane.b32.xlu0 %v2905, 123
          %v2909 = vpop.permute.xlu0 %2908
          %2910 = vrot.lane.b32.xlu0 %v2907, 123
          %v2911 = vpop.permute.xlu0 %2910
          %2912 = vrot.lane.b32.xlu0 %v2906, 123
          %v2913 = vpop.permute.xlu0 %2912
          %v2917 = vadd.f32 %v2815, %v2909
          %v2918 = vadd.f32 %v2816, %v2909
          %v2919 = vadd.f32 %v2817, %v2911
          %v2920 = vadd.f32 %v2818, %v2911
          %v2921 = vadd.f32 %v2819, %v2913
          %v2922 = vadd.f32 %v2820, %v2913
          %s2923 = sld [smem:[#allocation9 + $0x1a]]
          %s2924 = sld [smem:[#allocation9 + $0x4b]]
          %v2925 = vstv %s2923
          %v2926 = vmul.f32 %v2925, %v313
          %v2927 = vmul.f32 %v2925, %v315
          %v2930 = vrot.slane %v2926, 2
          %v2931 = vrot.slane %v2927, 2
          %v2932 = vsel %vm397, %v2930, %v2931
          %2933 = vrot.lane.b32.xlu0 %v2930, 123
          %v2934 = vpop.permute.xlu0 %2933
          %2935 = vrot.lane.b32.xlu0 %v2932, 123
          %v2936 = vpop.permute.xlu0 %2935
          %2937 = vrot.lane.b32.xlu0 %v2931, 123
          %v2938 = vpop.permute.xlu0 %2937
          %v2942 = vadd.f32 %v2839, %v2934
          %v2943 = vadd.f32 %v2840, %v2934
          %v2944 = vadd.f32 %v2841, %v2936
          %v2945 = vadd.f32 %v2842, %v2936
          %v2946 = vadd.f32 %v2843, %v2938
          %v2947 = vadd.f32 %v2844, %v2938
          %v2948 = vstv %s2924
          %v2949 = vmul.f32 %v2948, %v321
          %v2950 = vmul.f32 %v2948, %v323
          %v2953 = vrot.slane %v2949, 2
          %v2954 = vrot.slane %v2950, 2
          %v2955 = vsel %vm397, %v2953, %v2954
          %2956 = vrot.lane.b32.xlu0 %v2953, 123
          %v2957 = vpop.permute.xlu0 %2956
          %2958 = vrot.lane.b32.xlu0 %v2955, 123
          %v2959 = vpop.permute.xlu0 %2958
          %2960 = vrot.lane.b32.xlu0 %v2954, 123
          %v2961 = vpop.permute.xlu0 %2960
          %v2965 = vadd.f32 %v2861, %v2957
          %v2966 = vadd.f32 %v2862, %v2957
          %v2967 = vadd.f32 %v2863, %v2959
          %v2968 = vadd.f32 %v2864, %v2959
          %v2969 = vadd.f32 %v2865, %v2961
          %v2970 = vadd.f32 %v2866, %v2961
          %s2971 = sld [smem:[#allocation9 + $0x21]]
          %s2972 = sld [smem:[#allocation9 + $0x52]]
          %v2973 = vstv %s2971
          %v2974 = vmul.f32 %v2973, %v313
          %v2975 = vmul.f32 %v2973, %v315
          %v2976 = vmul.f32 %v2973, %v317
          %v2980 = vrot.slane %v2974, 4
          %v2981 = vrot.slane %v2975, 4
          %v2982 = vsel %vm526, %v2980, %v2981
          %v2983 = vrot.slane %v2976, 4
          %v2984 = vsel %vm526, %v2981, %v2983
          %2985 = vrot.lane.b32.xlu0 %v2980, 123
          %v2986 = vpop.permute.xlu0 %2985
          %2987 = vrot.lane.b32.xlu0 %v2982, 123
          %v2988 = vpop.permute.xlu0 %2987
          %2989 = vrot.lane.b32.xlu0 %v2984, 123
          %v2990 = vpop.permute.xlu0 %2989
          %v2994 = vadd.f32 %v2890, %v2986
          %v2995 = vadd.f32 %v2891, %v2986
          %v2996 = vadd.f32 %v2892, %v2988
          %v2997 = vadd.f32 %v2893, %v2988
          %v2998 = vadd.f32 %v2894, %v2990
          %v2999 = vadd.f32 %v2895, %v2990
          %v3000 = vstv %s2972
          %v3001 = vmul.f32 %v3000, %v321
          %v3002 = vmul.f32 %v3000, %v323
          %v3003 = vmul.f32 %v3000, %v325
          %v3007 = vrot.slane %v3001, 4
          %v3008 = vrot.slane %v3002, 4
          %v3009 = vsel %vm526, %v3007, %v3008
          %v3010 = vrot.slane %v3003, 4
          %v3011 = vsel %vm526, %v3008, %v3010
          %3012 = vrot.lane.b32.xlu0 %v3007, 123
          %v3013 = vpop.permute.xlu0 %3012
          %3014 = vrot.lane.b32.xlu0 %v3009, 123
          %v3015 = vpop.permute.xlu0 %3014
          %3016 = vrot.lane.b32.xlu0 %v3011, 123
          %v3017 = vpop.permute.xlu0 %3016
          %v3021 = vadd.f32 %v2917, %v3013
          %v3022 = vadd.f32 %v2918, %v3013
          %v3023 = vadd.f32 %v2919, %v3015
          %v3024 = vadd.f32 %v2920, %v3015
          %v3025 = vadd.f32 %v2921, %v3017
          %v3026 = vadd.f32 %v2922, %v3017
          %s3027 = sld [smem:[#allocation9 + $0x28]]
          %s3028 = sld [smem:[#allocation9 + $0x59]]
          %v3029 = vstv %s3027
          %v3030 = vmul.f32 %v3029, %v313
          %v3031 = vmul.f32 %v3029, %v315
          %v3032 = vmul.f32 %v3029, %v317
          %v3036 = vrot.slane %v3030, 4
          %v3037 = vrot.slane %v3031, 4
          %v3038 = vsel %vm526, %v3036, %v3037
          %v3039 = vrot.slane %v3032, 4
          %v3040 = vsel %vm526, %v3037, %v3039
          %3041 = vrot.lane.b32.xlu0 %v3036, 123
          %v3042 = vpop.permute.xlu0 %3041
          %3043 = vrot.lane.b32.xlu0 %v3038, 123
          %v3044 = vpop.permute.xlu0 %3043
          %3045 = vrot.lane.b32.xlu0 %v3040, 123
          %v3046 = vpop.permute.xlu0 %3045
          %v3050 = vadd.f32 %v2942, %v3042
          %v3051 = vadd.f32 %v2943, %v3042
          %v3052 = vadd.f32 %v2944, %v3044
          %v3053 = vadd.f32 %v2945, %v3044
          %v3054 = vadd.f32 %v2946, %v3046
          %v3055 = vadd.f32 %v2947, %v3046
          %v3056 = vstv %s3028
          %v3057 = vmul.f32 %v3056, %v321
          %v3058 = vmul.f32 %v3056, %v323
          %v3059 = vmul.f32 %v3056, %v325
          %v3063 = vrot.slane %v3057, 4
          %v3064 = vrot.slane %v3058, 4
          %v3065 = vsel %vm526, %v3063, %v3064
          %v3066 = vrot.slane %v3059, 4
          %v3067 = vsel %vm526, %v3064, %v3066
          %3068 = vrot.lane.b32.xlu0 %v3063, 123
          %v3069 = vpop.permute.xlu0 %3068
          %3070 = vrot.lane.b32.xlu0 %v3065, 123
          %v3071 = vpop.permute.xlu0 %3070
          %3072 = vrot.lane.b32.xlu0 %v3067, 123
          %v3073 = vpop.permute.xlu0 %3072
          %v3077 = vadd.f32 %v2965, %v3069
          %v3078 = vadd.f32 %v2966, %v3069
          %v3079 = vadd.f32 %v2967, %v3071
          %v3080 = vadd.f32 %v2968, %v3071
          %v3081 = vadd.f32 %v2969, %v3073
          %v3082 = vadd.f32 %v2970, %v3073
          %s3083 = sld [smem:[#allocation9 + $0x2f]]
          %s3084 = sld [smem:[#allocation9 + $0x60]]
          %v3085 = vstv %s3083
          %v3086 = vmul.f32 %v3085, %v313
          %v3087 = vmul.f32 %v3085, %v315
          %v3088 = vmul.f32 %v3085, %v317
          %v3092 = vrot.slane %v3086, 6
          %v3093 = vrot.slane %v3087, 6
          %v3094 = vsel %vm671, %v3092, %v3093
          %v3095 = vrot.slane %v3088, 6
          %v3096 = vsel %vm671, %v3093, %v3095
          %3097 = vrot.lane.b32.xlu0 %v3092, 123
          %v3098 = vpop.permute.xlu0 %3097
          %3099 = vrot.lane.b32.xlu0 %v3094, 123
          %v3100 = vpop.permute.xlu0 %3099
          %3101 = vrot.lane.b32.xlu0 %v3096, 123
          %v3102 = vpop.permute.xlu0 %3101
          %v3106 = vadd.f32 %v2994, %v3098
          %v3107 = vadd.f32 %v2995, %v3098
          %v3108 = vadd.f32 %v2996, %v3100
          %v3109 = vadd.f32 %v2997, %v3100
          %v3110 = vadd.f32 %v2998, %v3102
          %v3111 = vadd.f32 %v2999, %v3102
          %v3112 = vstv %s3084
          %v3113 = vmul.f32 %v3112, %v321
          %v3114 = vmul.f32 %v3112, %v323
          %v3115 = vmul.f32 %v3112, %v325
          %v3119 = vrot.slane %v3113, 6
          %v3120 = vrot.slane %v3114, 6
          %v3121 = vsel %vm671, %v3119, %v3120
          %v3122 = vrot.slane %v3115, 6
          %v3123 = vsel %vm671, %v3120, %v3122
          %3124 = vrot.lane.b32.xlu0 %v3119, 123
          %v3125 = vpop.permute.xlu0 %3124
          %3126 = vrot.lane.b32.xlu0 %v3121, 123
          %v3127 = vpop.permute.xlu0 %3126
          %3128 = vrot.lane.b32.xlu0 %v3123, 123
          %v3129 = vpop.permute.xlu0 %3128
          %v3133 = vadd.f32 %v3021, %v3125
          %v3134 = vadd.f32 %v3022, %v3125
          %v3135 = vadd.f32 %v3023, %v3127
          %v3136 = vadd.f32 %v3024, %v3127
          %v3137 = vadd.f32 %v3025, %v3129
          %v3138 = vadd.f32 %v3026, %v3129
          %s3139 = sld [smem:[#allocation9 + $0x6]]
          %s3140 = sld [smem:[#allocation9 + $0x37]]
          %v3141 = vstv %s3139
          %v3142 = vmul.f32 %v3141, %v311
          %v3143 = vmul.f32 %v3141, %v313
          %v3144 = vmul.f32 %v3141, %v315
          %3148 = vrot.lane.b32.xlu0 %v3142, 122
          %v3149 = vpop.permute.xlu0 %3148
          %3150 = vrot.lane.b32.xlu0 %v3143, 122
          %v3151 = vpop.permute.xlu0 %3150
          %3152 = vrot.lane.b32.xlu0 %v3144, 122
          %v3153 = vpop.permute.xlu0 %3152
          %v3157 = vadd.f32 %v3106, %v3149
          %v3158 = vadd.f32 %v3107, %v3149
          %v3159 = vadd.f32 %v3108, %v3151
          %v3160 = vadd.f32 %v3109, %v3151
          %v3161 = vadd.f32 %v3110, %v3153
          %v3162 = vadd.f32 %v3111, %v3153
          %v3163 = vstv %s3140
          %v3164 = vmul.f32 %v3163, %v319
          %v3165 = vmul.f32 %v3163, %v321
          %v3166 = vmul.f32 %v3163, %v323
          %3170 = vrot.lane.b32.xlu0 %v3164, 122
          %v3171 = vpop.permute.xlu0 %3170
          %3172 = vrot.lane.b32.xlu0 %v3165, 122
          %v3173 = vpop.permute.xlu0 %3172
          %3174 = vrot.lane.b32.xlu0 %v3166, 122
          %v3175 = vpop.permute.xlu0 %3174
          %v3179 = vadd.f32 %v3133, %v3171
          %v3180 = vadd.f32 %v3134, %v3171
          %v3181 = vadd.f32 %v3135, %v3173
          %v3182 = vadd.f32 %v3136, %v3173
          %v3183 = vadd.f32 %v3137, %v3175
          %v3184 = vadd.f32 %v3138, %v3175
          %s3185 = sld [smem:[#allocation9 + $0xd]]
          %s3186 = sld [smem:[#allocation9 + $0x3e]]
          %v3187 = vstv %s3185
          %v3188 = vmul.f32 %v3187, %v311
          %v3189 = vmul.f32 %v3187, %v313
          %v3190 = vmul.f32 %v3187, %v315
          %3194 = vrot.lane.b32.xlu0 %v3188, 122
          %v3195 = vpop.permute.xlu0 %3194
          %3196 = vrot.lane.b32.xlu0 %v3189, 122
          %v3197 = vpop.permute.xlu0 %3196
          %3198 = vrot.lane.b32.xlu0 %v3190, 122
          %v3199 = vpop.permute.xlu0 %3198
          %v3203 = vadd.f32 %v3050, %v3195
          %v3204 = vadd.f32 %v3051, %v3195
          %v3205 = vadd.f32 %v3052, %v3197
          %v3206 = vadd.f32 %v3053, %v3197
          %v3207 = vadd.f32 %v3054, %v3199
          %v3208 = vadd.f32 %v3055, %v3199
          %v3209 = vstv %s3186
          %v3210 = vmul.f32 %v3209, %v319
          %v3211 = vmul.f32 %v3209, %v321
          %v3212 = vmul.f32 %v3209, %v323
          %3216 = vrot.lane.b32.xlu0 %v3210, 122
          %v3217 = vpop.permute.xlu0 %3216
          %3218 = vrot.lane.b32.xlu0 %v3211, 122
          %v3219 = vpop.permute.xlu0 %3218
          %3220 = vrot.lane.b32.xlu0 %v3212, 122
          %v3221 = vpop.permute.xlu0 %3220
          %v3225 = vadd.f32 %v3077, %v3217
          %v3226 = vadd.f32 %v3078, %v3217
          %v3227 = vadd.f32 %v3079, %v3219
          %v3228 = vadd.f32 %v3080, %v3219
          %v3229 = vadd.f32 %v3081, %v3221
          %v3230 = vadd.f32 %v3082, %v3221
          %s3231 = sld [smem:[#allocation9 + $0x14]]
          %s3232 = sld [smem:[#allocation9 + $0x45]]
          %v3233 = vstv %s3231
          %v3234 = vmul.f32 %v3233, %v311
          %v3235 = vmul.f32 %v3233, %v313
          %v3236 = vmul.f32 %v3233, %v315
          %v3240 = vrot.slane %v3234, 2
          %v3241 = vrot.slane %v3235, 2
          %v3242 = vsel %vm397, %v3240, %v3241
          %v3243 = vrot.slane %v3236, 2
          %v3244 = vsel %vm397, %v3241, %v3243
          %3245 = vrot.lane.b32.xlu0 %v3242, 122
          %v3246 = vpop.permute.xlu0 %3245
          %3247 = vrot.lane.b32.xlu0 %v3244, 122
          %v3248 = vpop.permute.xlu0 %3247
          %3249 = vrot.lane.b32.xlu0 %v3243, 122
          %v3250 = vpop.permute.xlu0 %3249
          %v3254 = vadd.f32 %v3157, %v3246
          %v3255 = vadd.f32 %v3158, %v3246
          %v3256 = vadd.f32 %v3159, %v3248
          %v3257 = vadd.f32 %v3160, %v3248
          %v3258 = vadd.f32 %v3161, %v3250
          %v3259 = vadd.f32 %v3162, %v3250
          %v3260 = vstv %s3232
          %v3261 = vmul.f32 %v3260, %v319
          %v3262 = vmul.f32 %v3260, %v321
          %v3263 = vmul.f32 %v3260, %v323
          %v3267 = vrot.slane %v3261, 2
          %v3268 = vrot.slane %v3262, 2
          %v3269 = vsel %vm397, %v3267, %v3268
          %v3270 = vrot.slane %v3263, 2
          %v3271 = vsel %vm397, %v3268, %v3270
          %3272 = vrot.lane.b32.xlu0 %v3269, 122
          %v3273 = vpop.permute.xlu0 %3272
          %3274 = vrot.lane.b32.xlu0 %v3271, 122
          %v3275 = vpop.permute.xlu0 %3274
          %3276 = vrot.lane.b32.xlu0 %v3270, 122
          %v3277 = vpop.permute.xlu0 %3276
          %v3281 = vadd.f32 %v3179, %v3273
          %v3282 = vadd.f32 %v3180, %v3273
          %v3283 = vadd.f32 %v3181, %v3275
          %v3284 = vadd.f32 %v3182, %v3275
          %v3285 = vadd.f32 %v3183, %v3277
          %v3286 = vadd.f32 %v3184, %v3277
          %s3287 = sld [smem:[#allocation9 + $0x1b]]
          %s3288 = sld [smem:[#allocation9 + $0x4c]]
          %v3289 = vstv %s3287
          %v3290 = vmul.f32 %v3289, %v313
          %v3291 = vmul.f32 %v3289, %v315
          %v3294 = vrot.slane %v3290, 2
          %v3295 = vrot.slane %v3291, 2
          %v3296 = vsel %vm397, %v3294, %v3295
          %3297 = vrot.lane.b32.xlu0 %v3294, 122
          %v3298 = vpop.permute.xlu0 %3297
          %3299 = vrot.lane.b32.xlu0 %v3296, 122
          %v3300 = vpop.permute.xlu0 %3299
          %3301 = vrot.lane.b32.xlu0 %v3295, 122
          %v3302 = vpop.permute.xlu0 %3301
          %v3306 = vadd.f32 %v3203, %v3298
          %v3307 = vadd.f32 %v3204, %v3298
          %v3308 = vadd.f32 %v3205, %v3300
          %v3309 = vadd.f32 %v3206, %v3300
          %v3310 = vadd.f32 %v3207, %v3302
          %v3311 = vadd.f32 %v3208, %v3302
          %v3312 = vstv %s3288
          %v3313 = vmul.f32 %v3312, %v321
          %v3314 = vmul.f32 %v3312, %v323
          %v3317 = vrot.slane %v3313, 2
          %v3318 = vrot.slane %v3314, 2
          %v3319 = vsel %vm397, %v3317, %v3318
          %3320 = vrot.lane.b32.xlu0 %v3317, 122
          %v3321 = vpop.permute.xlu0 %3320
          %3322 = vrot.lane.b32.xlu0 %v3319, 122
          %v3323 = vpop.permute.xlu0 %3322
          %3324 = vrot.lane.b32.xlu0 %v3318, 122
          %v3325 = vpop.permute.xlu0 %3324
          %v3329 = vadd.f32 %v3225, %v3321
          %v3330 = vadd.f32 %v3226, %v3321
          %v3331 = vadd.f32 %v3227, %v3323
          %v3332 = vadd.f32 %v3228, %v3323
          %v3333 = vadd.f32 %v3229, %v3325
          %v3334 = vadd.f32 %v3230, %v3325
          %s3335 = sld [smem:[#allocation9 + $0x22]]
          %s3336 = sld [smem:[#allocation9 + $0x53]]
          %v3337 = vstv %s3335
          %v3338 = vmul.f32 %v3337, %v313
          %v3339 = vmul.f32 %v3337, %v315
          %v3340 = vmul.f32 %v3337, %v317
          %v3344 = vrot.slane %v3338, 4
          %v3345 = vrot.slane %v3339, 4
          %v3346 = vsel %vm526, %v3344, %v3345
          %v3347 = vrot.slane %v3340, 4
          %v3348 = vsel %vm526, %v3345, %v3347
          %3349 = vrot.lane.b32.xlu0 %v3344, 122
          %v3350 = vpop.permute.xlu0 %3349
          %3351 = vrot.lane.b32.xlu0 %v3346, 122
          %v3352 = vpop.permute.xlu0 %3351
          %3353 = vrot.lane.b32.xlu0 %v3348, 122
          %v3354 = vpop.permute.xlu0 %3353
          %v3358 = vadd.f32 %v3254, %v3350
          %v3359 = vadd.f32 %v3255, %v3350
          %v3360 = vadd.f32 %v3256, %v3352
          %v3361 = vadd.f32 %v3257, %v3352
          %v3362 = vadd.f32 %v3258, %v3354
          %v3363 = vadd.f32 %v3259, %v3354
          %v3364 = vstv %s3336
          %v3365 = vmul.f32 %v3364, %v321
          %v3366 = vmul.f32 %v3364, %v323
          %v3367 = vmul.f32 %v3364, %v325
          %v3371 = vrot.slane %v3365, 4
          %v3372 = vrot.slane %v3366, 4
          %v3373 = vsel %vm526, %v3371, %v3372
          %v3374 = vrot.slane %v3367, 4
          %v3375 = vsel %vm526, %v3372, %v3374
          %3376 = vrot.lane.b32.xlu0 %v3371, 122
          %v3377 = vpop.permute.xlu0 %3376
          %3378 = vrot.lane.b32.xlu0 %v3373, 122
          %v3379 = vpop.permute.xlu0 %3378
          %3380 = vrot.lane.b32.xlu0 %v3375, 122
          %v3381 = vpop.permute.xlu0 %3380
          %v3385 = vadd.f32 %v3281, %v3377
          %v3386 = vadd.f32 %v3282, %v3377
          %v3387 = vadd.f32 %v3283, %v3379
          %v3388 = vadd.f32 %v3284, %v3379
          %v3389 = vadd.f32 %v3285, %v3381
          %v3390 = vadd.f32 %v3286, %v3381
          %s3391 = sld [smem:[#allocation9 + $0x29]]
          %s3392 = sld [smem:[#allocation9 + $0x5a]]
          %v3393 = vstv %s3391
          %v3394 = vmul.f32 %v3393, %v313
          %v3395 = vmul.f32 %v3393, %v315
          %v3396 = vmul.f32 %v3393, %v317
          %v3400 = vrot.slane %v3394, 4
          %v3401 = vrot.slane %v3395, 4
          %v3402 = vsel %vm526, %v3400, %v3401
          %v3403 = vrot.slane %v3396, 4
          %v3404 = vsel %vm526, %v3401, %v3403
          %3405 = vrot.lane.b32.xlu0 %v3400, 122
          %v3406 = vpop.permute.xlu0 %3405
          %3407 = vrot.lane.b32.xlu0 %v3402, 122
          %v3408 = vpop.permute.xlu0 %3407
          %3409 = vrot.lane.b32.xlu0 %v3404, 122
          %v3410 = vpop.permute.xlu0 %3409
          %v3414 = vadd.f32 %v3306, %v3406
          %v3415 = vadd.f32 %v3307, %v3406
          %v3416 = vadd.f32 %v3308, %v3408
          %v3417 = vadd.f32 %v3309, %v3408
          %v3418 = vadd.f32 %v3310, %v3410
          %v3419 = vadd.f32 %v3311, %v3410
          %v3420 = vstv %s3392
          %v3421 = vmul.f32 %v3420, %v321
          %v3422 = vmul.f32 %v3420, %v323
          %v3423 = vmul.f32 %v3420, %v325
          %v3427 = vrot.slane %v3421, 4
          %v3428 = vrot.slane %v3422, 4
          %v3429 = vsel %vm526, %v3427, %v3428
          %v3430 = vrot.slane %v3423, 4
          %v3431 = vsel %vm526, %v3428, %v3430
          %3432 = vrot.lane.b32.xlu0 %v3427, 122
          %v3433 = vpop.permute.xlu0 %3432
          %3434 = vrot.lane.b32.xlu0 %v3429, 122
          %v3435 = vpop.permute.xlu0 %3434
          %3436 = vrot.lane.b32.xlu0 %v3431, 122
          %v3437 = vpop.permute.xlu0 %3436
          %v3441 = vadd.f32 %v3329, %v3433
          %v3442 = vadd.f32 %v3330, %v3433
          %v3443 = vadd.f32 %v3331, %v3435
          %v3444 = vadd.f32 %v3332, %v3435
          %v3445 = vadd.f32 %v3333, %v3437
          %v3446 = vadd.f32 %v3334, %v3437
          %s3447 = sld [smem:[#allocation9 + $0x30]]
          %s3448 = sld [smem:[#allocation9 + $0x61]]
          %v3449 = vstv %s3447
          %v3450 = vmul.f32 %v3449, %v313
          %v3451 = vmul.f32 %v3449, %v315
          %v3452 = vmul.f32 %v3449, %v317
          %v3456 = vrot.slane %v3450, 6
          %v3457 = vrot.slane %v3451, 6
          %v3458 = vsel %vm671, %v3456, %v3457
          %v3459 = vrot.slane %v3452, 6
          %v3460 = vsel %vm671, %v3457, %v3459
          %3461 = vrot.lane.b32.xlu0 %v3456, 122
          %v3462 = vpop.permute.xlu0 %3461
          %3463 = vrot.lane.b32.xlu0 %v3458, 122
          %v3464 = vpop.permute.xlu0 %3463
          %3465 = vrot.lane.b32.xlu0 %v3460, 122
          %v3466 = vpop.permute.xlu0 %3465
          %v3470 = vadd.f32 %v3358, %v3462
          %v3471 = vadd.f32 %v3359, %v3462
          %v3472 = vadd.f32 %v3360, %v3464
          %v3473 = vadd.f32 %v3361, %v3464
          %v3474 = vadd.f32 %v3362, %v3466
          %v3475 = vadd.f32 %v3363, %v3466
          %v3476 = vstv %s3448
          %v3477 = vmul.f32 %v3476, %v321
          %v3478 = vmul.f32 %v3476, %v323
          %v3479 = vmul.f32 %v3476, %v325
          %v3483 = vrot.slane %v3477, 6
          %v3484 = vrot.slane %v3478, 6
          %v3485 = vsel %vm671, %v3483, %v3484
          %v3486 = vrot.slane %v3479, 6
          %v3487 = vsel %vm671, %v3484, %v3486
          %3488 = vrot.lane.b32.xlu0 %v3483, 122
          %v3489 = vpop.permute.xlu0 %3488
          %3490 = vrot.lane.b32.xlu0 %v3485, 122
          %v3491 = vpop.permute.xlu0 %3490
          %3492 = vrot.lane.b32.xlu0 %v3487, 122
          %v3493 = vpop.permute.xlu0 %3492
          %v3497 = vadd.f32 %v3385, %v3489
          %v3498 = vadd.f32 %v3386, %v3489
          %v3499 = vadd.f32 %v3387, %v3491
          %v3500 = vadd.f32 %v3388, %v3491
          %v3501 = vadd.f32 %v3389, %v3493
          %v3502 = vadd.f32 %v3390, %v3493
          %vm3509 = vcmask 1046528
          %v3510 = vrot.slane %v3414, 1
          %v3511 = vrot.slane %v3416, 1
          %v3512 = vsel %vm3509, %v3510, %v3511
          %v3513 = vrot.slane %v3415, 1
          %v3514 = vrot.slane %v3417, 1
          %v3515 = vsel %vm3509, %v3513, %v3514
          %v3516 = vrot.slane %v3418, 1
          %v3517 = vsel %vm3509, %v3511, %v3516
          %v3518 = vrot.slane %v3419, 1
          %v3519 = vsel %vm3509, %v3514, %v3518
          %v3526 = vadd.f32 %v3470, %v3512
          %v3527 = vadd.f32 %v3471, %v3515
          %v3528 = vadd.f32 %v3472, %v3517
          %v3529 = vadd.f32 %v3473, %v3519
          %v3530 = vadd.f32 %v3474, %v3516
          %v3531 = vadd.f32 %v3475, %v3518
          %v3538 = vrot.slane %v3441, 1
          %v3539 = vrot.slane %v3443, 1
          %v3540 = vsel %vm3509, %v3538, %v3539
          %v3541 = vrot.slane %v3442, 1
          %v3542 = vrot.slane %v3444, 1
          %v3543 = vsel %vm3509, %v3541, %v3542
          %v3544 = vrot.slane %v3445, 1
          %v3545 = vsel %vm3509, %v3539, %v3544
          %v3546 = vrot.slane %v3446, 1
          %v3547 = vsel %vm3509, %v3542, %v3546
          %v3554 = vadd.f32 %v3497, %v3540
          %v3555 = vadd.f32 %v3498, %v3543
          %v3556 = vadd.f32 %v3499, %v3545
          %v3557 = vadd.f32 %v3500, %v3547
          %v3558 = vadd.f32 %v3501, %v3544
          %v3559 = vadd.f32 %v3502, %v3546
          %v3560 = vadd.f32 %v3526, %v3554
          %v3561 = vadd.f32 %v3527, %v3555
          %v3562 = vadd.f32 %v3528, %v3556
          %v3563 = vadd.f32 %v3529, %v3557
          %v3564 = vadd.f32 %v3530, %v3558
          %v3565 = vadd.f32 %v3531, %v3559
          %s3566 = sld [smem:[#allocation4]]
          %v3567 = vstv %s3566
          %v3568 = vadd.f32 %v3560, %v3567
          %v3569 = vadd.f32 %v3561, %v3567
          %v3570 = vadd.f32 %v3562, %v3567
          %v3571 = vadd.f32 %v3563, %v3567
          %v3572 = vadd.f32 %v3564, %v3567
          %v3573 = vadd.f32 %v3565, %v3567
          %v3574 = vxor.u32 %v3568, 2147483648
          %v3575 = vxor.u32 %v3569, 2147483648
          %v3576 = vxor.u32 %v3570, 2147483648
          %v3577 = vxor.u32 %v3571, 2147483648
          %v3578 = vxor.u32 %v3572, 2147483648
          %v3579 = vxor.u32 %v3573, 2147483648
          %v3580 = vmul.f32 %v3574, 1.442695
          %v3581 = vpow.pop %v3580
          %v3582 = vmul.f32 %v3575, 1.442695
          %v3583 = vpow.pop %v3582
          %v3584 = vmul.f32 %v3576, 1.442695
          %v3585 = vpow.pop %v3584
          %v3586 = vmul.f32 %v3577, 1.442695
          %v3587 = vpow.pop %v3586
          %v3588 = vmul.f32 %v3578, 1.442695
          %v3589 = vpow.pop %v3588
          %v3590 = vmul.f32 %v3579, 1.442695
          %v3591 = vpow.pop %v3590
          %v3592 = vadd.f32 %v3581, 1.0
          %v3593 = vadd.f32 %v3583, 1.0
          %v3594 = vadd.f32 %v3585, 1.0
          %v3595 = vadd.f32 %v3587, 1.0
          %v3596 = vadd.f32 %v3589, 1.0
          %v3597 = vadd.f32 %v3591, 1.0
          %v3598 = vrcp.pop %v3592
          %v3599 = vmul.f32 1.0, %v3598
          %v3600 = vrcp.pop %v3593
          %v3601 = vmul.f32 1.0, %v3600
          %v3602 = vrcp.pop %v3594
          %v3603 = vmul.f32 1.0, %v3602
          %v3604 = vrcp.pop %v3595
          %v3605 = vmul.f32 1.0, %v3604
          %v3606 = vrcp.pop %v3596
          %v3607 = vmul.f32 1.0, %v3606
          %v3608 = vrcp.pop %v3597
          %v3609 = vmul.f32 1.0, %v3608
          %3616 = vrot.lane.b32.xlu0 %v3599, 3
          %v3617 = vpop.permute.xlu0 %3616
          %3618 = vrot.lane.b32.xlu0 %v3601, 3
          %v3619 = vpop.permute.xlu0 %3618
          %3620 = vrot.lane.b32.xlu0 %v3603, 3
          %v3621 = vpop.permute.xlu0 %3620
          %3622 = vrot.lane.b32.xlu0 %v3605, 3
          %v3623 = vpop.permute.xlu0 %3622
          %3624 = vrot.lane.b32.xlu0 %v3607, 3
          %v3625 = vpop.permute.xlu0 %3624
          %3626 = vrot.lane.b32.xlu0 %v3609, 3
          %v3627 = vpop.permute.xlu0 %3626
          %vm3628 = vcmask 23552
          %v3629 = vsel %vm3628, %v3617, %v3619
          %v3630 = vsel %vm3628, %v3621, %v3623
          %v3631 = vsel %vm3628, %v3625, %v3627
          %vm3635 = vcmask 130053
          %3636 = vst.msk [vmem:[%s220 - $0x5] sm:$0xe0] %vm3635, %v3629
          %3637 = vst.msk [vmem:[%s220 + $0x3] sm:$0xff] %vm230, %v3630
          %vm3638 = vcmask 126976
          %3639 = vst.msk [vmem:[%s220 + $0xb] sm:$0x1f] %vm3638, %v3631
        $region52: #{spatial_attention.1} parent=31 // pred_fallthru
          _
        %s3640 = sand.u32 %s112, 1
        %s3641 = scalar_lea.sflag [#allocation7], %s3640
        %s3642 = sand.u32 %s112, 1
        %s3643 = smul.addr %s3642, 16
        %s3644 = scalar_lea.vmem [#allocation10], %s3643
        // Predicated region
        $region53: #{spatial_attention.1} parent=31 // pred_check
          %p3645 = pneg %p122
        $region54: #{spatial_attention.1} parent=31 // pred_check_branch
          %3647 = sbr.rel (%p3645) target = $region56
        $region55: #{spatial_attention.1} parent=31 // pred_region
          %s3649 = ssub.s32 256, 256
          %3650 = vsyncadd %s3641, %s3649
          %s3651 = smul.addr %s26, 2
          %s3652 = smul.addr %s3651, 128
          %s3653 = scalar_lea.hbm %s3, %s3652
          %s3654 = sshll.u32 %s3644, 4
          %s3655 = int_to_ptr.vmem [resolvable:$true] %s3654
          %3660 = dma.vmem_to_hbm [thread:$0]  %s3655, 256, %s3653, %s3641, 128, 128, 8
        $region56: #{spatial_attention.1} parent=31 // pred_fallthru
          _
      $region32: #{spatial_attention.1} parent=5 // pred_fallthru
        _
      %p3661 = scmp.le.s32.totalorder 2, %s17
      // Predicated region
      $region57: #{spatial_attention.1} parent=5 // pred_check
        %p3662 = pneg %p3661
      $region58: #{spatial_attention.1} parent=5 // pred_check_branch
        %3664 = sbr.rel (%p3662) target = $region60
      $region59: #{spatial_attention.1} parent=5 // pred_region
        %s3665 = ssub.s32 %s17, 2
        // Predicated region
        $region61: #{spatial_attention.1} parent=59 // pred_check
          %p3666 = pneg %p128
        $region62: #{spatial_attention.1} parent=59 // pred_check_branch
          %3668 = sbr.rel (%p3666) target = $region64
        $region63: #{spatial_attention.1} parent=59 // pred_region
          %s3669 = sand.u32 %s113, 1
          %s3670 = scalar_lea.sflag [#allocation7], %s3669
          %s3671 = sand.u32 %s113, 1
          %s3672 = smul.addr %s3671, 16
          %s3673 = scalar_lea.vmem [#allocation10], %s3672
          %3674 = dma.done %s3670, 256
        $region64: #{spatial_attention.1} parent=59 // pred_fallthru
          _
      $region60: #{spatial_attention.1} parent=5 // pred_fallthru
        _
    $region6: #{spatial_attention.1} parent=1 // loop_footer
      %s21 = sadd.s32 1, %s17
    $region7: #{spatial_attention.1} parent=1 // loop_footer_branch
      %16 = sbr.rel target = $region3
    $region8: #{spatial_attention.1} parent=1 // loop_exit
      _
    %3675 = vsyncpa [#allocation6], 1
    %s3676 = scalar_lea.sflag [#allocation6], 1
    %3677 = vsyncpa %s3676, 1
    %3678 = vsyncpa [#allocation7], 1
    %s3679 = scalar_lea.sflag [#allocation7], 1
    %3680 = vsyncpa %s3679, 1
    %3681 = vsyncpa [#allocation8], 1
    %s3682 = scalar_lea.sflag [#allocation8], 1
    %3683 = vsyncpa %s3682, 1

</llo_original>
